<compile_context>
chip_gen: v7x
topology: tpu7x:2x2x1
jax: 0.10.0
libtpu: 0.0.40
codegen_flags: <defaults>
</compile_context>

<pallas_src>
import functools
import math

import jax
import jax.numpy as jnp
from jax.experimental import pallas as pl
from jax.experimental.pallas import tpu as pltpu

# ----------------------------- config (small) -----------------------------
VOCAB = 100
VPAD = 128              # vocab padded to one full MXU/lane width
HIDDEN = 32
N_LAYERS = 2
N_HEADS = 4
D_HEAD = HIDDEN // N_HEADS
INTERMEDIATE = 64
MAX_POS = 16
TYPE_VOCAB = 2
SEQ = 8
BATCH = 2
N_LANGS = 5
LN_EPS = 1e-12
NEG_BIG = -1e9          # cross-batch attention blocker; exp() underflows to 0

M_TOK = BATCH * SEQ     # total tokens processed in one block

# ---- packed activation buffer layout (lane width = HIDDEN) ----
ACT_LANES = HIDDEN
TEPE_R0 = 0                          # [M, H]  pos+type embeddings
BIAS_R0 = TEPE_R0 + M_TOK            # [M, M]  additive attention bias
POOL_R0 = BIAS_R0 + M_TOK            # [B, M]  mean-pooling matrix
IDS_R0 = POOL_R0 + 8                 # [M, 1]  token ids (as f32, exact ints)
ACT_ROWS = IDS_R0 + M_TOK

# ---- packed weight blob layout (lane width = 128) ----
W_LANES = 128
WE_R0 = 0                            # word embedding  [VPAD, H]
EMB_LN_R0 = WE_R0 + VPAD             # row+0 gamma, row+1 beta (8-row block)
LAYER_R0 = EMB_LN_R0 + 8
WQKV_OFF = 0                         # [H, 3H]
WO_OFF = WQKV_OFF + HIDDEN           # [H, H]
W1_OFF = WO_OFF + HIDDEN             # [H, I]
W2_OFF = W1_OFF + HIDDEN             # [I, H]
LVEC_OFF = W2_OFF + INTERMEDIATE     # 8 rows: bqkv, bo, b1, b2, ln1g, ln1b, ln2g, ln2b
LROWS = LVEC_OFF + 8
HEAD_R0 = LAYER_R0 + N_LAYERS * LROWS
PW_OFF = 0                           # pooler_w [H, H]
CW_OFF = PW_OFF + HIDDEN             # cls_w    [H, n_langs]
HVEC_OFF = CW_OFF + HIDDEN           # 8 rows: pooler_b, cls_b
W_ROWS = HEAD_R0 + HVEC_OFF + 8


# ----------------------------- fused kernel -------------------------------
def _layer_norm(x, gamma, beta):
    mu = jnp.mean(x, axis=-1, keepdims=True)
    xc = x - mu
    var = jnp.mean(xc * xc, axis=-1, keepdims=True)
    return xc * jax.lax.rsqrt(var + LN_EPS) * gamma + beta


def _bert_langid_kernel(act_ref, w_ref, o_ref):
    M = M_TOK
    H = HIDDEN
    I = INTERMEDIATE
    scale = 1.0 / math.sqrt(D_HEAD)

    # ---- unpack activation buffer (static, sublane-aligned slices) ----
    tepe = act_ref[TEPE_R0:TEPE_R0 + M, :]                 # [M, H]
    bias = act_ref[BIAS_R0:BIAS_R0 + M, 0:M]               # [M, M]
    pool = act_ref[POOL_R0:POOL_R0 + BATCH, 0:M]           # [B, M]
    ids_f = act_ref[IDS_R0:IDS_R0 + M, 0:1]                # [M, 1] (exact small ints)

    # ---- embeddings: one-hot gather as a single un-fringed MXU pass ----
    word_emb = w_ref[WE_R0:WE_R0 + VPAD, 0:H]              # [128, H]
    lane = jax.lax.broadcasted_iota(jnp.int32, (M, VPAD), 1).astype(jnp.float32)
    one_hot = (lane == ids_f).astype(jnp.float32)          # [M, 128]
    we = jnp.dot(one_hot, word_emb, preferred_element_type=jnp.float32)  # [M, H]

    emb_ln = w_ref[EMB_LN_R0:EMB_LN_R0 + 8, 0:H]
    h = _layer_norm(we + tepe, emb_ln[0:1], emb_ln[1:2])   # [M, H]

    # ---- encoder layers (static unroll, N_LAYERS = 2) ----
    for l in range(N_LAYERS):
        base = LAYER_R0 + l * LROWS
        wqkv = w_ref[base + WQKV_OFF:base + WQKV_OFF + H, 0:3 * H]
        wo = w_ref[base + WO_OFF:base + WO_OFF + H, 0:H]
        w1 = w_ref[base + W1_OFF:base + W1_OFF + H, 0:I]
        w2 = w_ref[base + W2_OFF:base + W2_OFF + I, 0:H]
        vecs = w_ref[base + LVEC_OFF:base + LVEC_OFF + 8, :]
        bqkv = vecs[0:1, 0:3 * H]
        bo = vecs[1:2, 0:H]
        b1 = vecs[2:3, 0:I]
        b2 = vecs[3:4, 0:H]
        ln1g, ln1b = vecs[4:5, 0:H], vecs[5:6, 0:H]
        ln2g, ln2b = vecs[6:7, 0:H], vecs[7:8, 0:H]

        qkv = jnp.dot(h, wqkv, preferred_element_type=jnp.float32) + bqkv  # [M, 3H]
        q = qkv[:, 0:H]
        kT = qkv[:, H:2 * H].T                 # ONE transpose per layer: [H, M]
        v = qkv[:, 2 * H:3 * H]

        ctx_parts = []
        for hd in range(N_HEADS):
            q_h = q[:, hd * D_HEAD:(hd + 1) * D_HEAD]          # [M, Dh]
            kT_h = kT[hd * D_HEAD:(hd + 1) * D_HEAD, :]        # [Dh, M] (sublane slice)
            v_h = v[:, hd * D_HEAD:(hd + 1) * D_HEAD]          # [M, Dh]
            s = jnp.dot(q_h, kT_h, preferred_element_type=jnp.float32)     # [M, M]
            s = s * scale + bias
            s = s - jnp.max(s, axis=-1, keepdims=True)
            p = jnp.exp(s)
            denom = jnp.sum(p, axis=-1, keepdims=True)                     # [M, 1]
            ctx = jnp.dot(p, v_h, preferred_element_type=jnp.float32)      # [M, Dh]
            # Normalize after P.V (M*Dh lanes, not M*M) on the EUP reciprocal.
            ctx_parts.append(ctx * pl.reciprocal(denom, approx=True))
        ctx_all = jnp.concatenate(ctx_parts, axis=-1)                      # [M, H]

        # Fused output projection: one K=H matmul instead of 4 K=Dh matmuls.
        attn_out = jnp.dot(ctx_all, wo, preferred_element_type=jnp.float32) + bo
        h = _layer_norm(attn_out + h, ln1g, ln1b)

        ff = jnp.dot(h, w1, preferred_element_type=jnp.float32) + b1
        # TODO(synk): HF BERT's default is the exact erf GELU; tanh approximation
        # is used here (tiny systematic numeric difference, safe to lower).
        ff = jax.nn.gelu(ff, approximate=True)
        ff = jnp.dot(ff, w2, preferred_element_type=jnp.float32) + b2
        h = _layer_norm(ff + h, ln2g, ln2b)

    # ---- Pooler (mean over seq incl. padding, as in reference) + Classifier ----
    wp = w_ref[HEAD_R0 + PW_OFF:HEAD_R0 + PW_OFF + H, 0:H]
    wc = w_ref[HEAD_R0 + CW_OFF:HEAD_R0 + CW_OFF + H, 0:N_LANGS]
    hvec = w_ref[HEAD_R0 + HVEC_OFF:HEAD_R0 + HVEC_OFF + 8, :]
    bp = hvec[0:1, 0:H]
    bc = hvec[1:2, 0:N_LANGS]

    pooled = jnp.dot(pool, h, preferred_element_type=jnp.float32)          # [B, H]
    pooled = jnp.tanh(jnp.dot(pooled, wp, preferred_element_type=jnp.float32) + bp)
    logits = jnp.dot(pooled, wc, preferred_element_type=jnp.float32) + bc  # [B, n_langs]
    o_ref[...] = logits.astype(o_ref.dtype)


# --------------------------- parameter creation ---------------------------
def init_params(key):
    keys = iter(jax.random.split(key, 64))

    def w(*shape, scale=0.02):
        return (scale * jax.random.normal(next(keys), shape)).astype(jnp.float32)

    def zeros(*shape):
        return jnp.zeros(shape, jnp.float32)

    def ones(*shape):
        return jnp.ones(shape, jnp.float32)

    L, H, I = N_LAYERS, HIDDEN, INTERMEDIATE
    return {
        "word_emb": w(VOCAB, H),
        "pos_emb": w(MAX_POS, H),
        "type_emb": w(TYPE_VOCAB, H),
        "emb_ln_g": ones(1, H), "emb_ln_b": zeros(1, H),
        "wqkv": w(L, H, 3 * H), "bqkv": zeros(L, 1, 3 * H),
        "wo": w(L, H, H), "bo": zeros(L, 1, H),
        "ln1_g": ones(L, 1, H), "ln1_b": zeros(L, 1, H),
        "w1": w(L, H, I), "b1": zeros(L, 1, I),
        "w2": w(L, I, H), "b2": zeros(L, 1, H),
        "ln2_g": ones(L, 1, H), "ln2_b": zeros(L, 1, H),
        "pooler_w": w(H, H), "pooler_b": zeros(1, H),
        "cls_w": w(H, N_LANGS), "cls_b": zeros(1, N_LANGS),
    }


def pack_weights(p):
    """Flatten every weight into one [W_ROWS, 128] f32 blob (one DMA)."""
    H, I = HIDDEN, INTERMEDIATE
    w = jnp.zeros((W_ROWS, W_LANES), jnp.float32)
    w = w.at[WE_R0:WE_R0 + VOCAB, :H].set(p["word_emb"])        # rows VOCAB..127 stay 0
    w = w.at[EMB_LN_R0, :H].set(p["emb_ln_g"][0])
    w = w.at[EMB_LN_R0 + 1, :H].set(p["emb_ln_b"][0])
    for l in range(N_LAYERS):
        base = LAYER_R0 + l * LROWS
        w = w.at[base + WQKV_OFF:base + WQKV_OFF + H, :3 * H].set(p["wqkv"][l])
        w = w.at[base + WO_OFF:base + WO_OFF + H, :H].set(p["wo"][l])
        w = w.at[base + W1_OFF:base + W1_OFF + H, :I].set(p["w1"][l])
        w = w.at[base + W2_OFF:base + W2_OFF + I, :H].set(p["w2"][l])
        vb = base + LVEC_OFF
        w = w.at[vb + 0, :3 * H].set(p["bqkv"][l][0])
        w = w.at[vb + 1, :H].set(p["bo"][l][0])
        w = w.at[vb + 2, :I].set(p["b1"][l][0])
        w = w.at[vb + 3, :H].set(p["b2"][l][0])
        w = w.at[vb + 4, :H].set(p["ln1_g"][l][0])
        w = w.at[vb + 5, :H].set(p["ln1_b"][l][0])
        w = w.at[vb + 6, :H].set(p["ln2_g"][l][0])
        w = w.at[vb + 7, :H].set(p["ln2_b"][l][0])
    w = w.at[HEAD_R0 + PW_OFF:HEAD_R0 + PW_OFF + H, :H].set(p["pooler_w"])
    w = w.at[HEAD_R0 + CW_OFF:HEAD_R0 + CW_OFF + H, :N_LANGS].set(p["cls_w"])
    hv = HEAD_R0 + HVEC_OFF
    w = w.at[hv + 0, :H].set(p["pooler_b"][0])
    w = w.at[hv + 1, :N_LANGS].set(p["cls_b"][0])
    return w


# ------------------------------ forward pass ------------------------------
def bert_for_lang_id(w_blob, pos_emb, type_emb, input_ids, input_mask, segment_ids):
    B, S = input_ids.shape
    M = B * S

    # position + token-type embeddings pre-summed in the wrapper (plain XLA)
    pe = jnp.tile(pos_emb[:S], (B, 1))                             # [M, H]
    te = jnp.take(type_emb, segment_ids.reshape(M), axis=0)        # [M, H]
    tepe = pe + te

    # Additive attention bias [M, M]: standard BERT (1-mask)*-10000 for padded
    # keys within a batch, -1e9 to block cross-batch attention (exp -> 0), so
    # one block-diagonal attention over all B*S tokens == per-batch attention.
    mask_f = input_mask.astype(jnp.float32)                        # [B, S]
    pad_bias = (1.0 - mask_f) * -10000.0                           # [B, S]
    same = jnp.arange(B)[:, None] == jnp.arange(B)[None, :]        # [B, B]
    bias4 = jnp.where(same[:, None, :, None],
                      pad_bias[None, None, :, :],
                      jnp.float32(NEG_BIG))                        # [B,1,B,S]
    bias = jnp.broadcast_to(bias4, (B, S, B, S)).reshape(M, M)

    # Mean-pooling matrix (cls_only=False): pooled[b] = mean over batch b rows.
    pool_mat = jnp.kron(jnp.eye(B, dtype=jnp.float32),
                        jnp.full((1, S), 1.0 / S, jnp.float32))    # [B, M]

    ids_f = input_ids.reshape(M).astype(jnp.float32)               # exact small ints

    # Pack all per-call activation-side tensors into ONE VMEM block.
    act = jnp.zeros((ACT_ROWS, ACT_LANES), jnp.float32)
    act = act.at[TEPE_R0:TEPE_R0 + M, :].set(tepe)
    act = act.at[BIAS_R0:BIAS_R0 + M, :M].set(bias)
    act = act.at[POOL_R0:POOL_R0 + B, :M].set(pool_mat)
    act = act.at[IDS_R0:IDS_R0 + M, 0].set(ids_f)

    vmem = pl.BlockSpec(memory_space=pltpu.MemorySpace.VMEM)
    scores = pl.pallas_call(
        _bert_langid_kernel,
        out_shape=jax.ShapeDtypeStruct((B, N_LANGS), jnp.float32),
        in_specs=[vmem, vmem],
        out_specs=vmem,
    )(act, w_blob)
    return scores


# ---------------------------------- main -----------------------------------
if __name__ == "__main__":
    key = jax.random.PRNGKey(0)
    pkey, ikey = jax.random.split(key)
    params = init_params(pkey)
    w_blob = pack_weights(params)

    input_ids = jax.random.randint(ikey, (BATCH, SEQ), 0, VOCAB, dtype=jnp.int32)
    input_mask = jnp.concatenate(
        [jnp.ones((BATCH, SEQ - 2), jnp.int32), jnp.zeros((BATCH, 2), jnp.int32)],
        axis=1)
    segment_ids = jnp.zeros((BATCH, SEQ), jnp.int32)

    fwd = jax.jit(functools.partial(
        bert_for_lang_id, w_blob, params["pos_emb"], params["type_emb"]))
    scores = fwd(input_ids, input_mask, segment_ids)
    jax.block_until_ready(scores)
    assert scores.shape == (BATCH, N_LANGS)
    assert bool(jnp.all(jnp.isfinite(scores)))
    print("KERNEL_OK")
</pallas_src>

<mosaic_0001>
module attributes {stable_mosaic.version = 11 : i64} {
  func.func @_bert_langid_kernel(%arg0: memref<56x32xf32, #tpu.memory_space<vmem>>, %arg1: memref<544x128xf32, #tpu.memory_space<vmem>>, %arg2: memref<2x5xf32, #tpu.memory_space<vmem>>) attributes {dimension_semantics = [], scalar_prefetch = 0 : i64, scratch_operands = 0 : i64, tpu.core_type = #tpu.core_type<tc>} {
    %c0 = arith.constant 0 : index
    %c0_0 = arith.constant 0 : index
    %0 = vector.load %arg0[%c0, %c0_0] : memref<56x32xf32, #tpu.memory_space<vmem>>, vector<16x32xf32>
    %c16 = arith.constant 16 : index
    %c0_1 = arith.constant 0 : index
    %1 = vector.load %arg0[%c16, %c0_1] : memref<56x32xf32, #tpu.memory_space<vmem>>, vector<16x16xf32>
    %c32 = arith.constant 32 : index
    %c0_2 = arith.constant 0 : index
    %2 = vector.load %arg0[%c32, %c0_2] : memref<56x32xf32, #tpu.memory_space<vmem>>, vector<2x16xf32>
    %c40 = arith.constant 40 : index
    %c0_3 = arith.constant 0 : index
    %3 = vector.load %arg0[%c40, %c0_3] : memref<56x32xf32, #tpu.memory_space<vmem>>, vector<16x1xf32>
    %c0_4 = arith.constant 0 : index
    %c0_5 = arith.constant 0 : index
    %4 = vector.load %arg1[%c0_4, %c0_5] : memref<544x128xf32, #tpu.memory_space<vmem>>, vector<128x32xf32>
    %5 = tpu.iota {dimensions = array<i32: 1>} : vector<16x128xi32>
    %6 = arith.sitofp %5 : vector<16x128xi32> to vector<16x128xf32>
    %7 = vector.broadcast %3 : vector<16x1xf32> to vector<16x128xf32>
    %8 = arith.cmpf oeq, %6, %7 : vector<16x128xf32>
    %9 = arith.extui %8 : vector<16x128xi1> to vector<16x128xi32>
    %10 = arith.sitofp %9 : vector<16x128xi32> to vector<16x128xf32>
    %cst = arith.constant dense<0.000000e+00> : vector<16x32xf32>
    %11 = tpu.matmul %10, %4, %cst {dimension_numbers = #tpu.dot_dimension_numbers<[1], [0], [0], [1], [0, 0, 1, 1], [], []>} : vector<16x128xf32>, vector<128x32xf32>, vector<16x32xf32> -> vector<16x32xf32>
    %c128 = arith.constant 128 : index
    %c0_6 = arith.constant 0 : index
    %12 = vector.load %arg1[%c128, %c0_6] : memref<544x128xf32, #tpu.memory_space<vmem>>, vector<8x32xf32>
    %13 = arith.addf %11, %0 : vector<16x32xf32>
    %14 = vector.extract_strided_slice %12 {offsets = [0, 0], sizes = [1, 32], strides = [1, 1]} : vector<8x32xf32> to vector<1x32xf32>
    %15 = vector.extract_strided_slice %12 {offsets = [1, 0], sizes = [1, 32], strides = [1, 1]} : vector<8x32xf32> to vector<1x32xf32>
    %cst_7 = arith.constant dense<0.000000e+00> : vector<16xf32>
    %16 = vector.multi_reduction <add>, %13, %cst_7 [1] : vector<16x32xf32> to vector<16xf32>
    %17 = vector.shape_cast %16 : vector<16xf32> to vector<16x1xf32>
    %cst_8 = arith.constant 3.200000e+01 : f32
    %18 = vector.broadcast %cst_8 : f32 to vector<16x1xf32>
    %19 = arith.divf %17, %18 : vector<16x1xf32>
    %20 = vector.broadcast %19 : vector<16x1xf32> to vector<16x32xf32>
    %21 = arith.subf %13, %20 : vector<16x32xf32>
    %22 = arith.mulf %21, %21 : vector<16x32xf32>
    %cst_9 = arith.constant dense<0.000000e+00> : vector<16xf32>
    %23 = vector.multi_reduction <add>, %22, %cst_9 [1] : vector<16x32xf32> to vector<16xf32>
    %24 = vector.shape_cast %23 : vector<16xf32> to vector<16x1xf32>
    %cst_10 = arith.constant 3.200000e+01 : f32
    %25 = vector.broadcast %cst_10 : f32 to vector<16x1xf32>
    %26 = arith.divf %24, %25 : vector<16x1xf32>
    %cst_11 = arith.constant 9.99999996E-13 : f32
    %27 = vector.broadcast %cst_11 : f32 to vector<16x1xf32>
    %28 = arith.addf %26, %27 : vector<16x1xf32>
    %29 = math.rsqrt %28 : vector<16x1xf32>
    %30 = vector.broadcast %29 : vector<16x1xf32> to vector<16x32xf32>
    %31 = arith.mulf %21, %30 : vector<16x32xf32>
    %32 = vector.broadcast %14 : vector<1x32xf32> to vector<16x32xf32>
    %33 = arith.mulf %31, %32 : vector<16x32xf32>
    %34 = vector.broadcast %15 : vector<1x32xf32> to vector<16x32xf32>
    %35 = arith.addf %33, %34 : vector<16x32xf32>
    %c136 = arith.constant 136 : index
    %c0_12 = arith.constant 0 : index
    %36 = vector.load %arg1[%c136, %c0_12] : memref<544x128xf32, #tpu.memory_space<vmem>>, vector<32x96xf32>
    %c168 = arith.constant 168 : index
    %c0_13 = arith.constant 0 : index
    %37 = vector.load %arg1[%c168, %c0_13] : memref<544x128xf32, #tpu.memory_space<vmem>>, vector<32x32xf32>
    %c200 = arith.constant 200 : index
    %c0_14 = arith.constant 0 : index
    %38 = vector.load %arg1[%c200, %c0_14] : memref<544x128xf32, #tpu.memory_space<vmem>>, vector<32x64xf32>
    %c232 = arith.constant 232 : index
    %c0_15 = arith.constant 0 : index
    %39 = vector.load %arg1[%c232, %c0_15] : memref<544x128xf32, #tpu.memory_space<vmem>>, vector<64x32xf32>
    %c296 = arith.constant 296 : index
    %c0_16 = arith.constant 0 : index
    %40 = vector.load %arg1[%c296, %c0_16] : memref<544x128xf32, #tpu.memory_space<vmem>>, vector<8x128xf32>
    %41 = vector.extract_strided_slice %40 {offsets = [0, 0], sizes = [1, 96], strides = [1, 1]} : vector<8x128xf32> to vector<1x96xf32>
    %42 = vector.extract_strided_slice %40 {offsets = [1, 0], sizes = [1, 32], strides = [1, 1]} : vector<8x128xf32> to vector<1x32xf32>
    %43 = vector.extract_strided_slice %40 {offsets = [2, 0], sizes = [1, 64], strides = [1, 1]} : vector<8x128xf32> to vector<1x64xf32>
    %44 = vector.extract_strided_slice %40 {offsets = [3, 0], sizes = [1, 32], strides = [1, 1]} : vector<8x128xf32> to vector<1x32xf32>
    %45 = vector.extract_strided_slice %40 {offsets = [4, 0], sizes = [1, 32], strides = [1, 1]} : vector<8x128xf32> to vector<1x32xf32>
    %46 = vector.extract_strided_slice %40 {offsets = [5, 0], sizes = [1, 32], strides = [1, 1]} : vector<8x128xf32> to vector<1x32xf32>
    %47 = vector.extract_strided_slice %40 {offsets = [6, 0], sizes = [1, 32], strides = [1, 1]} : vector<8x128xf32> to vector<1x32xf32>
    %48 = vector.extract_strided_slice %40 {offsets = [7, 0], sizes = [1, 32], strides = [1, 1]} : vector<8x128xf32> to vector<1x32xf32>
    %cst_17 = arith.constant dense<0.000000e+00> : vector<16x96xf32>
    %49 = tpu.matmul %35, %36, %cst_17 {dimension_numbers = #tpu.dot_dimension_numbers<[1], [0], [0], [1], [0, 0, 1, 1], [], []>} : vector<16x32xf32>, vector<32x96xf32>, vector<16x96xf32> -> vector<16x96xf32>
    %50 = vector.broadcast %41 : vector<1x96xf32> to vector<16x96xf32>
    %51 = arith.addf %49, %50 : vector<16x96xf32>
    %52 = vector.extract_strided_slice %51 {offsets = [0, 0], sizes = [16, 32], strides = [1, 1]} : vector<16x96xf32> to vector<16x32xf32>
    %53 = vector.extract_strided_slice %51 {offsets = [0, 32], sizes = [16, 32], strides = [1, 1]} : vector<16x96xf32> to vector<16x32xf32>
    %54 = tpu.transpose %53, [1, 0] : vector<16x32xf32> -> vector<32x16xf32>
    %55 = vector.extract_strided_slice %51 {offsets = [0, 64], sizes = [16, 32], strides = [1, 1]} : vector<16x96xf32> to vector<16x32xf32>
    %56 = vector.extract_strided_slice %52 {offsets = [0, 0], sizes = [16, 8], strides = [1, 1]} : vector<16x32xf32> to vector<16x8xf32>
    %57 = vector.extract_strided_slice %54 {offsets = [0, 0], sizes = [8, 16], strides = [1, 1]} : vector<32x16xf32> to vector<8x16xf32>
    %58 = vector.extract_strided_slice %55 {offsets = [0, 0], sizes = [16, 8], strides = [1, 1]} : vector<16x32xf32> to vector<16x8xf32>
    %cst_18 = arith.constant dense<0.000000e+00> : vector<16x16xf32>
    %59 = tpu.matmul %56, %57, %cst_18 {dimension_numbers = #tpu.dot_dimension_numbers<[1], [0], [0], [1], [0, 0, 1, 1], [], []>} : vector<16x8xf32>, vector<8x16xf32>, vector<16x16xf32> -> vector<16x16xf32>
    %cst_19 = arith.constant 0.353553385 : f32
    %60 = vector.broadcast %cst_19 : f32 to vector<16x16xf32>
    %61 = arith.mulf %59, %60 : vector<16x16xf32>
    %62 = arith.addf %61, %1 : vector<16x16xf32>
    %cst_20 = arith.constant dense<0xFF800000> : vector<16xf32>
    %63 = vector.multi_reduction <maximumf>, %62, %cst_20 [1] : vector<16x16xf32> to vector<16xf32>
    %64 = vector.shape_cast %63 : vector<16xf32> to vector<16x1xf32>
    %65 = vector.broadcast %64 : vector<16x1xf32> to vector<16x16xf32>
    %66 = arith.subf %62, %65 : vector<16x16xf32>
    %67 = math.exp %66 : vector<16x16xf32>
    %cst_21 = arith.constant dense<0.000000e+00> : vector<16xf32>
    %68 = vector.multi_reduction <add>, %67, %cst_21 [1] : vector<16x16xf32> to vector<16xf32>
    %69 = vector.shape_cast %68 : vector<16xf32> to vector<16x1xf32>
    %cst_22 = arith.constant dense<0.000000e+00> : vector<16x8xf32>
    %70 = tpu.matmul %67, %58, %cst_22 {dimension_numbers = #tpu.dot_dimension_numbers<[1], [0], [0], [1], [0, 0, 1, 1], [], []>} : vector<16x16xf32>, vector<16x8xf32>, vector<16x8xf32> -> vector<16x8xf32>
    %71 = tpu.reciprocal %69 {approx = true} : vector<16x1xf32> -> vector<16x1xf32>
    %72 = vector.broadcast %71 : vector<16x1xf32> to vector<16x8xf32>
    %73 = arith.mulf %70, %72 : vector<16x8xf32>
    %74 = vector.extract_strided_slice %52 {offsets = [0, 8], sizes = [16, 8], strides = [1, 1]} : vector<16x32xf32> to vector<16x8xf32>
    %75 = vector.extract_strided_slice %54 {offsets = [8, 0], sizes = [8, 16], strides = [1, 1]} : vector<32x16xf32> to vector<8x16xf32>
    %76 = vector.extract_strided_slice %55 {offsets = [0, 8], sizes = [16, 8], strides = [1, 1]} : vector<16x32xf32> to vector<16x8xf32>
    %cst_23 = arith.constant dense<0.000000e+00> : vector<16x16xf32>
    %77 = tpu.matmul %74, %75, %cst_23 {dimension_numbers = #tpu.dot_dimension_numbers<[1], [0], [0], [1], [0, 0, 1, 1], [], []>} : vector<16x8xf32>, vector<8x16xf32>, vector<16x16xf32> -> vector<16x16xf32>
    %cst_24 = arith.constant 0.353553385 : f32
    %78 = vector.broadcast %cst_24 : f32 to vector<16x16xf32>
    %79 = arith.mulf %77, %78 : vector<16x16xf32>
    %80 = arith.addf %79, %1 : vector<16x16xf32>
    %cst_25 = arith.constant dense<0xFF800000> : vector<16xf32>
    %81 = vector.multi_reduction <maximumf>, %80, %cst_25 [1] : vector<16x16xf32> to vector<16xf32>
    %82 = vector.shape_cast %81 : vector<16xf32> to vector<16x1xf32>
    %83 = vector.broadcast %82 : vector<16x1xf32> to vector<16x16xf32>
    %84 = arith.subf %80, %83 : vector<16x16xf32>
    %85 = math.exp %84 : vector<16x16xf32>
    %cst_26 = arith.constant dense<0.000000e+00> : vector<16xf32>
    %86 = vector.multi_reduction <add>, %85, %cst_26 [1] : vector<16x16xf32> to vector<16xf32>
    %87 = vector.shape_cast %86 : vector<16xf32> to vector<16x1xf32>
    %cst_27 = arith.constant dense<0.000000e+00> : vector<16x8xf32>
    %88 = tpu.matmul %85, %76, %cst_27 {dimension_numbers = #tpu.dot_dimension_numbers<[1], [0], [0], [1], [0, 0, 1, 1], [], []>} : vector<16x16xf32>, vector<16x8xf32>, vector<16x8xf32> -> vector<16x8xf32>
    %89 = tpu.reciprocal %87 {approx = true} : vector<16x1xf32> -> vector<16x1xf32>
    %90 = vector.broadcast %89 : vector<16x1xf32> to vector<16x8xf32>
    %91 = arith.mulf %88, %90 : vector<16x8xf32>
    %92 = vector.extract_strided_slice %52 {offsets = [0, 16], sizes = [16, 8], strides = [1, 1]} : vector<16x32xf32> to vector<16x8xf32>
    %93 = vector.extract_strided_slice %54 {offsets = [16, 0], sizes = [8, 16], strides = [1, 1]} : vector<32x16xf32> to vector<8x16xf32>
    %94 = vector.extract_strided_slice %55 {offsets = [0, 16], sizes = [16, 8], strides = [1, 1]} : vector<16x32xf32> to vector<16x8xf32>
    %cst_28 = arith.constant dense<0.000000e+00> : vector<16x16xf32>
    %95 = tpu.matmul %92, %93, %cst_28 {dimension_numbers = #tpu.dot_dimension_numbers<[1], [0], [0], [1], [0, 0, 1, 1], [], []>} : vector<16x8xf32>, vector<8x16xf32>, vector<16x16xf32> -> vector<16x16xf32>
    %cst_29 = arith.constant 0.353553385 : f32
    %96 = vector.broadcast %cst_29 : f32 to vector<16x16xf32>
    %97 = arith.mulf %95, %96 : vector<16x16xf32>
    %98 = arith.addf %97, %1 : vector<16x16xf32>
    %cst_30 = arith.constant dense<0xFF800000> : vector<16xf32>
    %99 = vector.multi_reduction <maximumf>, %98, %cst_30 [1] : vector<16x16xf32> to vector<16xf32>
    %100 = vector.shape_cast %99 : vector<16xf32> to vector<16x1xf32>
    %101 = vector.broadcast %100 : vector<16x1xf32> to vector<16x16xf32>
    %102 = arith.subf %98, %101 : vector<16x16xf32>
    %103 = math.exp %102 : vector<16x16xf32>
    %cst_31 = arith.constant dense<0.000000e+00> : vector<16xf32>
    %104 = vector.multi_reduction <add>, %103, %cst_31 [1] : vector<16x16xf32> to vector<16xf32>
    %105 = vector.shape_cast %104 : vector<16xf32> to vector<16x1xf32>
    %cst_32 = arith.constant dense<0.000000e+00> : vector<16x8xf32>
    %106 = tpu.matmul %103, %94, %cst_32 {dimension_numbers = #tpu.dot_dimension_numbers<[1], [0], [0], [1], [0, 0, 1, 1], [], []>} : vector<16x16xf32>, vector<16x8xf32>, vector<16x8xf32> -> vector<16x8xf32>
    %107 = tpu.reciprocal %105 {approx = true} : vector<16x1xf32> -> vector<16x1xf32>
    %108 = vector.broadcast %107 : vector<16x1xf32> to vector<16x8xf32>
    %109 = arith.mulf %106, %108 : vector<16x8xf32>
    %110 = vector.extract_strided_slice %52 {offsets = [0, 24], sizes = [16, 8], strides = [1, 1]} : vector<16x32xf32> to vector<16x8xf32>
    %111 = vector.extract_strided_slice %54 {offsets = [24, 0], sizes = [8, 16], strides = [1, 1]} : vector<32x16xf32> to vector<8x16xf32>
    %112 = vector.extract_strided_slice %55 {offsets = [0, 24], sizes = [16, 8], strides = [1, 1]} : vector<16x32xf32> to vector<16x8xf32>
    %cst_33 = arith.constant dense<0.000000e+00> : vector<16x16xf32>
    %113 = tpu.matmul %110, %111, %cst_33 {dimension_numbers = #tpu.dot_dimension_numbers<[1], [0], [0], [1], [0, 0, 1, 1], [], []>} : vector<16x8xf32>, vector<8x16xf32>, vector<16x16xf32> -> vector<16x16xf32>
    %cst_34 = arith.constant 0.353553385 : f32
    %114 = vector.broadcast %cst_34 : f32 to vector<16x16xf32>
    %115 = arith.mulf %113, %114 : vector<16x16xf32>
    %116 = arith.addf %115, %1 : vector<16x16xf32>
    %cst_35 = arith.constant dense<0xFF800000> : vector<16xf32>
    %117 = vector.multi_reduction <maximumf>, %116, %cst_35 [1] : vector<16x16xf32> to vector<16xf32>
    %118 = vector.shape_cast %117 : vector<16xf32> to vector<16x1xf32>
    %119 = vector.broadcast %118 : vector<16x1xf32> to vector<16x16xf32>
    %120 = arith.subf %116, %119 : vector<16x16xf32>
    %121 = math.exp %120 : vector<16x16xf32>
    %cst_36 = arith.constant dense<0.000000e+00> : vector<16xf32>
    %122 = vector.multi_reduction <add>, %121, %cst_36 [1] : vector<16x16xf32> to vector<16xf32>
    %123 = vector.shape_cast %122 : vector<16xf32> to vector<16x1xf32>
    %cst_37 = arith.constant dense<0.000000e+00> : vector<16x8xf32>
    %124 = tpu.matmul %121, %112, %cst_37 {dimension_numbers = #tpu.dot_dimension_numbers<[1], [0], [0], [1], [0, 0, 1, 1], [], []>} : vector<16x16xf32>, vector<16x8xf32>, vector<16x8xf32> -> vector<16x8xf32>
    %125 = tpu.reciprocal %123 {approx = true} : vector<16x1xf32> -> vector<16x1xf32>
    %126 = vector.broadcast %125 : vector<16x1xf32> to vector<16x8xf32>
    %127 = arith.mulf %124, %126 : vector<16x8xf32>
    %128 = tpu.concatenate %73, %91, %109, %127 in 1 : vector<16x8xf32>, vector<16x8xf32>, vector<16x8xf32>, vector<16x8xf32> -> vector<16x32xf32>
    %cst_38 = arith.constant dense<0.000000e+00> : vector<16x32xf32>
    %129 = tpu.matmul %128, %37, %cst_38 {dimension_numbers = #tpu.dot_dimension_numbers<[1], [0], [0], [1], [0, 0, 1, 1], [], []>} : vector<16x32xf32>, vector<32x32xf32>, vector<16x32xf32> -> vector<16x32xf32>
    %130 = vector.broadcast %42 : vector<1x32xf32> to vector<16x32xf32>
    %131 = arith.addf %129, %130 : vector<16x32xf32>
    %132 = arith.addf %131, %35 : vector<16x32xf32>
    %cst_39 = arith.constant dense<0.000000e+00> : vector<16xf32>
    %133 = vector.multi_reduction <add>, %132, %cst_39 [1] : vector<16x32xf32> to vector<16xf32>
    %134 = vector.shape_cast %133 : vector<16xf32> to vector<16x1xf32>
    %cst_40 = arith.constant 3.200000e+01 : f32
    %135 = vector.broadcast %cst_40 : f32 to vector<16x1xf32>
    %136 = arith.divf %134, %135 : vector<16x1xf32>
    %137 = vector.broadcast %136 : vector<16x1xf32> to vector<16x32xf32>
    %138 = arith.subf %132, %137 : vector<16x32xf32>
    %139 = arith.mulf %138, %138 : vector<16x32xf32>
    %cst_41 = arith.constant dense<0.000000e+00> : vector<16xf32>
    %140 = vector.multi_reduction <add>, %139, %cst_41 [1] : vector<16x32xf32> to vector<16xf32>
    %141 = vector.shape_cast %140 : vector<16xf32> to vector<16x1xf32>
    %cst_42 = arith.constant 3.200000e+01 : f32
    %142 = vector.broadcast %cst_42 : f32 to vector<16x1xf32>
    %143 = arith.divf %141, %142 : vector<16x1xf32>
    %cst_43 = arith.constant 9.99999996E-13 : f32
    %144 = vector.broadcast %cst_43 : f32 to vector<16x1xf32>
    %145 = arith.addf %143, %144 : vector<16x1xf32>
    %146 = math.rsqrt %145 : vector<16x1xf32>
    %147 = vector.broadcast %146 : vector<16x1xf32> to vector<16x32xf32>
    %148 = arith.mulf %138, %147 : vector<16x32xf32>
    %149 = vector.broadcast %45 : vector<1x32xf32> to vector<16x32xf32>
    %150 = arith.mulf %148, %149 : vector<16x32xf32>
    %151 = vector.broadcast %46 : vector<1x32xf32> to vector<16x32xf32>
    %152 = arith.addf %150, %151 : vector<16x32xf32>
    %cst_44 = arith.constant dense<0.000000e+00> : vector<16x64xf32>
    %153 = tpu.matmul %152, %38, %cst_44 {dimension_numbers = #tpu.dot_dimension_numbers<[1], [0], [0], [1], [0, 0, 1, 1], [], []>} : vector<16x32xf32>, vector<32x64xf32>, vector<16x64xf32> -> vector<16x64xf32>
    %154 = vector.broadcast %43 : vector<1x64xf32> to vector<16x64xf32>
    %155 = arith.addf %153, %154 : vector<16x64xf32>
    %156 = arith.mulf %155, %155 : vector<16x64xf32>
    %157 = arith.mulf %155, %156 : vector<16x64xf32>
    %cst_45 = arith.constant 4.471500e-02 : f32
    %158 = vector.broadcast %cst_45 : f32 to vector<16x64xf32>
    %159 = arith.mulf %158, %157 : vector<16x64xf32>
    %160 = arith.addf %155, %159 : vector<16x64xf32>
    %cst_46 = arith.constant 0.797884583 : f32
    %161 = vector.broadcast %cst_46 : f32 to vector<16x64xf32>
    %162 = arith.mulf %161, %160 : vector<16x64xf32>
    %163 = math.tanh %162 : vector<16x64xf32>
    %cst_47 = arith.constant 1.000000e+00 : f32
    %164 = vector.broadcast %cst_47 : f32 to vector<16x64xf32>
    %165 = arith.addf %164, %163 : vector<16x64xf32>
    %cst_48 = arith.constant 5.000000e-01 : f32
    %166 = vector.broadcast %cst_48 : f32 to vector<16x64xf32>
    %167 = arith.mulf %166, %165 : vector<16x64xf32>
    %168 = arith.mulf %155, %167 : vector<16x64xf32>
    %cst_49 = arith.constant dense<0.000000e+00> : vector<16x32xf32>
    %169 = tpu.matmul %168, %39, %cst_49 {dimension_numbers = #tpu.dot_dimension_numbers<[1], [0], [0], [1], [0, 0, 1, 1], [], []>} : vector<16x64xf32>, vector<64x32xf32>, vector<16x32xf32> -> vector<16x32xf32>
    %170 = vector.broadcast %44 : vector<1x32xf32> to vector<16x32xf32>
    %171 = arith.addf %169, %170 : vector<16x32xf32>
    %172 = arith.addf %171, %152 : vector<16x32xf32>
    %cst_50 = arith.constant dense<0.000000e+00> : vector<16xf32>
    %173 = vector.multi_reduction <add>, %172, %cst_50 [1] : vector<16x32xf32> to vector<16xf32>
    %174 = vector.shape_cast %173 : vector<16xf32> to vector<16x1xf32>
    %cst_51 = arith.constant 3.200000e+01 : f32
    %175 = vector.broadcast %cst_51 : f32 to vector<16x1xf32>
    %176 = arith.divf %174, %175 : vector<16x1xf32>
    %177 = vector.broadcast %176 : vector<16x1xf32> to vector<16x32xf32>
    %178 = arith.subf %172, %177 : vector<16x32xf32>
    %179 = arith.mulf %178, %178 : vector<16x32xf32>
    %cst_52 = arith.constant dense<0.000000e+00> : vector<16xf32>
    %180 = vector.multi_reduction <add>, %179, %cst_52 [1] : vector<16x32xf32> to vector<16xf32>
    %181 = vector.shape_cast %180 : vector<16xf32> to vector<16x1xf32>
    %cst_53 = arith.constant 3.200000e+01 : f32
    %182 = vector.broadcast %cst_53 : f32 to vector<16x1xf32>
    %183 = arith.divf %181, %182 : vector<16x1xf32>
    %cst_54 = arith.constant 9.99999996E-13 : f32
    %184 = vector.broadcast %cst_54 : f32 to vector<16x1xf32>
    %185 = arith.addf %183, %184 : vector<16x1xf32>
    %186 = math.rsqrt %185 : vector<16x1xf32>
    %187 = vector.broadcast %186 : vector<16x1xf32> to vector<16x32xf32>
    %188 = arith.mulf %178, %187 : vector<16x32xf32>
    %189 = vector.broadcast %47 : vector<1x32xf32> to vector<16x32xf32>
    %190 = arith.mulf %188, %189 : vector<16x32xf32>
    %191 = vector.broadcast %48 : vector<1x32xf32> to vector<16x32xf32>
    %192 = arith.addf %190, %191 : vector<16x32xf32>
    %c304 = arith.constant 304 : index
    %c0_55 = arith.constant 0 : index
    %193 = vector.load %arg1[%c304, %c0_55] : memref<544x128xf32, #tpu.memory_space<vmem>>, vector<32x96xf32>
    %c336 = arith.constant 336 : index
    %c0_56 = arith.constant 0 : index
    %194 = vector.load %arg1[%c336, %c0_56] : memref<544x128xf32, #tpu.memory_space<vmem>>, vector<32x32xf32>
    %c368 = arith.constant 368 : index
    %c0_57 = arith.constant 0 : index
    %195 = vector.load %arg1[%c368, %c0_57] : memref<544x128xf32, #tpu.memory_space<vmem>>, vector<32x64xf32>
    %c400 = arith.constant 400 : index
    %c0_58 = arith.constant 0 : index
    %196 = vector.load %arg1[%c400, %c0_58] : memref<544x128xf32, #tpu.memory_space<vmem>>, vector<64x32xf32>
    %c464 = arith.constant 464 : index
    %c0_59 = arith.constant 0 : index
    %197 = vector.load %arg1[%c464, %c0_59] : memref<544x128xf32, #tpu.memory_space<vmem>>, vector<8x128xf32>
    %198 = vector.extract_strided_slice %197 {offsets = [0, 0], sizes = [1, 96], strides = [1, 1]} : vector<8x128xf32> to vector<1x96xf32>
    %199 = vector.extract_strided_slice %197 {offsets = [1, 0], sizes = [1, 32], strides = [1, 1]} : vector<8x128xf32> to vector<1x32xf32>
    %200 = vector.extract_strided_slice %197 {offsets = [2, 0], sizes = [1, 64], strides = [1, 1]} : vector<8x128xf32> to vector<1x64xf32>
    %201 = vector.extract_strided_slice %197 {offsets = [3, 0], sizes = [1, 32], strides = [1, 1]} : vector<8x128xf32> to vector<1x32xf32>
    %202 = vector.extract_strided_slice %197 {offsets = [4, 0], sizes = [1, 32], strides = [1, 1]} : vector<8x128xf32> to vector<1x32xf32>
    %203 = vector.extract_strided_slice %197 {offsets = [5, 0], sizes = [1, 32], strides = [1, 1]} : vector<8x128xf32> to vector<1x32xf32>
    %204 = vector.extract_strided_slice %197 {offsets = [6, 0], sizes = [1, 32], strides = [1, 1]} : vector<8x128xf32> to vector<1x32xf32>
    %205 = vector.extract_strided_slice %197 {offsets = [7, 0], sizes = [1, 32], strides = [1, 1]} : vector<8x128xf32> to vector<1x32xf32>
    %cst_60 = arith.constant dense<0.000000e+00> : vector<16x96xf32>
    %206 = tpu.matmul %192, %193, %cst_60 {dimension_numbers = #tpu.dot_dimension_numbers<[1], [0], [0], [1], [0, 0, 1, 1], [], []>} : vector<16x32xf32>, vector<32x96xf32>, vector<16x96xf32> -> vector<16x96xf32>
    %207 = vector.broadcast %198 : vector<1x96xf32> to vector<16x96xf32>
    %208 = arith.addf %206, %207 : vector<16x96xf32>
    %209 = vector.extract_strided_slice %208 {offsets = [0, 0], sizes = [16, 32], strides = [1, 1]} : vector<16x96xf32> to vector<16x32xf32>
    %210 = vector.extract_strided_slice %208 {offsets = [0, 32], sizes = [16, 32], strides = [1, 1]} : vector<16x96xf32> to vector<16x32xf32>
    %211 = tpu.transpose %210, [1, 0] : vector<16x32xf32> -> vector<32x16xf32>
    %212 = vector.extract_strided_slice %208 {offsets = [0, 64], sizes = [16, 32], strides = [1, 1]} : vector<16x96xf32> to vector<16x32xf32>
    %213 = vector.extract_strided_slice %209 {offsets = [0, 0], sizes = [16, 8], strides = [1, 1]} : vector<16x32xf32> to vector<16x8xf32>
    %214 = vector.extract_strided_slice %211 {offsets = [0, 0], sizes = [8, 16], strides = [1, 1]} : vector<32x16xf32> to vector<8x16xf32>
    %215 = vector.extract_strided_slice %212 {offsets = [0, 0], sizes = [16, 8], strides = [1, 1]} : vector<16x32xf32> to vector<16x8xf32>
    %cst_61 = arith.constant dense<0.000000e+00> : vector<16x16xf32>
    %216 = tpu.matmul %213, %214, %cst_61 {dimension_numbers = #tpu.dot_dimension_numbers<[1], [0], [0], [1], [0, 0, 1, 1], [], []>} : vector<16x8xf32>, vector<8x16xf32>, vector<16x16xf32> -> vector<16x16xf32>
    %cst_62 = arith.constant 0.353553385 : f32
    %217 = vector.broadcast %cst_62 : f32 to vector<16x16xf32>
    %218 = arith.mulf %216, %217 : vector<16x16xf32>
    %219 = arith.addf %218, %1 : vector<16x16xf32>
    %cst_63 = arith.constant dense<0xFF800000> : vector<16xf32>
    %220 = vector.multi_reduction <maximumf>, %219, %cst_63 [1] : vector<16x16xf32> to vector<16xf32>
    %221 = vector.shape_cast %220 : vector<16xf32> to vector<16x1xf32>
    %222 = vector.broadcast %221 : vector<16x1xf32> to vector<16x16xf32>
    %223 = arith.subf %219, %222 : vector<16x16xf32>
    %224 = math.exp %223 : vector<16x16xf32>
    %cst_64 = arith.constant dense<0.000000e+00> : vector<16xf32>
    %225 = vector.multi_reduction <add>, %224, %cst_64 [1] : vector<16x16xf32> to vector<16xf32>
    %226 = vector.shape_cast %225 : vector<16xf32> to vector<16x1xf32>
    %cst_65 = arith.constant dense<0.000000e+00> : vector<16x8xf32>
    %227 = tpu.matmul %224, %215, %cst_65 {dimension_numbers = #tpu.dot_dimension_numbers<[1], [0], [0], [1], [0, 0, 1, 1], [], []>} : vector<16x16xf32>, vector<16x8xf32>, vector<16x8xf32> -> vector<16x8xf32>
    %228 = tpu.reciprocal %226 {approx = true} : vector<16x1xf32> -> vector<16x1xf32>
    %229 = vector.broadcast %228 : vector<16x1xf32> to vector<16x8xf32>
    %230 = arith.mulf %227, %229 : vector<16x8xf32>
    %231 = vector.extract_strided_slice %209 {offsets = [0, 8], sizes = [16, 8], strides = [1, 1]} : vector<16x32xf32> to vector<16x8xf32>
    %232 = vector.extract_strided_slice %211 {offsets = [8, 0], sizes = [8, 16], strides = [1, 1]} : vector<32x16xf32> to vector<8x16xf32>
    %233 = vector.extract_strided_slice %212 {offsets = [0, 8], sizes = [16, 8], strides = [1, 1]} : vector<16x32xf32> to vector<16x8xf32>
    %cst_66 = arith.constant dense<0.000000e+00> : vector<16x16xf32>
    %234 = tpu.matmul %231, %232, %cst_66 {dimension_numbers = #tpu.dot_dimension_numbers<[1], [0], [0], [1], [0, 0, 1, 1], [], []>} : vector<16x8xf32>, vector<8x16xf32>, vector<16x16xf32> -> vector<16x16xf32>
    %cst_67 = arith.constant 0.353553385 : f32
    %235 = vector.broadcast %cst_67 : f32 to vector<16x16xf32>
    %236 = arith.mulf %234, %235 : vector<16x16xf32>
    %237 = arith.addf %236, %1 : vector<16x16xf32>
    %cst_68 = arith.constant dense<0xFF800000> : vector<16xf32>
    %238 = vector.multi_reduction <maximumf>, %237, %cst_68 [1] : vector<16x16xf32> to vector<16xf32>
    %239 = vector.shape_cast %238 : vector<16xf32> to vector<16x1xf32>
    %240 = vector.broadcast %239 : vector<16x1xf32> to vector<16x16xf32>
    %241 = arith.subf %237, %240 : vector<16x16xf32>
    %242 = math.exp %241 : vector<16x16xf32>
    %cst_69 = arith.constant dense<0.000000e+00> : vector<16xf32>
    %243 = vector.multi_reduction <add>, %242, %cst_69 [1] : vector<16x16xf32> to vector<16xf32>
    %244 = vector.shape_cast %243 : vector<16xf32> to vector<16x1xf32>
    %cst_70 = arith.constant dense<0.000000e+00> : vector<16x8xf32>
    %245 = tpu.matmul %242, %233, %cst_70 {dimension_numbers = #tpu.dot_dimension_numbers<[1], [0], [0], [1], [0, 0, 1, 1], [], []>} : vector<16x16xf32>, vector<16x8xf32>, vector<16x8xf32> -> vector<16x8xf32>
    %246 = tpu.reciprocal %244 {approx = true} : vector<16x1xf32> -> vector<16x1xf32>
    %247 = vector.broadcast %246 : vector<16x1xf32> to vector<16x8xf32>
    %248 = arith.mulf %245, %247 : vector<16x8xf32>
    %249 = vector.extract_strided_slice %209 {offsets = [0, 16], sizes = [16, 8], strides = [1, 1]} : vector<16x32xf32> to vector<16x8xf32>
    %250 = vector.extract_strided_slice %211 {offsets = [16, 0], sizes = [8, 16], strides = [1, 1]} : vector<32x16xf32> to vector<8x16xf32>
    %251 = vector.extract_strided_slice %212 {offsets = [0, 16], sizes = [16, 8], strides = [1, 1]} : vector<16x32xf32> to vector<16x8xf32>
    %cst_71 = arith.constant dense<0.000000e+00> : vector<16x16xf32>
    %252 = tpu.matmul %249, %250, %cst_71 {dimension_numbers = #tpu.dot_dimension_numbers<[1], [0], [0], [1], [0, 0, 1, 1], [], []>} : vector<16x8xf32>, vector<8x16xf32>, vector<16x16xf32> -> vector<16x16xf32>
    %cst_72 = arith.constant 0.353553385 : f32
    %253 = vector.broadcast %cst_72 : f32 to vector<16x16xf32>
    %254 = arith.mulf %252, %253 : vector<16x16xf32>
    %255 = arith.addf %254, %1 : vector<16x16xf32>
    %cst_73 = arith.constant dense<0xFF800000> : vector<16xf32>
    %256 = vector.multi_reduction <maximumf>, %255, %cst_73 [1] : vector<16x16xf32> to vector<16xf32>
    %257 = vector.shape_cast %256 : vector<16xf32> to vector<16x1xf32>
    %258 = vector.broadcast %257 : vector<16x1xf32> to vector<16x16xf32>
    %259 = arith.subf %255, %258 : vector<16x16xf32>
    %260 = math.exp %259 : vector<16x16xf32>
    %cst_74 = arith.constant dense<0.000000e+00> : vector<16xf32>
    %261 = vector.multi_reduction <add>, %260, %cst_74 [1] : vector<16x16xf32> to vector<16xf32>
    %262 = vector.shape_cast %261 : vector<16xf32> to vector<16x1xf32>
    %cst_75 = arith.constant dense<0.000000e+00> : vector<16x8xf32>
    %263 = tpu.matmul %260, %251, %cst_75 {dimension_numbers = #tpu.dot_dimension_numbers<[1], [0], [0], [1], [0, 0, 1, 1], [], []>} : vector<16x16xf32>, vector<16x8xf32>, vector<16x8xf32> -> vector<16x8xf32>
    %264 = tpu.reciprocal %262 {approx = true} : vector<16x1xf32> -> vector<16x1xf32>
    %265 = vector.broadcast %264 : vector<16x1xf32> to vector<16x8xf32>
    %266 = arith.mulf %263, %265 : vector<16x8xf32>
    %267 = vector.extract_strided_slice %209 {offsets = [0, 24], sizes = [16, 8], strides = [1, 1]} : vector<16x32xf32> to vector<16x8xf32>
    %268 = vector.extract_strided_slice %211 {offsets = [24, 0], sizes = [8, 16], strides = [1, 1]} : vector<32x16xf32> to vector<8x16xf32>
    %269 = vector.extract_strided_slice %212 {offsets = [0, 24], sizes = [16, 8], strides = [1, 1]} : vector<16x32xf32> to vector<16x8xf32>
    %cst_76 = arith.constant dense<0.000000e+00> : vector<16x16xf32>
    %270 = tpu.matmul %267, %268, %cst_76 {dimension_numbers = #tpu.dot_dimension_numbers<[1], [0], [0], [1], [0, 0, 1, 1], [], []>} : vector<16x8xf32>, vector<8x16xf32>, vector<16x16xf32> -> vector<16x16xf32>
    %cst_77 = arith.constant 0.353553385 : f32
    %271 = vector.broadcast %cst_77 : f32 to vector<16x16xf32>
    %272 = arith.mulf %270, %271 : vector<16x16xf32>
    %273 = arith.addf %272, %1 : vector<16x16xf32>
    %cst_78 = arith.constant dense<0xFF800000> : vector<16xf32>
    %274 = vector.multi_reduction <maximumf>, %273, %cst_78 [1] : vector<16x16xf32> to vector<16xf32>
    %275 = vector.shape_cast %274 : vector<16xf32> to vector<16x1xf32>
    %276 = vector.broadcast %275 : vector<16x1xf32> to vector<16x16xf32>
    %277 = arith.subf %273, %276 : vector<16x16xf32>
    %278 = math.exp %277 : vector<16x16xf32>
    %cst_79 = arith.constant dense<0.000000e+00> : vector<16xf32>
    %279 = vector.multi_reduction <add>, %278, %cst_79 [1] : vector<16x16xf32> to vector<16xf32>
    %280 = vector.shape_cast %279 : vector<16xf32> to vector<16x1xf32>
    %cst_80 = arith.constant dense<0.000000e+00> : vector<16x8xf32>
    %281 = tpu.matmul %278, %269, %cst_80 {dimension_numbers = #tpu.dot_dimension_numbers<[1], [0], [0], [1], [0, 0, 1, 1], [], []>} : vector<16x16xf32>, vector<16x8xf32>, vector<16x8xf32> -> vector<16x8xf32>
    %282 = tpu.reciprocal %280 {approx = true} : vector<16x1xf32> -> vector<16x1xf32>
    %283 = vector.broadcast %282 : vector<16x1xf32> to vector<16x8xf32>
    %284 = arith.mulf %281, %283 : vector<16x8xf32>
    %285 = tpu.concatenate %230, %248, %266, %284 in 1 : vector<16x8xf32>, vector<16x8xf32>, vector<16x8xf32>, vector<16x8xf32> -> vector<16x32xf32>
    %cst_81 = arith.constant dense<0.000000e+00> : vector<16x32xf32>
    %286 = tpu.matmul %285, %194, %cst_81 {dimension_numbers = #tpu.dot_dimension_numbers<[1], [0], [0], [1], [0, 0, 1, 1], [], []>} : vector<16x32xf32>, vector<32x32xf32>, vector<16x32xf32> -> vector<16x32xf32>
    %287 = vector.broadcast %199 : vector<1x32xf32> to vector<16x32xf32>
    %288 = arith.addf %286, %287 : vector<16x32xf32>
    %289 = arith.addf %288, %192 : vector<16x32xf32>
    %cst_82 = arith.constant dense<0.000000e+00> : vector<16xf32>
    %290 = vector.multi_reduction <add>, %289, %cst_82 [1] : vector<16x32xf32> to vector<16xf32>
    %291 = vector.shape_cast %290 : vector<16xf32> to vector<16x1xf32>
    %cst_83 = arith.constant 3.200000e+01 : f32
    %292 = vector.broadcast %cst_83 : f32 to vector<16x1xf32>
    %293 = arith.divf %291, %292 : vector<16x1xf32>
    %294 = vector.broadcast %293 : vector<16x1xf32> to vector<16x32xf32>
    %295 = arith.subf %289, %294 : vector<16x32xf32>
    %296 = arith.mulf %295, %295 : vector<16x32xf32>
    %cst_84 = arith.constant dense<0.000000e+00> : vector<16xf32>
    %297 = vector.multi_reduction <add>, %296, %cst_84 [1] : vector<16x32xf32> to vector<16xf32>
    %298 = vector.shape_cast %297 : vector<16xf32> to vector<16x1xf32>
    %cst_85 = arith.constant 3.200000e+01 : f32
    %299 = vector.broadcast %cst_85 : f32 to vector<16x1xf32>
    %300 = arith.divf %298, %299 : vector<16x1xf32>
    %cst_86 = arith.constant 9.99999996E-13 : f32
    %301 = vector.broadcast %cst_86 : f32 to vector<16x1xf32>
    %302 = arith.addf %300, %301 : vector<16x1xf32>
    %303 = math.rsqrt %302 : vector<16x1xf32>
    %304 = vector.broadcast %303 : vector<16x1xf32> to vector<16x32xf32>
    %305 = arith.mulf %295, %304 : vector<16x32xf32>
    %306 = vector.broadcast %202 : vector<1x32xf32> to vector<16x32xf32>
    %307 = arith.mulf %305, %306 : vector<16x32xf32>
    %308 = vector.broadcast %203 : vector<1x32xf32> to vector<16x32xf32>
    %309 = arith.addf %307, %308 : vector<16x32xf32>
    %cst_87 = arith.constant dense<0.000000e+00> : vector<16x64xf32>
    %310 = tpu.matmul %309, %195, %cst_87 {dimension_numbers = #tpu.dot_dimension_numbers<[1], [0], [0], [1], [0, 0, 1, 1], [], []>} : vector<16x32xf32>, vector<32x64xf32>, vector<16x64xf32> -> vector<16x64xf32>
    %311 = vector.broadcast %200 : vector<1x64xf32> to vector<16x64xf32>
    %312 = arith.addf %310, %311 : vector<16x64xf32>
    %313 = arith.mulf %312, %312 : vector<16x64xf32>
    %314 = arith.mulf %312, %313 : vector<16x64xf32>
    %cst_88 = arith.constant 4.471500e-02 : f32
    %315 = vector.broadcast %cst_88 : f32 to vector<16x64xf32>
    %316 = arith.mulf %315, %314 : vector<16x64xf32>
    %317 = arith.addf %312, %316 : vector<16x64xf32>
    %cst_89 = arith.constant 0.797884583 : f32
    %318 = vector.broadcast %cst_89 : f32 to vector<16x64xf32>
    %319 = arith.mulf %318, %317 : vector<16x64xf32>
    %320 = math.tanh %319 : vector<16x64xf32>
    %cst_90 = arith.constant 1.000000e+00 : f32
    %321 = vector.broadcast %cst_90 : f32 to vector<16x64xf32>
    %322 = arith.addf %321, %320 : vector<16x64xf32>
    %cst_91 = arith.constant 5.000000e-01 : f32
    %323 = vector.broadcast %cst_91 : f32 to vector<16x64xf32>
    %324 = arith.mulf %323, %322 : vector<16x64xf32>
    %325 = arith.mulf %312, %324 : vector<16x64xf32>
    %cst_92 = arith.constant dense<0.000000e+00> : vector<16x32xf32>
    %326 = tpu.matmul %325, %196, %cst_92 {dimension_numbers = #tpu.dot_dimension_numbers<[1], [0], [0], [1], [0, 0, 1, 1], [], []>} : vector<16x64xf32>, vector<64x32xf32>, vector<16x32xf32> -> vector<16x32xf32>
    %327 = vector.broadcast %201 : vector<1x32xf32> to vector<16x32xf32>
    %328 = arith.addf %326, %327 : vector<16x32xf32>
    %329 = arith.addf %328, %309 : vector<16x32xf32>
    %cst_93 = arith.constant dense<0.000000e+00> : vector<16xf32>
    %330 = vector.multi_reduction <add>, %329, %cst_93 [1] : vector<16x32xf32> to vector<16xf32>
    %331 = vector.shape_cast %330 : vector<16xf32> to vector<16x1xf32>
    %cst_94 = arith.constant 3.200000e+01 : f32
    %332 = vector.broadcast %cst_94 : f32 to vector<16x1xf32>
    %333 = arith.divf %331, %332 : vector<16x1xf32>
    %334 = vector.broadcast %333 : vector<16x1xf32> to vector<16x32xf32>
    %335 = arith.subf %329, %334 : vector<16x32xf32>
    %336 = arith.mulf %335, %335 : vector<16x32xf32>
    %cst_95 = arith.constant dense<0.000000e+00> : vector<16xf32>
    %337 = vector.multi_reduction <add>, %336, %cst_95 [1] : vector<16x32xf32> to vector<16xf32>
    %338 = vector.shape_cast %337 : vector<16xf32> to vector<16x1xf32>
    %cst_96 = arith.constant 3.200000e+01 : f32
    %339 = vector.broadcast %cst_96 : f32 to vector<16x1xf32>
    %340 = arith.divf %338, %339 : vector<16x1xf32>
    %cst_97 = arith.constant 9.99999996E-13 : f32
    %341 = vector.broadcast %cst_97 : f32 to vector<16x1xf32>
    %342 = arith.addf %340, %341 : vector<16x1xf32>
    %343 = math.rsqrt %342 : vector<16x1xf32>
    %344 = vector.broadcast %343 : vector<16x1xf32> to vector<16x32xf32>
    %345 = arith.mulf %335, %344 : vector<16x32xf32>
    %346 = vector.broadcast %204 : vector<1x32xf32> to vector<16x32xf32>
    %347 = arith.mulf %345, %346 : vector<16x32xf32>
    %348 = vector.broadcast %205 : vector<1x32xf32> to vector<16x32xf32>
    %349 = arith.addf %347, %348 : vector<16x32xf32>
    %c472 = arith.constant 472 : index
    %c0_98 = arith.constant 0 : index
    %350 = vector.load %arg1[%c472, %c0_98] : memref<544x128xf32, #tpu.memory_space<vmem>>, vector<32x32xf32>
    %c504 = arith.constant 504 : index
    %c0_99 = arith.constant 0 : index
    %351 = vector.load %arg1[%c504, %c0_99] : memref<544x128xf32, #tpu.memory_space<vmem>>, vector<32x5xf32>
    %c536 = arith.constant 536 : index
    %c0_100 = arith.constant 0 : index
    %352 = vector.load %arg1[%c536, %c0_100] : memref<544x128xf32, #tpu.memory_space<vmem>>, vector<8x128xf32>
    %353 = vector.extract_strided_slice %352 {offsets = [0, 0], sizes = [1, 32], strides = [1, 1]} : vector<8x128xf32> to vector<1x32xf32>
    %354 = vector.extract_strided_slice %352 {offsets = [1, 0], sizes = [1, 5], strides = [1, 1]} : vector<8x128xf32> to vector<1x5xf32>
    %cst_101 = arith.constant dense<0.000000e+00> : vector<2x32xf32>
    %355 = tpu.matmul %2, %349, %cst_101 {dimension_numbers = #tpu.dot_dimension_numbers<[1], [0], [0], [1], [0, 0, 1, 1], [], []>} : vector<2x16xf32>, vector<16x32xf32>, vector<2x32xf32> -> vector<2x32xf32>
    %cst_102 = arith.constant dense<0.000000e+00> : vector<2x32xf32>
    %356 = tpu.matmul %355, %350, %cst_102 {dimension_numbers = #tpu.dot_dimension_numbers<[1], [0], [0], [1], [0, 0, 1, 1], [], []>} : vector<2x32xf32>, vector<32x32xf32>, vector<2x32xf32> -> vector<2x32xf32>
    %357 = vector.broadcast %353 : vector<1x32xf32> to vector<2x32xf32>
    %358 = arith.addf %356, %357 : vector<2x32xf32>
    %359 = math.tanh %358 : vector<2x32xf32>
    %cst_103 = arith.constant dense<0.000000e+00> : vector<2x5xf32>
    %360 = tpu.matmul %359, %351, %cst_103 {dimension_numbers = #tpu.dot_dimension_numbers<[1], [0], [0], [1], [0, 0, 1, 1], [], []>} : vector<2x32xf32>, vector<32x5xf32>, vector<2x5xf32> -> vector<2x5xf32>
    %361 = vector.broadcast %354 : vector<1x5xf32> to vector<2x5xf32>
    %362 = arith.addf %360, %361 : vector<2x5xf32>
    %c0_104 = arith.constant 0 : index
    %c0_105 = arith.constant 0 : index
    %363 = vector.load %arg2[%c0_104, %c0_105] : memref<2x5xf32, #tpu.memory_space<vmem>>, vector<2x5xf32>
    tpu.vector_store %arg2[%c0_104, %c0_105], %362 {strides = array<i32>} : memref<2x5xf32, #tpu.memory_space<vmem>>, vector<2x5xf32>,
    return
  }
}

</mosaic_0001>

<llo_original>
// kernel: bert_for_lang_id.1
$region0: #{bert_for_lang_id.1}
  #allocation0 [shape = 'u32[]', space=smem, size = 0x4, offset = 0x4, fixed_abs, tag = 'smem constant byte address 0x4 - core index']
  #allocation1 [shape = 'u32[144,128]{1,0:T(1,128)}', space=vmem, size = 0x12000, scoped, tag = 'internal scratch']
  %s0 = inlined_call_operand.vmem [shape: f32[56,32], index: 0, kind: input, shape index: {}]
  %s1 = inlined_call_operand.hbm [shape: f32[544,128], index: 1, kind: input, shape index: {}]
  %s2 = inlined_call_operand.hbm [shape: f32[2,5], index: 2, kind: output, shape index: {}]
  %s3 = sld [smem:[#allocation0]]
  $region22: #{bert_for_lang_id.1} parent=0
    _
  %s5 = ssub.s32 1, %s3
  %s6 = scalar_select 0, %s5, %s3
  $region1: #{bert_for_lang_id.1} parent=0
    #allocation2 [shape = 'u8[278528]{0}', space=vmem, size = 0x44000, scoped, tag = 'input window, operand 1, single buffered']
    #allocation3 [shape = 's32[1]{0}', space=sflag, size = 0x4, scoped, tag = 'scoped memory for bert_for_lang_id.1']
    #allocation4 [shape = 's32[1]{0}', space=sflag, size = 0x4, scoped, tag = 'scoped memory for bert_for_lang_id.1']
    #allocation5 [shape = 'u8[1024]{0}', space=vmem, size = 0x400, scoped, tag = 'output window, operand 0, single buffered']
    %7 = vsyncpa [#allocation3], 0
    %8 = vsyncpa [#allocation4], 0
    // Predicated region
    $region2: #{bert_for_lang_id.1} parent=1 // pred_check
      _
    $region3: #{bert_for_lang_id.1} parent=1 // pred_check_branch
      %10 = sbr.rel (0) target = $region5
    $region4: #{bert_for_lang_id.1} parent=1 // pred_region
      _
    $region5: #{bert_for_lang_id.1} parent=1 // pred_fallthru
      _
    // Predicated region
    $region6: #{bert_for_lang_id.1} parent=1 // pred_check
      _
    $region7: #{bert_for_lang_id.1} parent=1 // pred_check_branch
      %12 = sbr.rel (0) target = $region9
    $region8: #{bert_for_lang_id.1} parent=1 // pred_region
      %s14 = ssub.s32 8704, 8704
      %15 = vsyncadd [#allocation3], %s14
      %s16 = sshll.u32 [#allocation2], 4
      %s17 = int_to_ptr.vmem [resolvable:$true] %s16
      %22 = dma.hbm_to_vmem [thread:$0]  %s1, 8704, %s17, [#allocation3], 128, 128, 8
    $region9: #{bert_for_lang_id.1} parent=1 // pred_fallthru
      _
    // Predicated region
    $region10: #{bert_for_lang_id.1} parent=1 // pred_check
      _
    $region11: #{bert_for_lang_id.1} parent=1 // pred_check_branch
      %24 = sbr.rel (0) target = $region13
    $region12: #{bert_for_lang_id.1} parent=1 // pred_region
      %25 = dma.done [#allocation3], 8704
    $region13: #{bert_for_lang_id.1} parent=1 // pred_fallthru
      _
    %v26 = vld [vmem:[%s0] sm:$0xff]
    %v27 = vld [vmem:[%s0 + $0x8] sm:$0xff]
    %v28 = vld [vmem:[%s0 + $0x10] sm:$0xff]
    %v29 = vld [vmem:[%s0 + $0x18] sm:$0xff]
    %v30 = vld [vmem:[%s0 + $0x20] sm:$0x3]
    %v31 = vld [vmem:[%s0 + $0x28] sm:$0xff]
    %v32 = vld [vmem:[%s0 + $0x30] sm:$0xff]
    %v33 = vld [vmem:[#allocation2] sm:$0xff]
    %v34 = vld [vmem:[#allocation2 + $0x8] sm:$0xff]
    %v35 = vld [vmem:[#allocation2 + $0x10] sm:$0xff]
    %v36 = vld [vmem:[#allocation2 + $0x18] sm:$0xff]
    %v37 = vld [vmem:[#allocation2 + $0x20] sm:$0xff]
    %v38 = vld [vmem:[#allocation2 + $0x28] sm:$0xff]
    %v39 = vld [vmem:[#allocation2 + $0x30] sm:$0xff]
    %v40 = vld [vmem:[#allocation2 + $0x38] sm:$0xff]
    %v41 = vld [vmem:[#allocation2 + $0x40] sm:$0xff]
    %v42 = vld [vmem:[#allocation2 + $0x48] sm:$0xff]
    %v43 = vld [vmem:[#allocation2 + $0x50] sm:$0xff]
    %v44 = vld [vmem:[#allocation2 + $0x58] sm:$0xff]
    %v45 = vld [vmem:[#allocation2 + $0x60] sm:$0xff]
    %v46 = vld [vmem:[#allocation2 + $0x68] sm:$0xff]
    %v47 = vld [vmem:[#allocation2 + $0x70] sm:$0xff]
    %v48 = vld [vmem:[#allocation2 + $0x78] sm:$0xff]
    %v49 = vlaneseq
    %v50 = vand.u32 %v49, 127
    %v51 = vcvt.s32.f32 %v50
    %53 = vset.pattern.permute.xlu0 0
    %54 = vperm.xlu0 %53, %v31
    %v55 = vpop.permute.xlu0 %54
    %58 = vset.pattern.permute.xlu0 0
    %59 = vperm.xlu0 %58, %v32
    %v60 = vpop.permute.xlu0 %59
    %vm62 = vcmp.eq.f32.partialorder %v51, %v55
    %vm63 = vcmp.eq.f32.partialorder %v51, %v60
    %v64 = vsel %vm62, 1, 0
    %v65 = vsel %vm63, 1, 0
    %v66 = vcvt.s32.f32 %v64
    %v67 = vcvt.s32.f32 %v65
    %v68 = vld [vmem:[#allocation2 + $0x80] sm:$0xff]
    %69 = vmatprep.subr.mxu0 0.0
    %70 = vmatpush1.msra.mxu0 %v33
    %71 = vmatprep.subr.mxu0 0.0
    %72 = vmatpush1.msra.mxu0 %v34
    %73 = vmatprep.subr.mxu0 0.0
    %74 = vmatpush1.msra.mxu0 %v35
    %75 = vmatprep.subr.mxu0 0.0
    %76 = vmatpush1.msra.mxu0 %v36
    %77 = vmatprep.subr.mxu0 0.0
    %78 = vmatpush1.msra.mxu0 %v37
    %79 = vmatprep.subr.mxu0 0.0
    %80 = vmatpush1.msra.mxu0 %v38
    %81 = vmatprep.subr.mxu0 0.0
    %82 = vmatpush1.msra.mxu0 %v39
    %83 = vmatprep.subr.mxu0 0.0
    %84 = vmatpush1.msra.mxu0 %v40
    %85 = vmatprep.subr.mxu0 0.0
    %86 = vmatpush1.msra.mxu0 %v41
    %87 = vmatprep.subr.mxu0 0.0
    %88 = vmatpush1.msra.mxu0 %v42
    %89 = vmatprep.subr.mxu0 0.0
    %90 = vmatpush1.msra.mxu0 %v43
    %91 = vmatprep.subr.mxu0 0.0
    %92 = vmatpush1.msra.mxu0 %v44
    %93 = vmatprep.subr.mxu0 0.0
    %94 = vmatpush1.msra.mxu0 %v45
    %95 = vmatprep.subr.mxu0 0.0
    %96 = vmatpush1.msra.mxu0 %v46
    %97 = vmatprep.subr.mxu0 0.0
    %98 = vmatpush1.msra.mxu0 %v47
    %99 = vmatprep.subr.mxu0 0.0
    %100 = vmatpush1.msra.mxu0 %v48
    %101 = vmatprep.subr.mxu0 0.0
    %102 = vmatpush1.msra.mxu0 0.0
    %103 = vmatprep.subr.mxu0 0.0
    %104 = vmatpush1.msra.mxu0 0.0
    %105 = vmatprep.subr.mxu0 0.0
    %106 = vmatpush1.msra.mxu0 0.0
    %107 = vmatprep.subr.mxu0 0.0
    %108 = vmatpush1.msra.mxu0 0.0
    %109 = vmatprep.subr.mxu0 0.0
    %110 = vmatpush1.msra.mxu0 0.0
    %111 = vmatprep.subr.mxu0 0.0
    %112 = vmatpush1.msra.mxu0 0.0
    %113 = vmatprep.subr.mxu0 0.0
    %114 = vmatpush1.msra.mxu0 0.0
    %115 = vmatprep.subr.mxu0 0.0
    %116 = vmatpush1.msra.mxu0 0.0
    %117 = vmatprep.subr.mxu0 0.0
    %118 = vmatpush1.msra.mxu0 0.0
    %119 = vmatprep.subr.mxu0 0.0
    %120 = vmatpush1.msra.mxu0 0.0
    %121 = vmatprep.subr.mxu0 0.0
    %122 = vmatpush1.msra.mxu0 0.0
    %123 = vmatprep.subr.mxu0 0.0
    %124 = vmatpush1.msra.mxu0 0.0
    %125 = vmatprep.subr.mxu0 0.0
    %126 = vmatpush1.msra.mxu0 0.0
    %127 = vmatprep.subr.mxu0 0.0
    %128 = vmatpush1.msra.mxu0 0.0
    %129 = vmatprep.subr.mxu0 0.0
    %130 = vmatpush1.msra.mxu0 0.0
    %131 = vmatprep.subr.mxu0 0.0
    %132 = vmatpush1.msra.mxu0 0.0
    %133 = vmatprep.mubr.f32.mxu0 0.0
    %134 = vmatmul.mubr.f32.gmra.mrb[0].mxu0 %v66
    %v135 = vpop.f32.mrb[0].mxu0
    %v136 = vadd.f32 %v26, %v135
    %v137 = vpop.f32.mrb[0].mxu0
    %138 = vmatprep.mubr.f32.mxu0 0.0
    %139 = vmatmul.mubr.f32.gmra.mrb[0].mxu0 %v67
    %v140 = vpop.f32.mrb[0].mxu0
    %v141 = vadd.f32 %v27, %v140
    %v142 = vpop.f32.mrb[0].mxu0
    %143 = vdwg.mxu0
    %vm144 = vcmask 261120
    %v145 = vsel %vm144, %v136, 0.0
    %146 = vadd.xlane.f32.xlu0 %v145
    %v147 = vpop.xlane.xlu0 %146
    %v148 = vsel %vm144, %v141, 0.0
    %149 = vadd.xlane.f32.xlu0 %v148
    %v150 = vpop.xlane.xlu0 %149
    %v151 = vrcp.pop 32.0
    %v152 = vmul.f32 %v147, %v151
    %v153 = vmul.f32 %v150, %v151
    %v154 = vsub.f32 %v136, %v152
    %v155 = vsub.f32 %v141, %v153
    %v156 = vmul.f32 %v154, %v154
    %v157 = vmul.f32 %v155, %v155
    %v158 = vsel %vm144, %v156, 0.0
    %159 = vadd.xlane.f32.xlu0 %v158
    %v160 = vpop.xlane.xlu0 %159
    %v161 = vsel %vm144, %v157, 0.0
    %162 = vadd.xlane.f32.xlu0 %v161
    %v163 = vpop.xlane.xlu0 %162
    %v164 = vmul.f32 %v160, %v151
    %v165 = vmul.f32 %v163, %v151
    %v166 = vadd.f32 %v164, 1e-12
    %v167 = vadd.f32 %v165, 1e-12
    %v168 = vrsqrt.pop %v166
    %v169 = vrsqrt.pop %v167
    %v170 = vmul.f32 %v154, %v168
    %v171 = vmul.f32 %v155, %v169
    %v172 = vlaneseq
    %v173 = vshrl.u32 %v172, 7
    %v174 = vsub.s32 0, %v173
    %v175 = vrot.slane %v68, %v174
    %v176 = vmul.f32 %v170, %v175
    %v177 = vmul.f32 %v171, %v175
    %v178 = vlaneseq
    %v179 = vshrl.u32 %v178, 7
    %v180 = vsub.s32 1, %v179
    %v181 = vrot.slane %v68, %v180
    %v182 = vadd.f32 %v176, %v181
    %v183 = vadd.f32 %v177, %v181
    %v184 = vld [vmem:[#allocation2 + $0x88] sm:$0xff]
    %v185 = vld [vmem:[#allocation2 + $0x90] sm:$0xff]
    %v186 = vld [vmem:[#allocation2 + $0x98] sm:$0xff]
    %v187 = vld [vmem:[#allocation2 + $0xa0] sm:$0xff]
    %v188 = vld [vmem:[#allocation2 + $0xa8] sm:$0xff]
    %v189 = vld [vmem:[#allocation2 + $0xb0] sm:$0xff]
    %v190 = vld [vmem:[#allocation2 + $0xb8] sm:$0xff]
    %v191 = vld [vmem:[#allocation2 + $0xc0] sm:$0xff]
    %v192 = vld [vmem:[#allocation2 + $0xc8] sm:$0xff]
    %v193 = vld [vmem:[#allocation2 + $0xd0] sm:$0xff]
    %v194 = vld [vmem:[#allocation2 + $0xd8] sm:$0xff]
    %v195 = vld [vmem:[#allocation2 + $0xe0] sm:$0xff]
    %v196 = vld [vmem:[#allocation2 + $0xe8] sm:$0xff]
    %v197 = vld [vmem:[#allocation2 + $0xf0] sm:$0xff]
    %v198 = vld [vmem:[#allocation2 + $0xf8] sm:$0xff]
    %v199 = vld [vmem:[#allocation2 + $0x100] sm:$0xff]
    %v200 = vld [vmem:[#allocation2 + $0x108] sm:$0xff]
    %v201 = vld [vmem:[#allocation2 + $0x110] sm:$0xff]
    %v202 = vld [vmem:[#allocation2 + $0x118] sm:$0xff]
    %v203 = vld [vmem:[#allocation2 + $0x120] sm:$0xff]
    %v204 = vld [vmem:[#allocation2 + $0x128] sm:$0xff]
    %v205 = vlaneseq
    %v206 = vshrl.u32 %v205, 7
    %v207 = vsub.s32 0, %v206
    %v208 = vrot.slane %v204, %v207
    %v210 = vsel %vm144, %v182, 0
    %v213 = vsel %vm144, %v183, 0
    %215 = vmatprep.subr.mxu0 0.0
    %216 = vmatpush1.msra.mxu0 %v184
    %217 = vmatprep.subr.mxu0 0.0
    %218 = vmatpush1.msra.mxu0 %v185
    %219 = vmatprep.subr.mxu0 0.0
    %220 = vmatpush1.msra.mxu0 %v186
    %221 = vmatprep.subr.mxu0 0.0
    %222 = vmatpush1.msra.mxu0 %v187
    %223 = vmatprep.subr.mxu0 0.0
    %224 = vmatpush1.msra.mxu0 0.0
    %225 = vmatprep.subr.mxu0 0.0
    %226 = vmatpush1.msra.mxu0 0.0
    %227 = vmatprep.subr.mxu0 0.0
    %228 = vmatpush1.msra.mxu0 0.0
    %229 = vmatprep.subr.mxu0 0.0
    %230 = vmatpush1.msra.mxu0 0.0
    %231 = vmatprep.subr.mxu0 0.0
    %232 = vmatpush1.msra.mxu0 0.0
    %233 = vmatprep.subr.mxu0 0.0
    %234 = vmatpush1.msra.mxu0 0.0
    %235 = vmatprep.subr.mxu0 0.0
    %236 = vmatpush1.msra.mxu0 0.0
    %237 = vmatprep.subr.mxu0 0.0
    %238 = vmatpush1.msra.mxu0 0.0
    %239 = vmatprep.subr.mxu0 0.0
    %240 = vmatpush1.msra.mxu0 0.0
    %241 = vmatprep.subr.mxu0 0.0
    %242 = vmatpush1.msra.mxu0 0.0
    %243 = vmatprep.subr.mxu0 0.0
    %244 = vmatpush1.msra.mxu0 0.0
    %245 = vmatprep.subr.mxu0 0.0
    %246 = vmatpush1.msra.mxu0 0.0
    %247 = vmatprep.subr.mxu0 0.0
    %248 = vmatpush1.msra.mxu0 0.0
    %249 = vmatprep.subr.mxu0 0.0
    %250 = vmatpush1.msra.mxu0 0.0
    %251 = vmatprep.subr.mxu0 0.0
    %252 = vmatpush1.msra.mxu0 0.0
    %253 = vmatprep.subr.mxu0 0.0
    %254 = vmatpush1.msra.mxu0 0.0
    %255 = vmatprep.subr.mxu0 0.0
    %256 = vmatpush1.msra.mxu0 0.0
    %257 = vmatprep.subr.mxu0 0.0
    %258 = vmatpush1.msra.mxu0 0.0
    %259 = vmatprep.subr.mxu0 0.0
    %260 = vmatpush1.msra.mxu0 0.0
    %261 = vmatprep.subr.mxu0 0.0
    %262 = vmatpush1.msra.mxu0 0.0
    %263 = vmatprep.subr.mxu0 0.0
    %264 = vmatpush1.msra.mxu0 0.0
    %265 = vmatprep.subr.mxu0 0.0
    %266 = vmatpush1.msra.mxu0 0.0
    %267 = vmatprep.subr.mxu0 0.0
    %268 = vmatpush1.msra.mxu0 0.0
    %269 = vmatprep.subr.mxu0 0.0
    %270 = vmatpush1.msra.mxu0 0.0
    %271 = vmatprep.subr.mxu0 0.0
    %272 = vmatpush1.msra.mxu0 0.0
    %273 = vmatprep.subr.mxu0 0.0
    %274 = vmatpush1.msra.mxu0 0.0
    %275 = vmatprep.subr.mxu0 0.0
    %276 = vmatpush1.msra.mxu0 0.0
    %277 = vmatprep.subr.mxu0 0.0
    %278 = vmatpush1.msra.mxu0 0.0
    %279 = vmatprep.mubr.f32.mxu0 0.0
    %280 = vmatmul.mubr.f32.gmra.mrb[0].mxu0 %v210
    %v281 = vpop.f32.mrb[0].mxu0
    %v282 = vadd.f32 %v208, %v281
    %v283 = vpop.f32.mrb[0].mxu0
    %284 = vmatprep.mubr.f32.mxu0 0.0
    %285 = vmatmul.mubr.f32.gmra.mrb[0].mxu0 %v213
    %v286 = vpop.f32.mrb[0].mxu0
    %v287 = vadd.f32 %v208, %v286
    %v288 = vpop.f32.mrb[0].mxu0
    %289 = vdwg.mxu0
    %292 = vrot.lane.b32.xlu0 %v282, 96
    %v293 = vpop.permute.xlu0 %292
    %294 = vrot.lane.b32.xlu0 %v287, 96
    %v295 = vpop.permute.xlu0 %294
    %vm296 = vcmask 64512
    %v297 = vsel %vm296, %v282, 0
    %v299 = vsel %vm296, %v287, 0
    %v301 = vsel %vm296, %v293, 0
    %v303 = vsel %vm296, %v295, 0
    %305 = vmatprep.subr.mxu0 0.0
    %306 = vmatpush1.xpose.msra.mxu0 %v301
    %307 = vmatprep.subr.mxu0 0.0
    %308 = vmatpush1.xpose.msra.mxu0 %v303
    %309 = vmatprep.subr.mxu0 0.0
    %310 = vmatpush1.xpose.msra.mxu0 0.0
    %311 = vmatprep.subr.mxu0 0.0
    %312 = vmatpush1.xpose.msra.mxu0 0.0
    %313 = vmatprep.subr.mxu0 0.0
    %314 = vmatpush1.xpose.msra.mxu0 0.0
    %315 = vmatprep.subr.mxu0 0.0
    %316 = vmatpush1.xpose.msra.mxu0 0.0
    %317 = vmatprep.subr.mxu0 0.0
    %318 = vmatpush1.xpose.msra.mxu0 0.0
    %319 = vmatprep.subr.mxu0 0.0
    %320 = vmatpush1.xpose.msra.mxu0 0.0
    %321 = vmatprep.subr.mxu0 0.0
    %322 = vmatpush1.xpose.msra.mxu0 0.0
    %323 = vmatprep.subr.mxu0 0.0
    %324 = vmatpush1.xpose.msra.mxu0 0.0
    %325 = vmatprep.subr.mxu0 0.0
    %326 = vmatpush1.xpose.msra.mxu0 0.0
    %327 = vmatprep.subr.mxu0 0.0
    %328 = vmatpush1.xpose.msra.mxu0 0.0
    %329 = vmatprep.subr.mxu0 0.0
    %330 = vmatpush1.xpose.msra.mxu0 0.0
    %331 = vmatprep.subr.mxu0 0.0
    %332 = vmatpush1.xpose.msra.mxu0 0.0
    %333 = vmatprep.subr.mxu0 0.0
    %334 = vmatpush1.xpose.msra.mxu0 0.0
    %335 = vmatprep.subr.mxu0 0.0
    %336 = vmatpush1.xpose.msra.mxu0 0.0
    %337 = vmatprep.subr.mxu0 0.0
    %338 = vmatpush1.xpose.msra.mxu0 0.0
    %339 = vmatprep.subr.mxu0 0.0
    %340 = vmatpush1.xpose.msra.mxu0 0.0
    %341 = vmatprep.subr.mxu0 0.0
    %342 = vmatpush1.xpose.msra.mxu0 0.0
    %343 = vmatprep.subr.mxu0 0.0
    %344 = vmatpush1.xpose.msra.mxu0 0.0
    %345 = vmatprep.subr.mxu0 0.0
    %346 = vmatpush1.xpose.msra.mxu0 0.0
    %347 = vmatprep.subr.mxu0 0.0
    %348 = vmatpush1.xpose.msra.mxu0 0.0
    %349 = vmatprep.subr.mxu0 0.0
    %350 = vmatpush1.xpose.msra.mxu0 0.0
    %351 = vmatprep.subr.mxu0 0.0
    %352 = vmatpush1.xpose.msra.mxu0 0.0
    %353 = vmatprep.subr.mxu0 0.0
    %354 = vmatpush1.xpose.msra.mxu0 0.0
    %355 = vmatprep.subr.mxu0 0.0
    %356 = vmatpush1.xpose.msra.mxu0 0.0
    %357 = vmatprep.subr.mxu0 0.0
    %358 = vmatpush1.xpose.msra.mxu0 0.0
    %359 = vmatprep.subr.mxu0 0.0
    %360 = vmatpush1.xpose.msra.mxu0 0.0
    %361 = vmatprep.subr.mxu0 0.0
    %362 = vmatpush1.xpose.msra.mxu0 0.0
    %363 = vmatprep.subr.mxu0 0.0
    %364 = vmatpush1.xpose.msra.mxu0 0.0
    %365 = vmatprep.subr.mxu0 0.0
    %366 = vmatpush1.xpose.msra.mxu0 0.0
    %367 = vmatprep.subr.mxu0 0.0
    %368 = vmatpush1.xpose.msra.mxu0 0.0
    %369 = vmatprep.mubr.f32.mxu0 0.0
    %370 = vmatmul.mubr.f32.gmra.mrb[0].mxu0 %v297
    %v371 = vpop.f32.mrb[0].mxu0
    %v372 = vadd.f32 0.0, %v371
    %v373 = vpop.f32.mrb[0].mxu0
    %374 = vmatprep.mubr.f32.mxu0 0.0
    %375 = vmatmul.mubr.f32.gmra.mrb[0].mxu0 %v299
    %v376 = vpop.f32.mrb[0].mxu0
    %v377 = vadd.f32 0.0, %v376
    %v378 = vpop.f32.mrb[0].mxu0
    %379 = vdwg.mxu0
    %v380 = vmul.f32 %v372, 0.35355338
    %v381 = vmul.f32 %v377, 0.35355338
    %v382 = vadd.f32 %v380, %v28
    %v383 = vadd.f32 %v381, %v29
    %vm384 = vcmask 130048
    %v385 = vsel %vm384, %v382, -inf
    %386 = vmax.xlane.f32.xlu0 %v385
    %v387 = vpop.xlane.xlu0 %386
    %v388 = vsel %vm384, %v383, -inf
    %389 = vmax.xlane.f32.xlu0 %v388
    %v390 = vpop.xlane.xlu0 %389
    %v391 = vsub.f32 %v382, %v387
    %v392 = vsub.f32 %v383, %v390
    %v393 = vmul.f32 %v391, 1.442695
    %v394 = vpow.pop %v393
    %v395 = vmul.f32 %v392, 1.442695
    %v396 = vpow.pop %v395
    %v397 = vsel %vm384, %v394, 0.0
    %398 = vadd.xlane.f32.xlu0 %v397
    %v399 = vpop.xlane.xlu0 %398
    %v400 = vsel %vm384, %v396, 0.0
    %401 = vadd.xlane.f32.xlu0 %v400
    %v402 = vpop.xlane.xlu0 %401
    %403 = vrot.lane.b32.xlu0 %v282, 64
    %v404 = vpop.permute.xlu0 %403
    %405 = vrot.lane.b32.xlu0 %v287, 64
    %v406 = vpop.permute.xlu0 %405
    %v410 = vsel %vm384, %v394, 0
    %v413 = vsel %vm384, %v396, 0
    %415 = vmatprep.subr.mxu0 0.0
    %416 = vmatpush1.msra.mxu0 %v404
    %417 = vmatprep.subr.mxu0 0.0
    %418 = vmatpush1.msra.mxu0 %v406
    %419 = vmatprep.subr.mxu0 0.0
    %420 = vmatpush1.msra.mxu0 0.0
    %421 = vmatprep.subr.mxu0 0.0
    %422 = vmatpush1.msra.mxu0 0.0
    %423 = vmatprep.subr.mxu0 0.0
    %424 = vmatpush1.msra.mxu0 0.0
    %425 = vmatprep.subr.mxu0 0.0
    %426 = vmatpush1.msra.mxu0 0.0
    %427 = vmatprep.subr.mxu0 0.0
    %428 = vmatpush1.msra.mxu0 0.0
    %429 = vmatprep.subr.mxu0 0.0
    %430 = vmatpush1.msra.mxu0 0.0
    %431 = vmatprep.subr.mxu0 0.0
    %432 = vmatpush1.msra.mxu0 0.0
    %433 = vmatprep.subr.mxu0 0.0
    %434 = vmatpush1.msra.mxu0 0.0
    %435 = vmatprep.subr.mxu0 0.0
    %436 = vmatpush1.msra.mxu0 0.0
    %437 = vmatprep.subr.mxu0 0.0
    %438 = vmatpush1.msra.mxu0 0.0
    %439 = vmatprep.subr.mxu0 0.0
    %440 = vmatpush1.msra.mxu0 0.0
    %441 = vmatprep.subr.mxu0 0.0
    %442 = vmatpush1.msra.mxu0 0.0
    %443 = vmatprep.subr.mxu0 0.0
    %444 = vmatpush1.msra.mxu0 0.0
    %445 = vmatprep.subr.mxu0 0.0
    %446 = vmatpush1.msra.mxu0 0.0
    %447 = vmatprep.subr.mxu0 0.0
    %448 = vmatpush1.msra.mxu0 0.0
    %449 = vmatprep.subr.mxu0 0.0
    %450 = vmatpush1.msra.mxu0 0.0
    %451 = vmatprep.subr.mxu0 0.0
    %452 = vmatpush1.msra.mxu0 0.0
    %453 = vmatprep.subr.mxu0 0.0
    %454 = vmatpush1.msra.mxu0 0.0
    %455 = vmatprep.subr.mxu0 0.0
    %456 = vmatpush1.msra.mxu0 0.0
    %457 = vmatprep.subr.mxu0 0.0
    %458 = vmatpush1.msra.mxu0 0.0
    %459 = vmatprep.subr.mxu0 0.0
    %460 = vmatpush1.msra.mxu0 0.0
    %461 = vmatprep.subr.mxu0 0.0
    %462 = vmatpush1.msra.mxu0 0.0
    %463 = vmatprep.subr.mxu0 0.0
    %464 = vmatpush1.msra.mxu0 0.0
    %465 = vmatprep.subr.mxu0 0.0
    %466 = vmatpush1.msra.mxu0 0.0
    %467 = vmatprep.subr.mxu0 0.0
    %468 = vmatpush1.msra.mxu0 0.0
    %469 = vmatprep.subr.mxu0 0.0
    %470 = vmatpush1.msra.mxu0 0.0
    %471 = vmatprep.subr.mxu0 0.0
    %472 = vmatpush1.msra.mxu0 0.0
    %473 = vmatprep.subr.mxu0 0.0
    %474 = vmatpush1.msra.mxu0 0.0
    %475 = vmatprep.subr.mxu0 0.0
    %476 = vmatpush1.msra.mxu0 0.0
    %477 = vmatprep.subr.mxu0 0.0
    %478 = vmatpush1.msra.mxu0 0.0
    %479 = vmatprep.mubr.f32.mxu0 0.0
    %480 = vmatmul.mubr.f32.gmra.mrb[0].mxu0 %v410
    %v481 = vpop.f32.mrb[0].mxu0
    %v482 = vadd.f32 0.0, %v481
    %v483 = vpop.f32.mrb[0].mxu0
    %484 = vmatprep.mubr.f32.mxu0 0.0
    %485 = vmatmul.mubr.f32.gmra.mrb[0].mxu0 %v413
    %v486 = vpop.f32.mrb[0].mxu0
    %v487 = vadd.f32 0.0, %v486
    %v488 = vpop.f32.mrb[0].mxu0
    %489 = vdwg.mxu0
    %v490 = vrcp.pop %v399
    %v491 = vrcp.pop %v402
    %v492 = vmul.f32 %v482, %v490
    %v493 = vmul.f32 %v487, %v491
    %494 = vrot.lane.b32.xlu0 %v282, 120
    %v495 = vpop.permute.xlu0 %494
    %496 = vrot.lane.b32.xlu0 %v287, 120
    %v497 = vpop.permute.xlu0 %496
    %498 = vrot.lane.b32.xlu0 %v282, 88
    %v499 = vpop.permute.xlu0 %498
    %500 = vrot.lane.b32.xlu0 %v287, 88
    %v501 = vpop.permute.xlu0 %500
    %v502 = vsel %vm296, %v495, 0
    %v504 = vsel %vm296, %v497, 0
    %v506 = vsel %vm296, %v499, 0
    %v508 = vsel %vm296, %v501, 0
    %510 = vmatprep.subr.mxu0 0.0
    %511 = vmatpush1.xpose.msra.mxu0 %v506
    %512 = vmatprep.subr.mxu0 0.0
    %513 = vmatpush1.xpose.msra.mxu0 %v508
    %514 = vmatprep.subr.mxu0 0.0
    %515 = vmatpush1.xpose.msra.mxu0 0.0
    %516 = vmatprep.subr.mxu0 0.0
    %517 = vmatpush1.xpose.msra.mxu0 0.0
    %518 = vmatprep.subr.mxu0 0.0
    %519 = vmatpush1.xpose.msra.mxu0 0.0
    %520 = vmatprep.subr.mxu0 0.0
    %521 = vmatpush1.xpose.msra.mxu0 0.0
    %522 = vmatprep.subr.mxu0 0.0
    %523 = vmatpush1.xpose.msra.mxu0 0.0
    %524 = vmatprep.subr.mxu0 0.0
    %525 = vmatpush1.xpose.msra.mxu0 0.0
    %526 = vmatprep.subr.mxu0 0.0
    %527 = vmatpush1.xpose.msra.mxu0 0.0
    %528 = vmatprep.subr.mxu0 0.0
    %529 = vmatpush1.xpose.msra.mxu0 0.0
    %530 = vmatprep.subr.mxu0 0.0
    %531 = vmatpush1.xpose.msra.mxu0 0.0
    %532 = vmatprep.subr.mxu0 0.0
    %533 = vmatpush1.xpose.msra.mxu0 0.0
    %534 = vmatprep.subr.mxu0 0.0
    %535 = vmatpush1.xpose.msra.mxu0 0.0
    %536 = vmatprep.subr.mxu0 0.0
    %537 = vmatpush1.xpose.msra.mxu0 0.0
    %538 = vmatprep.subr.mxu0 0.0
    %539 = vmatpush1.xpose.msra.mxu0 0.0
    %540 = vmatprep.subr.mxu0 0.0
    %541 = vmatpush1.xpose.msra.mxu0 0.0
    %542 = vmatprep.subr.mxu0 0.0
    %543 = vmatpush1.xpose.msra.mxu0 0.0
    %544 = vmatprep.subr.mxu0 0.0
    %545 = vmatpush1.xpose.msra.mxu0 0.0
    %546 = vmatprep.subr.mxu0 0.0
    %547 = vmatpush1.xpose.msra.mxu0 0.0
    %548 = vmatprep.subr.mxu0 0.0
    %549 = vmatpush1.xpose.msra.mxu0 0.0
    %550 = vmatprep.subr.mxu0 0.0
    %551 = vmatpush1.xpose.msra.mxu0 0.0
    %552 = vmatprep.subr.mxu0 0.0
    %553 = vmatpush1.xpose.msra.mxu0 0.0
    %554 = vmatprep.subr.mxu0 0.0
    %555 = vmatpush1.xpose.msra.mxu0 0.0
    %556 = vmatprep.subr.mxu0 0.0
    %557 = vmatpush1.xpose.msra.mxu0 0.0
    %558 = vmatprep.subr.mxu0 0.0
    %559 = vmatpush1.xpose.msra.mxu0 0.0
    %560 = vmatprep.subr.mxu0 0.0
    %561 = vmatpush1.xpose.msra.mxu0 0.0
    %562 = vmatprep.subr.mxu0 0.0
    %563 = vmatpush1.xpose.msra.mxu0 0.0
    %564 = vmatprep.subr.mxu0 0.0
    %565 = vmatpush1.xpose.msra.mxu0 0.0
    %566 = vmatprep.subr.mxu0 0.0
    %567 = vmatpush1.xpose.msra.mxu0 0.0
    %568 = vmatprep.subr.mxu0 0.0
    %569 = vmatpush1.xpose.msra.mxu0 0.0
    %570 = vmatprep.subr.mxu0 0.0
    %571 = vmatpush1.xpose.msra.mxu0 0.0
    %572 = vmatprep.subr.mxu0 0.0
    %573 = vmatpush1.xpose.msra.mxu0 0.0
    %574 = vmatprep.mubr.f32.mxu0 0.0
    %575 = vmatmul.mubr.f32.gmra.mrb[0].mxu0 %v502
    %v576 = vpop.f32.mrb[0].mxu0
    %v577 = vadd.f32 0.0, %v576
    %v578 = vpop.f32.mrb[0].mxu0
    %579 = vmatprep.mubr.f32.mxu0 0.0
    %580 = vmatmul.mubr.f32.gmra.mrb[0].mxu0 %v504
    %v581 = vpop.f32.mrb[0].mxu0
    %v582 = vadd.f32 0.0, %v581
    %v583 = vpop.f32.mrb[0].mxu0
    %584 = vdwg.mxu0
    %v585 = vmul.f32 %v577, 0.35355338
    %v586 = vmul.f32 %v582, 0.35355338
    %v587 = vadd.f32 %v585, %v28
    %v588 = vadd.f32 %v586, %v29
    %v589 = vsel %vm384, %v587, -inf
    %590 = vmax.xlane.f32.xlu0 %v589
    %v591 = vpop.xlane.xlu0 %590
    %v592 = vsel %vm384, %v588, -inf
    %593 = vmax.xlane.f32.xlu0 %v592
    %v594 = vpop.xlane.xlu0 %593
    %v595 = vsub.f32 %v587, %v591
    %v596 = vsub.f32 %v588, %v594
    %v597 = vmul.f32 %v595, 1.442695
    %v598 = vpow.pop %v597
    %v599 = vmul.f32 %v596, 1.442695
    %v600 = vpow.pop %v599
    %v601 = vsel %vm384, %v598, 0.0
    %602 = vadd.xlane.f32.xlu0 %v601
    %v603 = vpop.xlane.xlu0 %602
    %v604 = vsel %vm384, %v600, 0.0
    %605 = vadd.xlane.f32.xlu0 %v604
    %v606 = vpop.xlane.xlu0 %605
    %607 = vrot.lane.b32.xlu0 %v282, 56
    %v608 = vpop.permute.xlu0 %607
    %609 = vrot.lane.b32.xlu0 %v287, 56
    %v610 = vpop.permute.xlu0 %609
    %v614 = vsel %vm384, %v598, 0
    %v617 = vsel %vm384, %v600, 0
    %619 = vmatprep.subr.mxu0 0.0
    %620 = vmatpush1.msra.mxu0 %v608
    %621 = vmatprep.subr.mxu0 0.0
    %622 = vmatpush1.msra.mxu0 %v610
    %623 = vmatprep.subr.mxu0 0.0
    %624 = vmatpush1.msra.mxu0 0.0
    %625 = vmatprep.subr.mxu0 0.0
    %626 = vmatpush1.msra.mxu0 0.0
    %627 = vmatprep.subr.mxu0 0.0
    %628 = vmatpush1.msra.mxu0 0.0
    %629 = vmatprep.subr.mxu0 0.0
    %630 = vmatpush1.msra.mxu0 0.0
    %631 = vmatprep.subr.mxu0 0.0
    %632 = vmatpush1.msra.mxu0 0.0
    %633 = vmatprep.subr.mxu0 0.0
    %634 = vmatpush1.msra.mxu0 0.0
    %635 = vmatprep.subr.mxu0 0.0
    %636 = vmatpush1.msra.mxu0 0.0
    %637 = vmatprep.subr.mxu0 0.0
    %638 = vmatpush1.msra.mxu0 0.0
    %639 = vmatprep.subr.mxu0 0.0
    %640 = vmatpush1.msra.mxu0 0.0
    %641 = vmatprep.subr.mxu0 0.0
    %642 = vmatpush1.msra.mxu0 0.0
    %643 = vmatprep.subr.mxu0 0.0
    %644 = vmatpush1.msra.mxu0 0.0
    %645 = vmatprep.subr.mxu0 0.0
    %646 = vmatpush1.msra.mxu0 0.0
    %647 = vmatprep.subr.mxu0 0.0
    %648 = vmatpush1.msra.mxu0 0.0
    %649 = vmatprep.subr.mxu0 0.0
    %650 = vmatpush1.msra.mxu0 0.0
    %651 = vmatprep.subr.mxu0 0.0
    %652 = vmatpush1.msra.mxu0 0.0
    %653 = vmatprep.subr.mxu0 0.0
    %654 = vmatpush1.msra.mxu0 0.0
    %655 = vmatprep.subr.mxu0 0.0
    %656 = vmatpush1.msra.mxu0 0.0
    %657 = vmatprep.subr.mxu0 0.0
    %658 = vmatpush1.msra.mxu0 0.0
    %659 = vmatprep.subr.mxu0 0.0
    %660 = vmatpush1.msra.mxu0 0.0
    %661 = vmatprep.subr.mxu0 0.0
    %662 = vmatpush1.msra.mxu0 0.0
    %663 = vmatprep.subr.mxu0 0.0
    %664 = vmatpush1.msra.mxu0 0.0
    %665 = vmatprep.subr.mxu0 0.0
    %666 = vmatpush1.msra.mxu0 0.0
    %667 = vmatprep.subr.mxu0 0.0
    %668 = vmatpush1.msra.mxu0 0.0
    %669 = vmatprep.subr.mxu0 0.0
    %670 = vmatpush1.msra.mxu0 0.0
    %671 = vmatprep.subr.mxu0 0.0
    %672 = vmatpush1.msra.mxu0 0.0
    %673 = vmatprep.subr.mxu0 0.0
    %674 = vmatpush1.msra.mxu0 0.0
    %675 = vmatprep.subr.mxu0 0.0
    %676 = vmatpush1.msra.mxu0 0.0
    %677 = vmatprep.subr.mxu0 0.0
    %678 = vmatpush1.msra.mxu0 0.0
    %679 = vmatprep.subr.mxu0 0.0
    %680 = vmatpush1.msra.mxu0 0.0
    %681 = vmatprep.subr.mxu0 0.0
    %682 = vmatpush1.msra.mxu0 0.0
    %683 = vmatprep.mubr.f32.mxu0 0.0
    %684 = vmatmul.mubr.f32.gmra.mrb[0].mxu0 %v614
    %v685 = vpop.f32.mrb[0].mxu0
    %v686 = vadd.f32 0.0, %v685
    %v687 = vpop.f32.mrb[0].mxu0
    %688 = vmatprep.mubr.f32.mxu0 0.0
    %689 = vmatmul.mubr.f32.gmra.mrb[0].mxu0 %v617
    %v690 = vpop.f32.mrb[0].mxu0
    %v691 = vadd.f32 0.0, %v690
    %v692 = vpop.f32.mrb[0].mxu0
    %693 = vdwg.mxu0
    %v694 = vrcp.pop %v603
    %v695 = vrcp.pop %v606
    %v696 = vmul.f32 %v686, %v694
    %v697 = vmul.f32 %v691, %v695
    %698 = vrot.lane.b32.xlu0 %v282, 112
    %v699 = vpop.permute.xlu0 %698
    %700 = vrot.lane.b32.xlu0 %v287, 112
    %v701 = vpop.permute.xlu0 %700
    %702 = vrot.lane.b32.xlu0 %v282, 80
    %v703 = vpop.permute.xlu0 %702
    %704 = vrot.lane.b32.xlu0 %v287, 80
    %v705 = vpop.permute.xlu0 %704
    %v706 = vsel %vm296, %v699, 0
    %v708 = vsel %vm296, %v701, 0
    %v710 = vsel %vm296, %v703, 0
    %v712 = vsel %vm296, %v705, 0
    %714 = vmatprep.subr.mxu0 0.0
    %715 = vmatpush1.xpose.msra.mxu0 %v710
    %716 = vmatprep.subr.mxu0 0.0
    %717 = vmatpush1.xpose.msra.mxu0 %v712
    %718 = vmatprep.subr.mxu0 0.0
    %719 = vmatpush1.xpose.msra.mxu0 0.0
    %720 = vmatprep.subr.mxu0 0.0
    %721 = vmatpush1.xpose.msra.mxu0 0.0
    %722 = vmatprep.subr.mxu0 0.0
    %723 = vmatpush1.xpose.msra.mxu0 0.0
    %724 = vmatprep.subr.mxu0 0.0
    %725 = vmatpush1.xpose.msra.mxu0 0.0
    %726 = vmatprep.subr.mxu0 0.0
    %727 = vmatpush1.xpose.msra.mxu0 0.0
    %728 = vmatprep.subr.mxu0 0.0
    %729 = vmatpush1.xpose.msra.mxu0 0.0
    %730 = vmatprep.subr.mxu0 0.0
    %731 = vmatpush1.xpose.msra.mxu0 0.0
    %732 = vmatprep.subr.mxu0 0.0
    %733 = vmatpush1.xpose.msra.mxu0 0.0
    %734 = vmatprep.subr.mxu0 0.0
    %735 = vmatpush1.xpose.msra.mxu0 0.0
    %736 = vmatprep.subr.mxu0 0.0
    %737 = vmatpush1.xpose.msra.mxu0 0.0
    %738 = vmatprep.subr.mxu0 0.0
    %739 = vmatpush1.xpose.msra.mxu0 0.0
    %740 = vmatprep.subr.mxu0 0.0
    %741 = vmatpush1.xpose.msra.mxu0 0.0
    %742 = vmatprep.subr.mxu0 0.0
    %743 = vmatpush1.xpose.msra.mxu0 0.0
    %744 = vmatprep.subr.mxu0 0.0
    %745 = vmatpush1.xpose.msra.mxu0 0.0
    %746 = vmatprep.subr.mxu0 0.0
    %747 = vmatpush1.xpose.msra.mxu0 0.0
    %748 = vmatprep.subr.mxu0 0.0
    %749 = vmatpush1.xpose.msra.mxu0 0.0
    %750 = vmatprep.subr.mxu0 0.0
    %751 = vmatpush1.xpose.msra.mxu0 0.0
    %752 = vmatprep.subr.mxu0 0.0
    %753 = vmatpush1.xpose.msra.mxu0 0.0
    %754 = vmatprep.subr.mxu0 0.0
    %755 = vmatpush1.xpose.msra.mxu0 0.0
    %756 = vmatprep.subr.mxu0 0.0
    %757 = vmatpush1.xpose.msra.mxu0 0.0
    %758 = vmatprep.subr.mxu0 0.0
    %759 = vmatpush1.xpose.msra.mxu0 0.0
    %760 = vmatprep.subr.mxu0 0.0
    %761 = vmatpush1.xpose.msra.mxu0 0.0
    %762 = vmatprep.subr.mxu0 0.0
    %763 = vmatpush1.xpose.msra.mxu0 0.0
    %764 = vmatprep.subr.mxu0 0.0
    %765 = vmatpush1.xpose.msra.mxu0 0.0
    %766 = vmatprep.subr.mxu0 0.0
    %767 = vmatpush1.xpose.msra.mxu0 0.0
    %768 = vmatprep.subr.mxu0 0.0
    %769 = vmatpush1.xpose.msra.mxu0 0.0
    %770 = vmatprep.subr.mxu0 0.0
    %771 = vmatpush1.xpose.msra.mxu0 0.0
    %772 = vmatprep.subr.mxu0 0.0
    %773 = vmatpush1.xpose.msra.mxu0 0.0
    %774 = vmatprep.subr.mxu0 0.0
    %775 = vmatpush1.xpose.msra.mxu0 0.0
    %776 = vmatprep.subr.mxu0 0.0
    %777 = vmatpush1.xpose.msra.mxu0 0.0
    %778 = vmatprep.mubr.f32.mxu0 0.0
    %779 = vmatmul.mubr.f32.gmra.mrb[0].mxu0 %v706
    %v780 = vpop.f32.mrb[0].mxu0
    %v781 = vadd.f32 0.0, %v780
    %v782 = vpop.f32.mrb[0].mxu0
    %783 = vmatprep.mubr.f32.mxu0 0.0
    %784 = vmatmul.mubr.f32.gmra.mrb[0].mxu0 %v708
    %v785 = vpop.f32.mrb[0].mxu0
    %v786 = vadd.f32 0.0, %v785
    %v787 = vpop.f32.mrb[0].mxu0
    %788 = vdwg.mxu0
    %v789 = vmul.f32 %v781, 0.35355338
    %v790 = vmul.f32 %v786, 0.35355338
    %v791 = vadd.f32 %v789, %v28
    %v792 = vadd.f32 %v790, %v29
    %v793 = vsel %vm384, %v791, -inf
    %794 = vmax.xlane.f32.xlu0 %v793
    %v795 = vpop.xlane.xlu0 %794
    %v796 = vsel %vm384, %v792, -inf
    %797 = vmax.xlane.f32.xlu0 %v796
    %v798 = vpop.xlane.xlu0 %797
    %v799 = vsub.f32 %v791, %v795
    %v800 = vsub.f32 %v792, %v798
    %v801 = vmul.f32 %v799, 1.442695
    %v802 = vpow.pop %v801
    %v803 = vmul.f32 %v800, 1.442695
    %v804 = vpow.pop %v803
    %v805 = vsel %vm384, %v802, 0.0
    %806 = vadd.xlane.f32.xlu0 %v805
    %v807 = vpop.xlane.xlu0 %806
    %v808 = vsel %vm384, %v804, 0.0
    %809 = vadd.xlane.f32.xlu0 %v808
    %v810 = vpop.xlane.xlu0 %809
    %811 = vrot.lane.b32.xlu0 %v282, 48
    %v812 = vpop.permute.xlu0 %811
    %813 = vrot.lane.b32.xlu0 %v287, 48
    %v814 = vpop.permute.xlu0 %813
    %v818 = vsel %vm384, %v802, 0
    %v821 = vsel %vm384, %v804, 0
    %823 = vmatprep.subr.mxu0 0.0
    %824 = vmatpush1.msra.mxu0 %v812
    %825 = vmatprep.subr.mxu0 0.0
    %826 = vmatpush1.msra.mxu0 %v814
    %827 = vmatprep.subr.mxu0 0.0
    %828 = vmatpush1.msra.mxu0 0.0
    %829 = vmatprep.subr.mxu0 0.0
    %830 = vmatpush1.msra.mxu0 0.0
    %831 = vmatprep.subr.mxu0 0.0
    %832 = vmatpush1.msra.mxu0 0.0
    %833 = vmatprep.subr.mxu0 0.0
    %834 = vmatpush1.msra.mxu0 0.0
    %835 = vmatprep.subr.mxu0 0.0
    %836 = vmatpush1.msra.mxu0 0.0
    %837 = vmatprep.subr.mxu0 0.0
    %838 = vmatpush1.msra.mxu0 0.0
    %839 = vmatprep.subr.mxu0 0.0
    %840 = vmatpush1.msra.mxu0 0.0
    %841 = vmatprep.subr.mxu0 0.0
    %842 = vmatpush1.msra.mxu0 0.0
    %843 = vmatprep.subr.mxu0 0.0
    %844 = vmatpush1.msra.mxu0 0.0
    %845 = vmatprep.subr.mxu0 0.0
    %846 = vmatpush1.msra.mxu0 0.0
    %847 = vmatprep.subr.mxu0 0.0
    %848 = vmatpush1.msra.mxu0 0.0
    %849 = vmatprep.subr.mxu0 0.0
    %850 = vmatpush1.msra.mxu0 0.0
    %851 = vmatprep.subr.mxu0 0.0
    %852 = vmatpush1.msra.mxu0 0.0
    %853 = vmatprep.subr.mxu0 0.0
    %854 = vmatpush1.msra.mxu0 0.0
    %855 = vmatprep.subr.mxu0 0.0
    %856 = vmatpush1.msra.mxu0 0.0
    %857 = vmatprep.subr.mxu0 0.0
    %858 = vmatpush1.msra.mxu0 0.0
    %859 = vmatprep.subr.mxu0 0.0
    %860 = vmatpush1.msra.mxu0 0.0
    %861 = vmatprep.subr.mxu0 0.0
    %862 = vmatpush1.msra.mxu0 0.0
    %863 = vmatprep.subr.mxu0 0.0
    %864 = vmatpush1.msra.mxu0 0.0
    %865 = vmatprep.subr.mxu0 0.0
    %866 = vmatpush1.msra.mxu0 0.0
    %867 = vmatprep.subr.mxu0 0.0
    %868 = vmatpush1.msra.mxu0 0.0
    %869 = vmatprep.subr.mxu0 0.0
    %870 = vmatpush1.msra.mxu0 0.0
    %871 = vmatprep.subr.mxu0 0.0
    %872 = vmatpush1.msra.mxu0 0.0
    %873 = vmatprep.subr.mxu0 0.0
    %874 = vmatpush1.msra.mxu0 0.0
    %875 = vmatprep.subr.mxu0 0.0
    %876 = vmatpush1.msra.mxu0 0.0
    %877 = vmatprep.subr.mxu0 0.0
    %878 = vmatpush1.msra.mxu0 0.0
    %879 = vmatprep.subr.mxu0 0.0
    %880 = vmatpush1.msra.mxu0 0.0
    %881 = vmatprep.subr.mxu0 0.0
    %882 = vmatpush1.msra.mxu0 0.0
    %883 = vmatprep.subr.mxu0 0.0
    %884 = vmatpush1.msra.mxu0 0.0
    %885 = vmatprep.subr.mxu0 0.0
    %886 = vmatpush1.msra.mxu0 0.0
    %887 = vmatprep.mubr.f32.mxu0 0.0
    %888 = vmatmul.mubr.f32.gmra.mrb[0].mxu0 %v818
    %v889 = vpop.f32.mrb[0].mxu0
    %v890 = vadd.f32 0.0, %v889
    %v891 = vpop.f32.mrb[0].mxu0
    %892 = vmatprep.mubr.f32.mxu0 0.0
    %893 = vmatmul.mubr.f32.gmra.mrb[0].mxu0 %v821
    %v894 = vpop.f32.mrb[0].mxu0
    %v895 = vadd.f32 0.0, %v894
    %v896 = vpop.f32.mrb[0].mxu0
    %897 = vdwg.mxu0
    %v898 = vrcp.pop %v807
    %v899 = vrcp.pop %v810
    %v900 = vmul.f32 %v890, %v898
    %v901 = vmul.f32 %v895, %v899
    %902 = vrot.lane.b32.xlu0 %v282, 104
    %v903 = vpop.permute.xlu0 %902
    %904 = vrot.lane.b32.xlu0 %v287, 104
    %v905 = vpop.permute.xlu0 %904
    %906 = vrot.lane.b32.xlu0 %v282, 72
    %v907 = vpop.permute.xlu0 %906
    %908 = vrot.lane.b32.xlu0 %v287, 72
    %v909 = vpop.permute.xlu0 %908
    %v910 = vsel %vm296, %v903, 0
    %v912 = vsel %vm296, %v905, 0
    %v914 = vsel %vm296, %v907, 0
    %v916 = vsel %vm296, %v909, 0
    %918 = vmatprep.subr.mxu0 0.0
    %919 = vmatpush1.xpose.msra.mxu0 %v914
    %920 = vmatprep.subr.mxu0 0.0
    %921 = vmatpush1.xpose.msra.mxu0 %v916
    %922 = vmatprep.subr.mxu0 0.0
    %923 = vmatpush1.xpose.msra.mxu0 0.0
    %924 = vmatprep.subr.mxu0 0.0
    %925 = vmatpush1.xpose.msra.mxu0 0.0
    %926 = vmatprep.subr.mxu0 0.0
    %927 = vmatpush1.xpose.msra.mxu0 0.0
    %928 = vmatprep.subr.mxu0 0.0
    %929 = vmatpush1.xpose.msra.mxu0 0.0
    %930 = vmatprep.subr.mxu0 0.0
    %931 = vmatpush1.xpose.msra.mxu0 0.0
    %932 = vmatprep.subr.mxu0 0.0
    %933 = vmatpush1.xpose.msra.mxu0 0.0
    %934 = vmatprep.subr.mxu0 0.0
    %935 = vmatpush1.xpose.msra.mxu0 0.0
    %936 = vmatprep.subr.mxu0 0.0
    %937 = vmatpush1.xpose.msra.mxu0 0.0
    %938 = vmatprep.subr.mxu0 0.0
    %939 = vmatpush1.xpose.msra.mxu0 0.0
    %940 = vmatprep.subr.mxu0 0.0
    %941 = vmatpush1.xpose.msra.mxu0 0.0
    %942 = vmatprep.subr.mxu0 0.0
    %943 = vmatpush1.xpose.msra.mxu0 0.0
    %944 = vmatprep.subr.mxu0 0.0
    %945 = vmatpush1.xpose.msra.mxu0 0.0
    %946 = vmatprep.subr.mxu0 0.0
    %947 = vmatpush1.xpose.msra.mxu0 0.0
    %948 = vmatprep.subr.mxu0 0.0
    %949 = vmatpush1.xpose.msra.mxu0 0.0
    %950 = vmatprep.subr.mxu0 0.0
    %951 = vmatpush1.xpose.msra.mxu0 0.0
    %952 = vmatprep.subr.mxu0 0.0
    %953 = vmatpush1.xpose.msra.mxu0 0.0
    %954 = vmatprep.subr.mxu0 0.0
    %955 = vmatpush1.xpose.msra.mxu0 0.0
    %956 = vmatprep.subr.mxu0 0.0
    %957 = vmatpush1.xpose.msra.mxu0 0.0
    %958 = vmatprep.subr.mxu0 0.0
    %959 = vmatpush1.xpose.msra.mxu0 0.0
    %960 = vmatprep.subr.mxu0 0.0
    %961 = vmatpush1.xpose.msra.mxu0 0.0
    %962 = vmatprep.subr.mxu0 0.0
    %963 = vmatpush1.xpose.msra.mxu0 0.0
    %964 = vmatprep.subr.mxu0 0.0
    %965 = vmatpush1.xpose.msra.mxu0 0.0
    %966 = vmatprep.subr.mxu0 0.0
    %967 = vmatpush1.xpose.msra.mxu0 0.0
    %968 = vmatprep.subr.mxu0 0.0
    %969 = vmatpush1.xpose.msra.mxu0 0.0
    %970 = vmatprep.subr.mxu0 0.0
    %971 = vmatpush1.xpose.msra.mxu0 0.0
    %972 = vmatprep.subr.mxu0 0.0
    %973 = vmatpush1.xpose.msra.mxu0 0.0
    %974 = vmatprep.subr.mxu0 0.0
    %975 = vmatpush1.xpose.msra.mxu0 0.0
    %976 = vmatprep.subr.mxu0 0.0
    %977 = vmatpush1.xpose.msra.mxu0 0.0
    %978 = vmatprep.subr.mxu0 0.0
    %979 = vmatpush1.xpose.msra.mxu0 0.0
    %980 = vmatprep.subr.mxu0 0.0
    %981 = vmatpush1.xpose.msra.mxu0 0.0
    %982 = vmatprep.mubr.f32.mxu0 0.0
    %983 = vmatmul.mubr.f32.gmra.mrb[0].mxu0 %v910
    %v984 = vpop.f32.mrb[0].mxu0
    %v985 = vadd.f32 0.0, %v984
    %v986 = vpop.f32.mrb[0].mxu0
    %987 = vmatprep.mubr.f32.mxu0 0.0
    %988 = vmatmul.mubr.f32.gmra.mrb[0].mxu0 %v912
    %v989 = vpop.f32.mrb[0].mxu0
    %v990 = vadd.f32 0.0, %v989
    %v991 = vpop.f32.mrb[0].mxu0
    %992 = vdwg.mxu0
    %v993 = vmul.f32 %v985, 0.35355338
    %v994 = vmul.f32 %v990, 0.35355338
    %v995 = vadd.f32 %v993, %v28
    %v996 = vadd.f32 %v994, %v29
    %v997 = vsel %vm384, %v995, -inf
    %998 = vmax.xlane.f32.xlu0 %v997
    %v999 = vpop.xlane.xlu0 %998
    %v1000 = vsel %vm384, %v996, -inf
    %1001 = vmax.xlane.f32.xlu0 %v1000
    %v1002 = vpop.xlane.xlu0 %1001
    %v1003 = vsub.f32 %v995, %v999
    %v1004 = vsub.f32 %v996, %v1002
    %v1005 = vmul.f32 %v1003, 1.442695
    %v1006 = vpow.pop %v1005
    %v1007 = vmul.f32 %v1004, 1.442695
    %v1008 = vpow.pop %v1007
    %v1009 = vsel %vm384, %v1006, 0.0
    %1010 = vadd.xlane.f32.xlu0 %v1009
    %v1011 = vpop.xlane.xlu0 %1010
    %v1012 = vsel %vm384, %v1008, 0.0
    %1013 = vadd.xlane.f32.xlu0 %v1012
    %v1014 = vpop.xlane.xlu0 %1013
    %1015 = vrot.lane.b32.xlu0 %v282, 40
    %v1016 = vpop.permute.xlu0 %1015
    %1017 = vrot.lane.b32.xlu0 %v287, 40
    %v1018 = vpop.permute.xlu0 %1017
    %v1022 = vsel %vm384, %v1006, 0
    %v1025 = vsel %vm384, %v1008, 0
    %1027 = vmatprep.subr.mxu0 0.0
    %1028 = vmatpush1.msra.mxu0 %v1016
    %1029 = vmatprep.subr.mxu0 0.0
    %1030 = vmatpush1.msra.mxu0 %v1018
    %1031 = vmatprep.subr.mxu0 0.0
    %1032 = vmatpush1.msra.mxu0 0.0
    %1033 = vmatprep.subr.mxu0 0.0
    %1034 = vmatpush1.msra.mxu0 0.0
    %1035 = vmatprep.subr.mxu0 0.0
    %1036 = vmatpush1.msra.mxu0 0.0
    %1037 = vmatprep.subr.mxu0 0.0
    %1038 = vmatpush1.msra.mxu0 0.0
    %1039 = vmatprep.subr.mxu0 0.0
    %1040 = vmatpush1.msra.mxu0 0.0
    %1041 = vmatprep.subr.mxu0 0.0
    %1042 = vmatpush1.msra.mxu0 0.0
    %1043 = vmatprep.subr.mxu0 0.0
    %1044 = vmatpush1.msra.mxu0 0.0
    %1045 = vmatprep.subr.mxu0 0.0
    %1046 = vmatpush1.msra.mxu0 0.0
    %1047 = vmatprep.subr.mxu0 0.0
    %1048 = vmatpush1.msra.mxu0 0.0
    %1049 = vmatprep.subr.mxu0 0.0
    %1050 = vmatpush1.msra.mxu0 0.0
    %1051 = vmatprep.subr.mxu0 0.0
    %1052 = vmatpush1.msra.mxu0 0.0
    %1053 = vmatprep.subr.mxu0 0.0
    %1054 = vmatpush1.msra.mxu0 0.0
    %1055 = vmatprep.subr.mxu0 0.0
    %1056 = vmatpush1.msra.mxu0 0.0
    %1057 = vmatprep.subr.mxu0 0.0
    %1058 = vmatpush1.msra.mxu0 0.0
    %1059 = vmatprep.subr.mxu0 0.0
    %1060 = vmatpush1.msra.mxu0 0.0
    %1061 = vmatprep.subr.mxu0 0.0
    %1062 = vmatpush1.msra.mxu0 0.0
    %1063 = vmatprep.subr.mxu0 0.0
    %1064 = vmatpush1.msra.mxu0 0.0
    %1065 = vmatprep.subr.mxu0 0.0
    %1066 = vmatpush1.msra.mxu0 0.0
    %1067 = vmatprep.subr.mxu0 0.0
    %1068 = vmatpush1.msra.mxu0 0.0
    %1069 = vmatprep.subr.mxu0 0.0
    %1070 = vmatpush1.msra.mxu0 0.0
    %1071 = vmatprep.subr.mxu0 0.0
    %1072 = vmatpush1.msra.mxu0 0.0
    %1073 = vmatprep.subr.mxu0 0.0
    %1074 = vmatpush1.msra.mxu0 0.0
    %1075 = vmatprep.subr.mxu0 0.0
    %1076 = vmatpush1.msra.mxu0 0.0
    %1077 = vmatprep.subr.mxu0 0.0
    %1078 = vmatpush1.msra.mxu0 0.0
    %1079 = vmatprep.subr.mxu0 0.0
    %1080 = vmatpush1.msra.mxu0 0.0
    %1081 = vmatprep.subr.mxu0 0.0
    %1082 = vmatpush1.msra.mxu0 0.0
    %1083 = vmatprep.subr.mxu0 0.0
    %1084 = vmatpush1.msra.mxu0 0.0
    %1085 = vmatprep.subr.mxu0 0.0
    %1086 = vmatpush1.msra.mxu0 0.0
    %1087 = vmatprep.subr.mxu0 0.0
    %1088 = vmatpush1.msra.mxu0 0.0
    %1089 = vmatprep.subr.mxu0 0.0
    %1090 = vmatpush1.msra.mxu0 0.0
    %1091 = vmatprep.mubr.f32.mxu0 0.0
    %1092 = vmatmul.mubr.f32.gmra.mrb[0].mxu0 %v1022
    %v1093 = vpop.f32.mrb[0].mxu0
    %v1094 = vadd.f32 0.0, %v1093
    %v1095 = vpop.f32.mrb[0].mxu0
    %1096 = vmatprep.mubr.f32.mxu0 0.0
    %1097 = vmatmul.mubr.f32.gmra.mrb[0].mxu0 %v1025
    %v1098 = vpop.f32.mrb[0].mxu0
    %v1099 = vadd.f32 0.0, %v1098
    %v1100 = vpop.f32.mrb[0].mxu0
    %1101 = vdwg.mxu0
    %v1102 = vrcp.pop %v1011
    %v1103 = vrcp.pop %v1014
    %v1104 = vmul.f32 %v1094, %v1102
    %v1105 = vmul.f32 %v1099, %v1103
    %1108 = vrot.lane.b32.xlu0 %v696, 8
    %v1109 = vpop.permute.xlu0 %1108
    %1110 = vrot.lane.b32.xlu0 %v697, 8
    %v1111 = vpop.permute.xlu0 %1110
    %1116 = vrot.lane.b32.xlu0 %v900, 16
    %v1117 = vpop.permute.xlu0 %1116
    %1118 = vrot.lane.b32.xlu0 %v901, 16
    %v1119 = vpop.permute.xlu0 %1118
    %1124 = vrot.lane.b32.xlu0 %v1104, 24
    %v1125 = vpop.permute.xlu0 %1124
    %1126 = vrot.lane.b32.xlu0 %v1105, 24
    %v1127 = vpop.permute.xlu0 %1126
    %v1130 = vsel %vm296, %v492, %v1109
    %v1131 = vsel %vm296, %v493, %v1111
    %v1132 = vsel %vm384, %v1130, %v1117
    %v1133 = vsel %vm384, %v1131, %v1119
    %vm1134 = vcmask 195584
    %v1135 = vsel %vm1134, %v1132, %v1125
    %v1136 = vsel %vm1134, %v1133, %v1127
    %v1137 = vlaneseq
    %v1138 = vshrl.u32 %v1137, 7
    %v1139 = vsub.s32 1, %v1138
    %v1140 = vrot.slane %v204, %v1139
    %v1142 = vsel %vm144, %v1135, 0
    %v1145 = vsel %vm144, %v1136, 0
    %1147 = vmatprep.subr.mxu0 0.0
    %1148 = vmatpush1.msra.mxu0 %v188
    %1149 = vmatprep.subr.mxu0 0.0
    %1150 = vmatpush1.msra.mxu0 %v189
    %1151 = vmatprep.subr.mxu0 0.0
    %1152 = vmatpush1.msra.mxu0 %v190
    %1153 = vmatprep.subr.mxu0 0.0
    %1154 = vmatpush1.msra.mxu0 %v191
    %1155 = vmatprep.subr.mxu0 0.0
    %1156 = vmatpush1.msra.mxu0 0.0
    %1157 = vmatprep.subr.mxu0 0.0
    %1158 = vmatpush1.msra.mxu0 0.0
    %1159 = vmatprep.subr.mxu0 0.0
    %1160 = vmatpush1.msra.mxu0 0.0
    %1161 = vmatprep.subr.mxu0 0.0
    %1162 = vmatpush1.msra.mxu0 0.0
    %1163 = vmatprep.subr.mxu0 0.0
    %1164 = vmatpush1.msra.mxu0 0.0
    %1165 = vmatprep.subr.mxu0 0.0
    %1166 = vmatpush1.msra.mxu0 0.0
    %1167 = vmatprep.subr.mxu0 0.0
    %1168 = vmatpush1.msra.mxu0 0.0
    %1169 = vmatprep.subr.mxu0 0.0
    %1170 = vmatpush1.msra.mxu0 0.0
    %1171 = vmatprep.subr.mxu0 0.0
    %1172 = vmatpush1.msra.mxu0 0.0
    %1173 = vmatprep.subr.mxu0 0.0
    %1174 = vmatpush1.msra.mxu0 0.0
    %1175 = vmatprep.subr.mxu0 0.0
    %1176 = vmatpush1.msra.mxu0 0.0
    %1177 = vmatprep.subr.mxu0 0.0
    %1178 = vmatpush1.msra.mxu0 0.0
    %1179 = vmatprep.subr.mxu0 0.0
    %1180 = vmatpush1.msra.mxu0 0.0
    %1181 = vmatprep.subr.mxu0 0.0
    %1182 = vmatpush1.msra.mxu0 0.0
    %1183 = vmatprep.subr.mxu0 0.0
    %1184 = vmatpush1.msra.mxu0 0.0
    %1185 = vmatprep.subr.mxu0 0.0
    %1186 = vmatpush1.msra.mxu0 0.0
    %1187 = vmatprep.subr.mxu0 0.0
    %1188 = vmatpush1.msra.mxu0 0.0
    %1189 = vmatprep.subr.mxu0 0.0
    %1190 = vmatpush1.msra.mxu0 0.0
    %1191 = vmatprep.subr.mxu0 0.0
    %1192 = vmatpush1.msra.mxu0 0.0
    %1193 = vmatprep.subr.mxu0 0.0
    %1194 = vmatpush1.msra.mxu0 0.0
    %1195 = vmatprep.subr.mxu0 0.0
    %1196 = vmatpush1.msra.mxu0 0.0
    %1197 = vmatprep.subr.mxu0 0.0
    %1198 = vmatpush1.msra.mxu0 0.0
    %1199 = vmatprep.subr.mxu0 0.0
    %1200 = vmatpush1.msra.mxu0 0.0
    %1201 = vmatprep.subr.mxu0 0.0
    %1202 = vmatpush1.msra.mxu0 0.0
    %1203 = vmatprep.subr.mxu0 0.0
    %1204 = vmatpush1.msra.mxu0 0.0
    %1205 = vmatprep.subr.mxu0 0.0
    %1206 = vmatpush1.msra.mxu0 0.0
    %1207 = vmatprep.subr.mxu0 0.0
    %1208 = vmatpush1.msra.mxu0 0.0
    %1209 = vmatprep.subr.mxu0 0.0
    %1210 = vmatpush1.msra.mxu0 0.0
    %1211 = vmatprep.mubr.f32.mxu0 0.0
    %1212 = vmatmul.mubr.f32.gmra.mrb[0].mxu0 %v1142
    %v1213 = vpop.f32.mrb[0].mxu0
    %v1214 = vadd.f32 %v1140, %v1213
    %v1215 = vpop.f32.mrb[0].mxu0
    %1216 = vmatprep.mubr.f32.mxu0 0.0
    %1217 = vmatmul.mubr.f32.gmra.mrb[0].mxu0 %v1145
    %v1218 = vpop.f32.mrb[0].mxu0
    %v1219 = vadd.f32 %v1140, %v1218
    %v1220 = vpop.f32.mrb[0].mxu0
    %1221 = vdwg.mxu0
    %v1222 = vadd.f32 %v1214, %v182
    %v1223 = vadd.f32 %v1219, %v183
    %v1224 = vsel %vm144, %v1222, 0.0
    %1225 = vadd.xlane.f32.xlu0 %v1224
    %v1226 = vpop.xlane.xlu0 %1225
    %v1227 = vsel %vm144, %v1223, 0.0
    %1228 = vadd.xlane.f32.xlu0 %v1227
    %v1229 = vpop.xlane.xlu0 %1228
    %v1230 = vmul.f32 %v1226, %v151
    %v1231 = vmul.f32 %v1229, %v151
    %v1232 = vsub.f32 %v1222, %v1230
    %v1233 = vsub.f32 %v1223, %v1231
    %v1234 = vmul.f32 %v1232, %v1232
    %v1235 = vmul.f32 %v1233, %v1233
    %v1236 = vsel %vm144, %v1234, 0.0
    %1237 = vadd.xlane.f32.xlu0 %v1236
    %v1238 = vpop.xlane.xlu0 %1237
    %v1239 = vsel %vm144, %v1235, 0.0
    %1240 = vadd.xlane.f32.xlu0 %v1239
    %v1241 = vpop.xlane.xlu0 %1240
    %v1242 = vmul.f32 %v1238, %v151
    %v1243 = vmul.f32 %v1241, %v151
    %v1244 = vadd.f32 %v1242, 1e-12
    %v1245 = vadd.f32 %v1243, 1e-12
    %v1246 = vrsqrt.pop %v1244
    %v1247 = vrsqrt.pop %v1245
    %v1248 = vmul.f32 %v1232, %v1246
    %v1249 = vmul.f32 %v1233, %v1247
    %v1250 = vlaneseq
    %v1251 = vshrl.u32 %v1250, 7
    %v1252 = vsub.s32 4, %v1251
    %v1253 = vrot.slane %v204, %v1252
    %v1254 = vmul.f32 %v1248, %v1253
    %v1255 = vmul.f32 %v1249, %v1253
    %v1256 = vlaneseq
    %v1257 = vshrl.u32 %v1256, 7
    %v1258 = vsub.s32 5, %v1257
    %v1259 = vrot.slane %v204, %v1258
    %v1260 = vadd.f32 %v1254, %v1259
    %v1261 = vadd.f32 %v1255, %v1259
    %v1262 = vlaneseq
    %v1263 = vshrl.u32 %v1262, 7
    %v1264 = vsub.s32 2, %v1263
    %v1265 = vrot.slane %v204, %v1264
    %v1267 = vsel %vm144, %v1260, 0
    %v1270 = vsel %vm144, %v1261, 0
    %1272 = vmatprep.subr.mxu0 0.0
    %1273 = vmatpush1.msra.mxu0 %v192
    %1274 = vmatprep.subr.mxu0 0.0
    %1275 = vmatpush1.msra.mxu0 %v193
    %1276 = vmatprep.subr.mxu0 0.0
    %1277 = vmatpush1.msra.mxu0 %v194
    %1278 = vmatprep.subr.mxu0 0.0
    %1279 = vmatpush1.msra.mxu0 %v195
    %1280 = vmatprep.subr.mxu0 0.0
    %1281 = vmatpush1.msra.mxu0 0.0
    %1282 = vmatprep.subr.mxu0 0.0
    %1283 = vmatpush1.msra.mxu0 0.0
    %1284 = vmatprep.subr.mxu0 0.0
    %1285 = vmatpush1.msra.mxu0 0.0
    %1286 = vmatprep.subr.mxu0 0.0
    %1287 = vmatpush1.msra.mxu0 0.0
    %1288 = vmatprep.subr.mxu0 0.0
    %1289 = vmatpush1.msra.mxu0 0.0
    %1290 = vmatprep.subr.mxu0 0.0
    %1291 = vmatpush1.msra.mxu0 0.0
    %1292 = vmatprep.subr.mxu0 0.0
    %1293 = vmatpush1.msra.mxu0 0.0
    %1294 = vmatprep.subr.mxu0 0.0
    %1295 = vmatpush1.msra.mxu0 0.0
    %1296 = vmatprep.subr.mxu0 0.0
    %1297 = vmatpush1.msra.mxu0 0.0
    %1298 = vmatprep.subr.mxu0 0.0
    %1299 = vmatpush1.msra.mxu0 0.0
    %1300 = vmatprep.subr.mxu0 0.0
    %1301 = vmatpush1.msra.mxu0 0.0
    %1302 = vmatprep.subr.mxu0 0.0
    %1303 = vmatpush1.msra.mxu0 0.0
    %1304 = vmatprep.subr.mxu0 0.0
    %1305 = vmatpush1.msra.mxu0 0.0
    %1306 = vmatprep.subr.mxu0 0.0
    %1307 = vmatpush1.msra.mxu0 0.0
    %1308 = vmatprep.subr.mxu0 0.0
    %1309 = vmatpush1.msra.mxu0 0.0
    %1310 = vmatprep.subr.mxu0 0.0
    %1311 = vmatpush1.msra.mxu0 0.0
    %1312 = vmatprep.subr.mxu0 0.0
    %1313 = vmatpush1.msra.mxu0 0.0
    %1314 = vmatprep.subr.mxu0 0.0
    %1315 = vmatpush1.msra.mxu0 0.0
    %1316 = vmatprep.subr.mxu0 0.0
    %1317 = vmatpush1.msra.mxu0 0.0
    %1318 = vmatprep.subr.mxu0 0.0
    %1319 = vmatpush1.msra.mxu0 0.0
    %1320 = vmatprep.subr.mxu0 0.0
    %1321 = vmatpush1.msra.mxu0 0.0
    %1322 = vmatprep.subr.mxu0 0.0
    %1323 = vmatpush1.msra.mxu0 0.0
    %1324 = vmatprep.subr.mxu0 0.0
    %1325 = vmatpush1.msra.mxu0 0.0
    %1326 = vmatprep.subr.mxu0 0.0
    %1327 = vmatpush1.msra.mxu0 0.0
    %1328 = vmatprep.subr.mxu0 0.0
    %1329 = vmatpush1.msra.mxu0 0.0
    %1330 = vmatprep.subr.mxu0 0.0
    %1331 = vmatpush1.msra.mxu0 0.0
    %1332 = vmatprep.subr.mxu0 0.0
    %1333 = vmatpush1.msra.mxu0 0.0
    %1334 = vmatprep.subr.mxu0 0.0
    %1335 = vmatpush1.msra.mxu0 0.0
    %1336 = vmatprep.mubr.f32.mxu0 0.0
    %1337 = vmatmul.mubr.f32.gmra.mrb[0].mxu0 %v1267
    %v1338 = vpop.f32.mrb[0].mxu0
    %v1339 = vadd.f32 %v1265, %v1338
    %v1340 = vpop.f32.mrb[0].mxu0
    %1341 = vmatprep.mubr.f32.mxu0 0.0
    %1342 = vmatmul.mubr.f32.gmra.mrb[0].mxu0 %v1270
    %v1343 = vpop.f32.mrb[0].mxu0
    %v1344 = vadd.f32 %v1265, %v1343
    %v1345 = vpop.f32.mrb[0].mxu0
    %1346 = vdwg.mxu0
    %v1347 = vmul.f32 %v1339, %v1339
    %v1348 = vmul.f32 %v1344, %v1344
    %v1349 = vmul.f32 %v1339, %v1347
    %v1350 = vmul.f32 %v1344, %v1348
    %v1351 = vmul.f32 %v1349, 0.044715
    %v1352 = vmul.f32 %v1350, 0.044715
    %v1353 = vadd.f32 %v1339, %v1351
    %v1354 = vadd.f32 %v1344, %v1352
    %v1355 = vmul.f32 %v1353, 0.7978846
    %v1356 = vmul.f32 %v1354, 0.7978846
    %v1357 = vtanh.pop %v1355
    %v1358 = vtanh.pop %v1356
    %v1359 = vadd.f32 %v1357, 1.0
    %v1360 = vadd.f32 %v1358, 1.0
    %v1361 = vmul.f32 %v1359, 0.5
    %v1362 = vmul.f32 %v1360, 0.5
    %v1363 = vmul.f32 %v1339, %v1361
    %v1364 = vmul.f32 %v1344, %v1362
    %v1365 = vlaneseq
    %v1366 = vshrl.u32 %v1365, 7
    %v1367 = vsub.s32 3, %v1366
    %v1368 = vrot.slane %v204, %v1367
    %vm1369 = vcmask 523264
    %v1371 = vsel %vm1369, %v1363, 0
    %v1374 = vsel %vm1369, %v1364, 0
    %1376 = vmatprep.subr.mxu0 0.0
    %1377 = vmatpush1.msra.mxu0 %v196
    %1378 = vmatprep.subr.mxu0 0.0
    %1379 = vmatpush1.msra.mxu0 %v197
    %1380 = vmatprep.subr.mxu0 0.0
    %1381 = vmatpush1.msra.mxu0 %v198
    %1382 = vmatprep.subr.mxu0 0.0
    %1383 = vmatpush1.msra.mxu0 %v199
    %1384 = vmatprep.subr.mxu0 0.0
    %1385 = vmatpush1.msra.mxu0 %v200
    %1386 = vmatprep.subr.mxu0 0.0
    %1387 = vmatpush1.msra.mxu0 %v201
    %1388 = vmatprep.subr.mxu0 0.0
    %1389 = vmatpush1.msra.mxu0 %v202
    %1390 = vmatprep.subr.mxu0 0.0
    %1391 = vmatpush1.msra.mxu0 %v203
    %1392 = vmatprep.subr.mxu0 0.0
    %1393 = vmatpush1.msra.mxu0 0.0
    %1394 = vmatprep.subr.mxu0 0.0
    %1395 = vmatpush1.msra.mxu0 0.0
    %1396 = vmatprep.subr.mxu0 0.0
    %1397 = vmatpush1.msra.mxu0 0.0
    %1398 = vmatprep.subr.mxu0 0.0
    %1399 = vmatpush1.msra.mxu0 0.0
    %1400 = vmatprep.subr.mxu0 0.0
    %1401 = vmatpush1.msra.mxu0 0.0
    %1402 = vmatprep.subr.mxu0 0.0
    %1403 = vmatpush1.msra.mxu0 0.0
    %1404 = vmatprep.subr.mxu0 0.0
    %1405 = vmatpush1.msra.mxu0 0.0
    %1406 = vmatprep.subr.mxu0 0.0
    %1407 = vmatpush1.msra.mxu0 0.0
    %1408 = vmatprep.subr.mxu0 0.0
    %1409 = vmatpush1.msra.mxu0 0.0
    %1410 = vmatprep.subr.mxu0 0.0
    %1411 = vmatpush1.msra.mxu0 0.0
    %1412 = vmatprep.subr.mxu0 0.0
    %1413 = vmatpush1.msra.mxu0 0.0
    %1414 = vmatprep.subr.mxu0 0.0
    %1415 = vmatpush1.msra.mxu0 0.0
    %1416 = vmatprep.subr.mxu0 0.0
    %1417 = vmatpush1.msra.mxu0 0.0
    %1418 = vmatprep.subr.mxu0 0.0
    %1419 = vmatpush1.msra.mxu0 0.0
    %1420 = vmatprep.subr.mxu0 0.0
    %1421 = vmatpush1.msra.mxu0 0.0
    %1422 = vmatprep.subr.mxu0 0.0
    %1423 = vmatpush1.msra.mxu0 0.0
    %1424 = vmatprep.subr.mxu0 0.0
    %1425 = vmatpush1.msra.mxu0 0.0
    %1426 = vmatprep.subr.mxu0 0.0
    %1427 = vmatpush1.msra.mxu0 0.0
    %1428 = vmatprep.subr.mxu0 0.0
    %1429 = vmatpush1.msra.mxu0 0.0
    %1430 = vmatprep.subr.mxu0 0.0
    %1431 = vmatpush1.msra.mxu0 0.0
    %1432 = vmatprep.subr.mxu0 0.0
    %1433 = vmatpush1.msra.mxu0 0.0
    %1434 = vmatprep.subr.mxu0 0.0
    %1435 = vmatpush1.msra.mxu0 0.0
    %1436 = vmatprep.subr.mxu0 0.0
    %1437 = vmatpush1.msra.mxu0 0.0
    %1438 = vmatprep.subr.mxu0 0.0
    %1439 = vmatpush1.msra.mxu0 0.0
    %1440 = vmatprep.mubr.f32.mxu0 0.0
    %1441 = vmatmul.mubr.f32.gmra.mrb[0].mxu0 %v1371
    %v1442 = vpop.f32.mrb[0].mxu0
    %v1443 = vadd.f32 %v1368, %v1442
    %v1444 = vpop.f32.mrb[0].mxu0
    %1445 = vmatprep.mubr.f32.mxu0 0.0
    %1446 = vmatmul.mubr.f32.gmra.mrb[0].mxu0 %v1374
    %v1447 = vpop.f32.mrb[0].mxu0
    %v1448 = vadd.f32 %v1368, %v1447
    %v1449 = vpop.f32.mrb[0].mxu0
    %1450 = vdwg.mxu0
    %v1451 = vadd.f32 %v1443, %v1260
    %v1452 = vadd.f32 %v1448, %v1261
    %v1453 = vsel %vm144, %v1451, 0.0
    %1454 = vadd.xlane.f32.xlu0 %v1453
    %v1455 = vpop.xlane.xlu0 %1454
    %v1456 = vsel %vm144, %v1452, 0.0
    %1457 = vadd.xlane.f32.xlu0 %v1456
    %v1458 = vpop.xlane.xlu0 %1457
    %v1459 = vmul.f32 %v1455, %v151
    %v1460 = vmul.f32 %v1458, %v151
    %v1461 = vsub.f32 %v1451, %v1459
    %v1462 = vsub.f32 %v1452, %v1460
    %v1463 = vmul.f32 %v1461, %v1461
    %v1464 = vmul.f32 %v1462, %v1462
    %v1465 = vsel %vm144, %v1463, 0.0
    %1466 = vadd.xlane.f32.xlu0 %v1465
    %v1467 = vpop.xlane.xlu0 %1466
    %v1468 = vsel %vm144, %v1464, 0.0
    %1469 = vadd.xlane.f32.xlu0 %v1468
    %v1470 = vpop.xlane.xlu0 %1469
    %v1471 = vmul.f32 %v1467, %v151
    %v1472 = vmul.f32 %v1470, %v151
    %v1473 = vadd.f32 %v1471, 1e-12
    %v1474 = vadd.f32 %v1472, 1e-12
    %v1475 = vrsqrt.pop %v1473
    %v1476 = vrsqrt.pop %v1474
    %v1477 = vmul.f32 %v1461, %v1475
    %v1478 = vmul.f32 %v1462, %v1476
    %v1479 = vlaneseq
    %v1480 = vshrl.u32 %v1479, 7
    %v1481 = vsub.s32 6, %v1480
    %v1482 = vrot.slane %v204, %v1481
    %v1483 = vmul.f32 %v1477, %v1482
    %v1484 = vmul.f32 %v1478, %v1482
    %v1485 = vlaneseq
    %v1486 = vshrl.u32 %v1485, 7
    %v1487 = vsub.s32 7, %v1486
    %v1488 = vrot.slane %v204, %v1487
    %v1489 = vadd.f32 %v1483, %v1488
    %v1490 = vadd.f32 %v1484, %v1488
    %v1491 = vld [vmem:[#allocation2 + $0x130] sm:$0xff]
    %v1492 = vld [vmem:[#allocation2 + $0x138] sm:$0xff]
    %v1493 = vld [vmem:[#allocation2 + $0x140] sm:$0xff]
    %v1494 = vld [vmem:[#allocation2 + $0x148] sm:$0xff]
    %v1495 = vld [vmem:[#allocation2 + $0x150] sm:$0xff]
    %v1496 = vld [vmem:[#allocation2 + $0x158] sm:$0xff]
    %v1497 = vld [vmem:[#allocation2 + $0x160] sm:$0xff]
    %v1498 = vld [vmem:[#allocation2 + $0x168] sm:$0xff]
    %v1499 = vld [vmem:[#allocation2 + $0x170] sm:$0xff]
    %v1500 = vld [vmem:[#allocation2 + $0x178] sm:$0xff]
    %v1501 = vld [vmem:[#allocation2 + $0x180] sm:$0xff]
    %v1502 = vld [vmem:[#allocation2 + $0x188] sm:$0xff]
    %v1503 = vld [vmem:[#allocation2 + $0x190] sm:$0xff]
    %v1504 = vld [vmem:[#allocation2 + $0x198] sm:$0xff]
    %v1505 = vld [vmem:[#allocation2 + $0x1a0] sm:$0xff]
    %v1506 = vld [vmem:[#allocation2 + $0x1a8] sm:$0xff]
    %v1507 = vld [vmem:[#allocation2 + $0x1b0] sm:$0xff]
    %v1508 = vld [vmem:[#allocation2 + $0x1b8] sm:$0xff]
    %v1509 = vld [vmem:[#allocation2 + $0x1c0] sm:$0xff]
    %v1510 = vld [vmem:[#allocation2 + $0x1c8] sm:$0xff]
    %v1511 = vld [vmem:[#allocation2 + $0x1d0] sm:$0xff]
    %v1512 = vlaneseq
    %v1513 = vshrl.u32 %v1512, 7
    %v1514 = vsub.s32 0, %v1513
    %v1515 = vrot.slane %v1511, %v1514
    %v1517 = vsel %vm144, %v1489, 0
    %v1520 = vsel %vm144, %v1490, 0
    %1522 = vmatprep.subr.mxu0 0.0
    %1523 = vmatpush1.msra.mxu0 %v1491
    %1524 = vmatprep.subr.mxu0 0.0
    %1525 = vmatpush1.msra.mxu0 %v1492
    %1526 = vmatprep.subr.mxu0 0.0
    %1527 = vmatpush1.msra.mxu0 %v1493
    %1528 = vmatprep.subr.mxu0 0.0
    %1529 = vmatpush1.msra.mxu0 %v1494
    %1530 = vmatprep.subr.mxu0 0.0
    %1531 = vmatpush1.msra.mxu0 0.0
    %1532 = vmatprep.subr.mxu0 0.0
    %1533 = vmatpush1.msra.mxu0 0.0
    %1534 = vmatprep.subr.mxu0 0.0
    %1535 = vmatpush1.msra.mxu0 0.0
    %1536 = vmatprep.subr.mxu0 0.0
    %1537 = vmatpush1.msra.mxu0 0.0
    %1538 = vmatprep.subr.mxu0 0.0
    %1539 = vmatpush1.msra.mxu0 0.0
    %1540 = vmatprep.subr.mxu0 0.0
    %1541 = vmatpush1.msra.mxu0 0.0
    %1542 = vmatprep.subr.mxu0 0.0
    %1543 = vmatpush1.msra.mxu0 0.0
    %1544 = vmatprep.subr.mxu0 0.0
    %1545 = vmatpush1.msra.mxu0 0.0
    %1546 = vmatprep.subr.mxu0 0.0
    %1547 = vmatpush1.msra.mxu0 0.0
    %1548 = vmatprep.subr.mxu0 0.0
    %1549 = vmatpush1.msra.mxu0 0.0
    %1550 = vmatprep.subr.mxu0 0.0
    %1551 = vmatpush1.msra.mxu0 0.0
    %1552 = vmatprep.subr.mxu0 0.0
    %1553 = vmatpush1.msra.mxu0 0.0
    %1554 = vmatprep.subr.mxu0 0.0
    %1555 = vmatpush1.msra.mxu0 0.0
    %1556 = vmatprep.subr.mxu0 0.0
    %1557 = vmatpush1.msra.mxu0 0.0
    %1558 = vmatprep.subr.mxu0 0.0
    %1559 = vmatpush1.msra.mxu0 0.0
    %1560 = vmatprep.subr.mxu0 0.0
    %1561 = vmatpush1.msra.mxu0 0.0
    %1562 = vmatprep.subr.mxu0 0.0
    %1563 = vmatpush1.msra.mxu0 0.0
    %1564 = vmatprep.subr.mxu0 0.0
    %1565 = vmatpush1.msra.mxu0 0.0
    %1566 = vmatprep.subr.mxu0 0.0
    %1567 = vmatpush1.msra.mxu0 0.0
    %1568 = vmatprep.subr.mxu0 0.0
    %1569 = vmatpush1.msra.mxu0 0.0
    %1570 = vmatprep.subr.mxu0 0.0
    %1571 = vmatpush1.msra.mxu0 0.0
    %1572 = vmatprep.subr.mxu0 0.0
    %1573 = vmatpush1.msra.mxu0 0.0
    %1574 = vmatprep.subr.mxu0 0.0
    %1575 = vmatpush1.msra.mxu0 0.0
    %1576 = vmatprep.subr.mxu0 0.0
    %1577 = vmatpush1.msra.mxu0 0.0
    %1578 = vmatprep.subr.mxu0 0.0
    %1579 = vmatpush1.msra.mxu0 0.0
    %1580 = vmatprep.subr.mxu0 0.0
    %1581 = vmatpush1.msra.mxu0 0.0
    %1582 = vmatprep.subr.mxu0 0.0
    %1583 = vmatpush1.msra.mxu0 0.0
    %1584 = vmatprep.subr.mxu0 0.0
    %1585 = vmatpush1.msra.mxu0 0.0
    %1586 = vmatprep.mubr.f32.mxu0 0.0
    %1587 = vmatmul.mubr.f32.gmra.mrb[0].mxu0 %v1517
    %v1588 = vpop.f32.mrb[0].mxu0
    %v1589 = vadd.f32 %v1515, %v1588
    %v1590 = vpop.f32.mrb[0].mxu0
    %1591 = vmatprep.mubr.f32.mxu0 0.0
    %1592 = vmatmul.mubr.f32.gmra.mrb[0].mxu0 %v1520
    %v1593 = vpop.f32.mrb[0].mxu0
    %v1594 = vadd.f32 %v1515, %v1593
    %v1595 = vpop.f32.mrb[0].mxu0
    %1596 = vdwg.mxu0
    %1599 = vrot.lane.b32.xlu0 %v1589, 96
    %v1600 = vpop.permute.xlu0 %1599
    %1601 = vrot.lane.b32.xlu0 %v1594, 96
    %v1602 = vpop.permute.xlu0 %1601
    %v1603 = vsel %vm296, %v1589, 0
    %v1605 = vsel %vm296, %v1594, 0
    %v1607 = vsel %vm296, %v1600, 0
    %v1609 = vsel %vm296, %v1602, 0
    %1611 = vmatprep.subr.mxu0 0.0
    %1612 = vmatpush1.xpose.msra.mxu0 %v1607
    %1613 = vmatprep.subr.mxu0 0.0
    %1614 = vmatpush1.xpose.msra.mxu0 %v1609
    %1615 = vmatprep.subr.mxu0 0.0
    %1616 = vmatpush1.xpose.msra.mxu0 0.0
    %1617 = vmatprep.subr.mxu0 0.0
    %1618 = vmatpush1.xpose.msra.mxu0 0.0
    %1619 = vmatprep.subr.mxu0 0.0
    %1620 = vmatpush1.xpose.msra.mxu0 0.0
    %1621 = vmatprep.subr.mxu0 0.0
    %1622 = vmatpush1.xpose.msra.mxu0 0.0
    %1623 = vmatprep.subr.mxu0 0.0
    %1624 = vmatpush1.xpose.msra.mxu0 0.0
    %1625 = vmatprep.subr.mxu0 0.0
    %1626 = vmatpush1.xpose.msra.mxu0 0.0
    %1627 = vmatprep.subr.mxu0 0.0
    %1628 = vmatpush1.xpose.msra.mxu0 0.0
    %1629 = vmatprep.subr.mxu0 0.0
    %1630 = vmatpush1.xpose.msra.mxu0 0.0
    %1631 = vmatprep.subr.mxu0 0.0
    %1632 = vmatpush1.xpose.msra.mxu0 0.0
    %1633 = vmatprep.subr.mxu0 0.0
    %1634 = vmatpush1.xpose.msra.mxu0 0.0
    %1635 = vmatprep.subr.mxu0 0.0
    %1636 = vmatpush1.xpose.msra.mxu0 0.0
    %1637 = vmatprep.subr.mxu0 0.0
    %1638 = vmatpush1.xpose.msra.mxu0 0.0
    %1639 = vmatprep.subr.mxu0 0.0
    %1640 = vmatpush1.xpose.msra.mxu0 0.0
    %1641 = vmatprep.subr.mxu0 0.0
    %1642 = vmatpush1.xpose.msra.mxu0 0.0
    %1643 = vmatprep.subr.mxu0 0.0
    %1644 = vmatpush1.xpose.msra.mxu0 0.0
    %1645 = vmatprep.subr.mxu0 0.0
    %1646 = vmatpush1.xpose.msra.mxu0 0.0
    %1647 = vmatprep.subr.mxu0 0.0
    %1648 = vmatpush1.xpose.msra.mxu0 0.0
    %1649 = vmatprep.subr.mxu0 0.0
    %1650 = vmatpush1.xpose.msra.mxu0 0.0
    %1651 = vmatprep.subr.mxu0 0.0
    %1652 = vmatpush1.xpose.msra.mxu0 0.0
    %1653 = vmatprep.subr.mxu0 0.0
    %1654 = vmatpush1.xpose.msra.mxu0 0.0
    %1655 = vmatprep.subr.mxu0 0.0
    %1656 = vmatpush1.xpose.msra.mxu0 0.0
    %1657 = vmatprep.subr.mxu0 0.0
    %1658 = vmatpush1.xpose.msra.mxu0 0.0
    %1659 = vmatprep.subr.mxu0 0.0
    %1660 = vmatpush1.xpose.msra.mxu0 0.0
    %1661 = vmatprep.subr.mxu0 0.0
    %1662 = vmatpush1.xpose.msra.mxu0 0.0
    %1663 = vmatprep.subr.mxu0 0.0
    %1664 = vmatpush1.xpose.msra.mxu0 0.0
    %1665 = vmatprep.subr.mxu0 0.0
    %1666 = vmatpush1.xpose.msra.mxu0 0.0
    %1667 = vmatprep.subr.mxu0 0.0
    %1668 = vmatpush1.xpose.msra.mxu0 0.0
    %1669 = vmatprep.subr.mxu0 0.0
    %1670 = vmatpush1.xpose.msra.mxu0 0.0
    %1671 = vmatprep.subr.mxu0 0.0
    %1672 = vmatpush1.xpose.msra.mxu0 0.0
    %1673 = vmatprep.subr.mxu0 0.0
    %1674 = vmatpush1.xpose.msra.mxu0 0.0
    %1675 = vmatprep.mubr.f32.mxu0 0.0
    %1676 = vmatmul.mubr.f32.gmra.mrb[0].mxu0 %v1603
    %v1677 = vpop.f32.mrb[0].mxu0
    %v1678 = vadd.f32 0.0, %v1677
    %v1679 = vpop.f32.mrb[0].mxu0
    %1680 = vmatprep.mubr.f32.mxu0 0.0
    %1681 = vmatmul.mubr.f32.gmra.mrb[0].mxu0 %v1605
    %v1682 = vpop.f32.mrb[0].mxu0
    %v1683 = vadd.f32 0.0, %v1682
    %v1684 = vpop.f32.mrb[0].mxu0
    %1685 = vdwg.mxu0
    %v1686 = vmul.f32 %v1678, 0.35355338
    %v1687 = vmul.f32 %v1683, 0.35355338
    %v1688 = vadd.f32 %v1686, %v28
    %v1689 = vadd.f32 %v1687, %v29
    %v1690 = vsel %vm384, %v1688, -inf
    %1691 = vmax.xlane.f32.xlu0 %v1690
    %v1692 = vpop.xlane.xlu0 %1691
    %v1693 = vsel %vm384, %v1689, -inf
    %1694 = vmax.xlane.f32.xlu0 %v1693
    %v1695 = vpop.xlane.xlu0 %1694
    %v1696 = vsub.f32 %v1688, %v1692
    %v1697 = vsub.f32 %v1689, %v1695
    %v1698 = vmul.f32 %v1696, 1.442695
    %v1699 = vpow.pop %v1698
    %v1700 = vmul.f32 %v1697, 1.442695
    %v1701 = vpow.pop %v1700
    %v1702 = vsel %vm384, %v1699, 0.0
    %1703 = vadd.xlane.f32.xlu0 %v1702
    %v1704 = vpop.xlane.xlu0 %1703
    %v1705 = vsel %vm384, %v1701, 0.0
    %1706 = vadd.xlane.f32.xlu0 %v1705
    %v1707 = vpop.xlane.xlu0 %1706
    %1708 = vrot.lane.b32.xlu0 %v1589, 64
    %v1709 = vpop.permute.xlu0 %1708
    %1710 = vrot.lane.b32.xlu0 %v1594, 64
    %v1711 = vpop.permute.xlu0 %1710
    %v1715 = vsel %vm384, %v1699, 0
    %v1718 = vsel %vm384, %v1701, 0
    %1720 = vmatprep.subr.mxu0 0.0
    %1721 = vmatpush1.msra.mxu0 %v1709
    %1722 = vmatprep.subr.mxu0 0.0
    %1723 = vmatpush1.msra.mxu0 %v1711
    %1724 = vmatprep.subr.mxu0 0.0
    %1725 = vmatpush1.msra.mxu0 0.0
    %1726 = vmatprep.subr.mxu0 0.0
    %1727 = vmatpush1.msra.mxu0 0.0
    %1728 = vmatprep.subr.mxu0 0.0
    %1729 = vmatpush1.msra.mxu0 0.0
    %1730 = vmatprep.subr.mxu0 0.0
    %1731 = vmatpush1.msra.mxu0 0.0
    %1732 = vmatprep.subr.mxu0 0.0
    %1733 = vmatpush1.msra.mxu0 0.0
    %1734 = vmatprep.subr.mxu0 0.0
    %1735 = vmatpush1.msra.mxu0 0.0
    %1736 = vmatprep.subr.mxu0 0.0
    %1737 = vmatpush1.msra.mxu0 0.0
    %1738 = vmatprep.subr.mxu0 0.0
    %1739 = vmatpush1.msra.mxu0 0.0
    %1740 = vmatprep.subr.mxu0 0.0
    %1741 = vmatpush1.msra.mxu0 0.0
    %1742 = vmatprep.subr.mxu0 0.0
    %1743 = vmatpush1.msra.mxu0 0.0
    %1744 = vmatprep.subr.mxu0 0.0
    %1745 = vmatpush1.msra.mxu0 0.0
    %1746 = vmatprep.subr.mxu0 0.0
    %1747 = vmatpush1.msra.mxu0 0.0
    %1748 = vmatprep.subr.mxu0 0.0
    %1749 = vmatpush1.msra.mxu0 0.0
    %1750 = vmatprep.subr.mxu0 0.0
    %1751 = vmatpush1.msra.mxu0 0.0
    %1752 = vmatprep.subr.mxu0 0.0
    %1753 = vmatpush1.msra.mxu0 0.0
    %1754 = vmatprep.subr.mxu0 0.0
    %1755 = vmatpush1.msra.mxu0 0.0
    %1756 = vmatprep.subr.mxu0 0.0
    %1757 = vmatpush1.msra.mxu0 0.0
    %1758 = vmatprep.subr.mxu0 0.0
    %1759 = vmatpush1.msra.mxu0 0.0
    %1760 = vmatprep.subr.mxu0 0.0
    %1761 = vmatpush1.msra.mxu0 0.0
    %1762 = vmatprep.subr.mxu0 0.0
    %1763 = vmatpush1.msra.mxu0 0.0
    %1764 = vmatprep.subr.mxu0 0.0
    %1765 = vmatpush1.msra.mxu0 0.0
    %1766 = vmatprep.subr.mxu0 0.0
    %1767 = vmatpush1.msra.mxu0 0.0
    %1768 = vmatprep.subr.mxu0 0.0
    %1769 = vmatpush1.msra.mxu0 0.0
    %1770 = vmatprep.subr.mxu0 0.0
    %1771 = vmatpush1.msra.mxu0 0.0
    %1772 = vmatprep.subr.mxu0 0.0
    %1773 = vmatpush1.msra.mxu0 0.0
    %1774 = vmatprep.subr.mxu0 0.0
    %1775 = vmatpush1.msra.mxu0 0.0
    %1776 = vmatprep.subr.mxu0 0.0
    %1777 = vmatpush1.msra.mxu0 0.0
    %1778 = vmatprep.subr.mxu0 0.0
    %1779 = vmatpush1.msra.mxu0 0.0
    %1780 = vmatprep.subr.mxu0 0.0
    %1781 = vmatpush1.msra.mxu0 0.0
    %1782 = vmatprep.subr.mxu0 0.0
    %1783 = vmatpush1.msra.mxu0 0.0
    %1784 = vmatprep.mubr.f32.mxu0 0.0
    %1785 = vmatmul.mubr.f32.gmra.mrb[0].mxu0 %v1715
    %v1786 = vpop.f32.mrb[0].mxu0
    %v1787 = vadd.f32 0.0, %v1786
    %v1788 = vpop.f32.mrb[0].mxu0
    %1789 = vmatprep.mubr.f32.mxu0 0.0
    %1790 = vmatmul.mubr.f32.gmra.mrb[0].mxu0 %v1718
    %v1791 = vpop.f32.mrb[0].mxu0
    %v1792 = vadd.f32 0.0, %v1791
    %v1793 = vpop.f32.mrb[0].mxu0
    %1794 = vdwg.mxu0
    %v1795 = vrcp.pop %v1704
    %v1796 = vrcp.pop %v1707
    %v1797 = vmul.f32 %v1787, %v1795
    %v1798 = vmul.f32 %v1792, %v1796
    %1799 = vrot.lane.b32.xlu0 %v1589, 120
    %v1800 = vpop.permute.xlu0 %1799
    %1801 = vrot.lane.b32.xlu0 %v1594, 120
    %v1802 = vpop.permute.xlu0 %1801
    %1803 = vrot.lane.b32.xlu0 %v1589, 88
    %v1804 = vpop.permute.xlu0 %1803
    %1805 = vrot.lane.b32.xlu0 %v1594, 88
    %v1806 = vpop.permute.xlu0 %1805
    %v1807 = vsel %vm296, %v1800, 0
    %v1809 = vsel %vm296, %v1802, 0
    %v1811 = vsel %vm296, %v1804, 0
    %v1813 = vsel %vm296, %v1806, 0
    %1815 = vmatprep.subr.mxu0 0.0
    %1816 = vmatpush1.xpose.msra.mxu0 %v1811
    %1817 = vmatprep.subr.mxu0 0.0
    %1818 = vmatpush1.xpose.msra.mxu0 %v1813
    %1819 = vmatprep.subr.mxu0 0.0
    %1820 = vmatpush1.xpose.msra.mxu0 0.0
    %1821 = vmatprep.subr.mxu0 0.0
    %1822 = vmatpush1.xpose.msra.mxu0 0.0
    %1823 = vmatprep.subr.mxu0 0.0
    %1824 = vmatpush1.xpose.msra.mxu0 0.0
    %1825 = vmatprep.subr.mxu0 0.0
    %1826 = vmatpush1.xpose.msra.mxu0 0.0
    %1827 = vmatprep.subr.mxu0 0.0
    %1828 = vmatpush1.xpose.msra.mxu0 0.0
    %1829 = vmatprep.subr.mxu0 0.0
    %1830 = vmatpush1.xpose.msra.mxu0 0.0
    %1831 = vmatprep.subr.mxu0 0.0
    %1832 = vmatpush1.xpose.msra.mxu0 0.0
    %1833 = vmatprep.subr.mxu0 0.0
    %1834 = vmatpush1.xpose.msra.mxu0 0.0
    %1835 = vmatprep.subr.mxu0 0.0
    %1836 = vmatpush1.xpose.msra.mxu0 0.0
    %1837 = vmatprep.subr.mxu0 0.0
    %1838 = vmatpush1.xpose.msra.mxu0 0.0
    %1839 = vmatprep.subr.mxu0 0.0
    %1840 = vmatpush1.xpose.msra.mxu0 0.0
    %1841 = vmatprep.subr.mxu0 0.0
    %1842 = vmatpush1.xpose.msra.mxu0 0.0
    %1843 = vmatprep.subr.mxu0 0.0
    %1844 = vmatpush1.xpose.msra.mxu0 0.0
    %1845 = vmatprep.subr.mxu0 0.0
    %1846 = vmatpush1.xpose.msra.mxu0 0.0
    %1847 = vmatprep.subr.mxu0 0.0
    %1848 = vmatpush1.xpose.msra.mxu0 0.0
    %1849 = vmatprep.subr.mxu0 0.0
    %1850 = vmatpush1.xpose.msra.mxu0 0.0
    %1851 = vmatprep.subr.mxu0 0.0
    %1852 = vmatpush1.xpose.msra.mxu0 0.0
    %1853 = vmatprep.subr.mxu0 0.0
    %1854 = vmatpush1.xpose.msra.mxu0 0.0
    %1855 = vmatprep.subr.mxu0 0.0
    %1856 = vmatpush1.xpose.msra.mxu0 0.0
    %1857 = vmatprep.subr.mxu0 0.0
    %1858 = vmatpush1.xpose.msra.mxu0 0.0
    %1859 = vmatprep.subr.mxu0 0.0
    %1860 = vmatpush1.xpose.msra.mxu0 0.0
    %1861 = vmatprep.subr.mxu0 0.0
    %1862 = vmatpush1.xpose.msra.mxu0 0.0
    %1863 = vmatprep.subr.mxu0 0.0
    %1864 = vmatpush1.xpose.msra.mxu0 0.0
    %1865 = vmatprep.subr.mxu0 0.0
    %1866 = vmatpush1.xpose.msra.mxu0 0.0
    %1867 = vmatprep.subr.mxu0 0.0
    %1868 = vmatpush1.xpose.msra.mxu0 0.0
    %1869 = vmatprep.subr.mxu0 0.0
    %1870 = vmatpush1.xpose.msra.mxu0 0.0
    %1871 = vmatprep.subr.mxu0 0.0
    %1872 = vmatpush1.xpose.msra.mxu0 0.0
    %1873 = vmatprep.subr.mxu0 0.0
    %1874 = vmatpush1.xpose.msra.mxu0 0.0
    %1875 = vmatprep.subr.mxu0 0.0
    %1876 = vmatpush1.xpose.msra.mxu0 0.0
    %1877 = vmatprep.subr.mxu0 0.0
    %1878 = vmatpush1.xpose.msra.mxu0 0.0
    %1879 = vmatprep.mubr.f32.mxu0 0.0
    %1880 = vmatmul.mubr.f32.gmra.mrb[0].mxu0 %v1807
    %v1881 = vpop.f32.mrb[0].mxu0
    %v1882 = vadd.f32 0.0, %v1881
    %v1883 = vpop.f32.mrb[0].mxu0
    %1884 = vmatprep.mubr.f32.mxu0 0.0
    %1885 = vmatmul.mubr.f32.gmra.mrb[0].mxu0 %v1809
    %v1886 = vpop.f32.mrb[0].mxu0
    %v1887 = vadd.f32 0.0, %v1886
    %v1888 = vpop.f32.mrb[0].mxu0
    %1889 = vdwg.mxu0
    %v1890 = vmul.f32 %v1882, 0.35355338
    %v1891 = vmul.f32 %v1887, 0.35355338
    %v1892 = vadd.f32 %v1890, %v28
    %v1893 = vadd.f32 %v1891, %v29
    %v1894 = vsel %vm384, %v1892, -inf
    %1895 = vmax.xlane.f32.xlu0 %v1894
    %v1896 = vpop.xlane.xlu0 %1895
    %v1897 = vsel %vm384, %v1893, -inf
    %1898 = vmax.xlane.f32.xlu0 %v1897
    %v1899 = vpop.xlane.xlu0 %1898
    %v1900 = vsub.f32 %v1892, %v1896
    %v1901 = vsub.f32 %v1893, %v1899
    %v1902 = vmul.f32 %v1900, 1.442695
    %v1903 = vpow.pop %v1902
    %v1904 = vmul.f32 %v1901, 1.442695
    %v1905 = vpow.pop %v1904
    %v1906 = vsel %vm384, %v1903, 0.0
    %1907 = vadd.xlane.f32.xlu0 %v1906
    %v1908 = vpop.xlane.xlu0 %1907
    %v1909 = vsel %vm384, %v1905, 0.0
    %1910 = vadd.xlane.f32.xlu0 %v1909
    %v1911 = vpop.xlane.xlu0 %1910
    %1912 = vrot.lane.b32.xlu0 %v1589, 56
    %v1913 = vpop.permute.xlu0 %1912
    %1914 = vrot.lane.b32.xlu0 %v1594, 56
    %v1915 = vpop.permute.xlu0 %1914
    %v1919 = vsel %vm384, %v1903, 0
    %v1922 = vsel %vm384, %v1905, 0
    %1924 = vmatprep.subr.mxu0 0.0
    %1925 = vmatpush1.msra.mxu0 %v1913
    %1926 = vmatprep.subr.mxu0 0.0
    %1927 = vmatpush1.msra.mxu0 %v1915
    %1928 = vmatprep.subr.mxu0 0.0
    %1929 = vmatpush1.msra.mxu0 0.0
    %1930 = vmatprep.subr.mxu0 0.0
    %1931 = vmatpush1.msra.mxu0 0.0
    %1932 = vmatprep.subr.mxu0 0.0
    %1933 = vmatpush1.msra.mxu0 0.0
    %1934 = vmatprep.subr.mxu0 0.0
    %1935 = vmatpush1.msra.mxu0 0.0
    %1936 = vmatprep.subr.mxu0 0.0
    %1937 = vmatpush1.msra.mxu0 0.0
    %1938 = vmatprep.subr.mxu0 0.0
    %1939 = vmatpush1.msra.mxu0 0.0
    %1940 = vmatprep.subr.mxu0 0.0
    %1941 = vmatpush1.msra.mxu0 0.0
    %1942 = vmatprep.subr.mxu0 0.0
    %1943 = vmatpush1.msra.mxu0 0.0
    %1944 = vmatprep.subr.mxu0 0.0
    %1945 = vmatpush1.msra.mxu0 0.0
    %1946 = vmatprep.subr.mxu0 0.0
    %1947 = vmatpush1.msra.mxu0 0.0
    %1948 = vmatprep.subr.mxu0 0.0
    %1949 = vmatpush1.msra.mxu0 0.0
    %1950 = vmatprep.subr.mxu0 0.0
    %1951 = vmatpush1.msra.mxu0 0.0
    %1952 = vmatprep.subr.mxu0 0.0
    %1953 = vmatpush1.msra.mxu0 0.0
    %1954 = vmatprep.subr.mxu0 0.0
    %1955 = vmatpush1.msra.mxu0 0.0
    %1956 = vmatprep.subr.mxu0 0.0
    %1957 = vmatpush1.msra.mxu0 0.0
    %1958 = vmatprep.subr.mxu0 0.0
    %1959 = vmatpush1.msra.mxu0 0.0
    %1960 = vmatprep.subr.mxu0 0.0
    %1961 = vmatpush1.msra.mxu0 0.0
    %1962 = vmatprep.subr.mxu0 0.0
    %1963 = vmatpush1.msra.mxu0 0.0
    %1964 = vmatprep.subr.mxu0 0.0
    %1965 = vmatpush1.msra.mxu0 0.0
    %1966 = vmatprep.subr.mxu0 0.0
    %1967 = vmatpush1.msra.mxu0 0.0
    %1968 = vmatprep.subr.mxu0 0.0
    %1969 = vmatpush1.msra.mxu0 0.0
    %1970 = vmatprep.subr.mxu0 0.0
    %1971 = vmatpush1.msra.mxu0 0.0
    %1972 = vmatprep.subr.mxu0 0.0
    %1973 = vmatpush1.msra.mxu0 0.0
    %1974 = vmatprep.subr.mxu0 0.0
    %1975 = vmatpush1.msra.mxu0 0.0
    %1976 = vmatprep.subr.mxu0 0.0
    %1977 = vmatpush1.msra.mxu0 0.0
    %1978 = vmatprep.subr.mxu0 0.0
    %1979 = vmatpush1.msra.mxu0 0.0
    %1980 = vmatprep.subr.mxu0 0.0
    %1981 = vmatpush1.msra.mxu0 0.0
    %1982 = vmatprep.subr.mxu0 0.0
    %1983 = vmatpush1.msra.mxu0 0.0
    %1984 = vmatprep.subr.mxu0 0.0
    %1985 = vmatpush1.msra.mxu0 0.0
    %1986 = vmatprep.subr.mxu0 0.0
    %1987 = vmatpush1.msra.mxu0 0.0
    %1988 = vmatprep.mubr.f32.mxu0 0.0
    %1989 = vmatmul.mubr.f32.gmra.mrb[0].mxu0 %v1919
    %v1990 = vpop.f32.mrb[0].mxu0
    %v1991 = vadd.f32 0.0, %v1990
    %v1992 = vpop.f32.mrb[0].mxu0
    %1993 = vmatprep.mubr.f32.mxu0 0.0
    %1994 = vmatmul.mubr.f32.gmra.mrb[0].mxu0 %v1922
    %v1995 = vpop.f32.mrb[0].mxu0
    %v1996 = vadd.f32 0.0, %v1995
    %v1997 = vpop.f32.mrb[0].mxu0
    %1998 = vdwg.mxu0
    %v1999 = vrcp.pop %v1908
    %v2000 = vrcp.pop %v1911
    %v2001 = vmul.f32 %v1991, %v1999
    %v2002 = vmul.f32 %v1996, %v2000
    %2003 = vrot.lane.b32.xlu0 %v1589, 112
    %v2004 = vpop.permute.xlu0 %2003
    %2005 = vrot.lane.b32.xlu0 %v1594, 112
    %v2006 = vpop.permute.xlu0 %2005
    %2007 = vrot.lane.b32.xlu0 %v1589, 80
    %v2008 = vpop.permute.xlu0 %2007
    %2009 = vrot.lane.b32.xlu0 %v1594, 80
    %v2010 = vpop.permute.xlu0 %2009
    %v2011 = vsel %vm296, %v2004, 0
    %v2013 = vsel %vm296, %v2006, 0
    %v2015 = vsel %vm296, %v2008, 0
    %v2017 = vsel %vm296, %v2010, 0
    %2019 = vmatprep.subr.mxu0 0.0
    %2020 = vmatpush1.xpose.msra.mxu0 %v2015
    %2021 = vmatprep.subr.mxu0 0.0
    %2022 = vmatpush1.xpose.msra.mxu0 %v2017
    %2023 = vmatprep.subr.mxu0 0.0
    %2024 = vmatpush1.xpose.msra.mxu0 0.0
    %2025 = vmatprep.subr.mxu0 0.0
    %2026 = vmatpush1.xpose.msra.mxu0 0.0
    %2027 = vmatprep.subr.mxu0 0.0
    %2028 = vmatpush1.xpose.msra.mxu0 0.0
    %2029 = vmatprep.subr.mxu0 0.0
    %2030 = vmatpush1.xpose.msra.mxu0 0.0
    %2031 = vmatprep.subr.mxu0 0.0
    %2032 = vmatpush1.xpose.msra.mxu0 0.0
    %2033 = vmatprep.subr.mxu0 0.0
    %2034 = vmatpush1.xpose.msra.mxu0 0.0
    %2035 = vmatprep.subr.mxu0 0.0
    %2036 = vmatpush1.xpose.msra.mxu0 0.0
    %2037 = vmatprep.subr.mxu0 0.0
    %2038 = vmatpush1.xpose.msra.mxu0 0.0
    %2039 = vmatprep.subr.mxu0 0.0
    %2040 = vmatpush1.xpose.msra.mxu0 0.0
    %2041 = vmatprep.subr.mxu0 0.0
    %2042 = vmatpush1.xpose.msra.mxu0 0.0
    %2043 = vmatprep.subr.mxu0 0.0
    %2044 = vmatpush1.xpose.msra.mxu0 0.0
    %2045 = vmatprep.subr.mxu0 0.0
    %2046 = vmatpush1.xpose.msra.mxu0 0.0
    %2047 = vmatprep.subr.mxu0 0.0
    %2048 = vmatpush1.xpose.msra.mxu0 0.0
    %2049 = vmatprep.subr.mxu0 0.0
    %2050 = vmatpush1.xpose.msra.mxu0 0.0
    %2051 = vmatprep.subr.mxu0 0.0
    %2052 = vmatpush1.xpose.msra.mxu0 0.0
    %2053 = vmatprep.subr.mxu0 0.0
    %2054 = vmatpush1.xpose.msra.mxu0 0.0
    %2055 = vmatprep.subr.mxu0 0.0
    %2056 = vmatpush1.xpose.msra.mxu0 0.0
    %2057 = vmatprep.subr.mxu0 0.0
    %2058 = vmatpush1.xpose.msra.mxu0 0.0
    %2059 = vmatprep.subr.mxu0 0.0
    %2060 = vmatpush1.xpose.msra.mxu0 0.0
    %2061 = vmatprep.subr.mxu0 0.0
    %2062 = vmatpush1.xpose.msra.mxu0 0.0
    %2063 = vmatprep.subr.mxu0 0.0
    %2064 = vmatpush1.xpose.msra.mxu0 0.0
    %2065 = vmatprep.subr.mxu0 0.0
    %2066 = vmatpush1.xpose.msra.mxu0 0.0
    %2067 = vmatprep.subr.mxu0 0.0
    %2068 = vmatpush1.xpose.msra.mxu0 0.0
    %2069 = vmatprep.subr.mxu0 0.0
    %2070 = vmatpush1.xpose.msra.mxu0 0.0
    %2071 = vmatprep.subr.mxu0 0.0
    %2072 = vmatpush1.xpose.msra.mxu0 0.0
    %2073 = vmatprep.subr.mxu0 0.0
    %2074 = vmatpush1.xpose.msra.mxu0 0.0
    %2075 = vmatprep.subr.mxu0 0.0
    %2076 = vmatpush1.xpose.msra.mxu0 0.0
    %2077 = vmatprep.subr.mxu0 0.0
    %2078 = vmatpush1.xpose.msra.mxu0 0.0
    %2079 = vmatprep.subr.mxu0 0.0
    %2080 = vmatpush1.xpose.msra.mxu0 0.0
    %2081 = vmatprep.subr.mxu0 0.0
    %2082 = vmatpush1.xpose.msra.mxu0 0.0
    %2083 = vmatprep.mubr.f32.mxu0 0.0
    %2084 = vmatmul.mubr.f32.gmra.mrb[0].mxu0 %v2011
    %v2085 = vpop.f32.mrb[0].mxu0
    %v2086 = vadd.f32 0.0, %v2085
    %v2087 = vpop.f32.mrb[0].mxu0
    %2088 = vmatprep.mubr.f32.mxu0 0.0
    %2089 = vmatmul.mubr.f32.gmra.mrb[0].mxu0 %v2013
    %v2090 = vpop.f32.mrb[0].mxu0
    %v2091 = vadd.f32 0.0, %v2090
    %v2092 = vpop.f32.mrb[0].mxu0
    %2093 = vdwg.mxu0
    %v2094 = vmul.f32 %v2086, 0.35355338
    %v2095 = vmul.f32 %v2091, 0.35355338
    %v2096 = vadd.f32 %v2094, %v28
    %v2097 = vadd.f32 %v2095, %v29
    %v2098 = vsel %vm384, %v2096, -inf
    %2099 = vmax.xlane.f32.xlu0 %v2098
    %v2100 = vpop.xlane.xlu0 %2099
    %v2101 = vsel %vm384, %v2097, -inf
    %2102 = vmax.xlane.f32.xlu0 %v2101
    %v2103 = vpop.xlane.xlu0 %2102
    %v2104 = vsub.f32 %v2096, %v2100
    %v2105 = vsub.f32 %v2097, %v2103
    %v2106 = vmul.f32 %v2104, 1.442695
    %v2107 = vpow.pop %v2106
    %v2108 = vmul.f32 %v2105, 1.442695
    %v2109 = vpow.pop %v2108
    %v2110 = vsel %vm384, %v2107, 0.0
    %2111 = vadd.xlane.f32.xlu0 %v2110
    %v2112 = vpop.xlane.xlu0 %2111
    %v2113 = vsel %vm384, %v2109, 0.0
    %2114 = vadd.xlane.f32.xlu0 %v2113
    %v2115 = vpop.xlane.xlu0 %2114
    %2116 = vrot.lane.b32.xlu0 %v1589, 48
    %v2117 = vpop.permute.xlu0 %2116
    %2118 = vrot.lane.b32.xlu0 %v1594, 48
    %v2119 = vpop.permute.xlu0 %2118
    %v2123 = vsel %vm384, %v2107, 0
    %v2126 = vsel %vm384, %v2109, 0
    %2128 = vmatprep.subr.mxu0 0.0
    %2129 = vmatpush1.msra.mxu0 %v2117
    %2130 = vmatprep.subr.mxu0 0.0
    %2131 = vmatpush1.msra.mxu0 %v2119
    %2132 = vmatprep.subr.mxu0 0.0
    %2133 = vmatpush1.msra.mxu0 0.0
    %2134 = vmatprep.subr.mxu0 0.0
    %2135 = vmatpush1.msra.mxu0 0.0
    %2136 = vmatprep.subr.mxu0 0.0
    %2137 = vmatpush1.msra.mxu0 0.0
    %2138 = vmatprep.subr.mxu0 0.0
    %2139 = vmatpush1.msra.mxu0 0.0
    %2140 = vmatprep.subr.mxu0 0.0
    %2141 = vmatpush1.msra.mxu0 0.0
    %2142 = vmatprep.subr.mxu0 0.0
    %2143 = vmatpush1.msra.mxu0 0.0
    %2144 = vmatprep.subr.mxu0 0.0
    %2145 = vmatpush1.msra.mxu0 0.0
    %2146 = vmatprep.subr.mxu0 0.0
    %2147 = vmatpush1.msra.mxu0 0.0
    %2148 = vmatprep.subr.mxu0 0.0
    %2149 = vmatpush1.msra.mxu0 0.0
    %2150 = vmatprep.subr.mxu0 0.0
    %2151 = vmatpush1.msra.mxu0 0.0
    %2152 = vmatprep.subr.mxu0 0.0
    %2153 = vmatpush1.msra.mxu0 0.0
    %2154 = vmatprep.subr.mxu0 0.0
    %2155 = vmatpush1.msra.mxu0 0.0
    %2156 = vmatprep.subr.mxu0 0.0
    %2157 = vmatpush1.msra.mxu0 0.0
    %2158 = vmatprep.subr.mxu0 0.0
    %2159 = vmatpush1.msra.mxu0 0.0
    %2160 = vmatprep.subr.mxu0 0.0
    %2161 = vmatpush1.msra.mxu0 0.0
    %2162 = vmatprep.subr.mxu0 0.0
    %2163 = vmatpush1.msra.mxu0 0.0
    %2164 = vmatprep.subr.mxu0 0.0
    %2165 = vmatpush1.msra.mxu0 0.0
    %2166 = vmatprep.subr.mxu0 0.0
    %2167 = vmatpush1.msra.mxu0 0.0
    %2168 = vmatprep.subr.mxu0 0.0
    %2169 = vmatpush1.msra.mxu0 0.0
    %2170 = vmatprep.subr.mxu0 0.0
    %2171 = vmatpush1.msra.mxu0 0.0
    %2172 = vmatprep.subr.mxu0 0.0
    %2173 = vmatpush1.msra.mxu0 0.0
    %2174 = vmatprep.subr.mxu0 0.0
    %2175 = vmatpush1.msra.mxu0 0.0
    %2176 = vmatprep.subr.mxu0 0.0
    %2177 = vmatpush1.msra.mxu0 0.0
    %2178 = vmatprep.subr.mxu0 0.0
    %2179 = vmatpush1.msra.mxu0 0.0
    %2180 = vmatprep.subr.mxu0 0.0
    %2181 = vmatpush1.msra.mxu0 0.0
    %2182 = vmatprep.subr.mxu0 0.0
    %2183 = vmatpush1.msra.mxu0 0.0
    %2184 = vmatprep.subr.mxu0 0.0
    %2185 = vmatpush1.msra.mxu0 0.0
    %2186 = vmatprep.subr.mxu0 0.0
    %2187 = vmatpush1.msra.mxu0 0.0
    %2188 = vmatprep.subr.mxu0 0.0
    %2189 = vmatpush1.msra.mxu0 0.0
    %2190 = vmatprep.subr.mxu0 0.0
    %2191 = vmatpush1.msra.mxu0 0.0
    %2192 = vmatprep.mubr.f32.mxu0 0.0
    %2193 = vmatmul.mubr.f32.gmra.mrb[0].mxu0 %v2123
    %v2194 = vpop.f32.mrb[0].mxu0
    %v2195 = vadd.f32 0.0, %v2194
    %v2196 = vpop.f32.mrb[0].mxu0
    %2197 = vmatprep.mubr.f32.mxu0 0.0
    %2198 = vmatmul.mubr.f32.gmra.mrb[0].mxu0 %v2126
    %v2199 = vpop.f32.mrb[0].mxu0
    %v2200 = vadd.f32 0.0, %v2199
    %v2201 = vpop.f32.mrb[0].mxu0
    %2202 = vdwg.mxu0
    %v2203 = vrcp.pop %v2112
    %v2204 = vrcp.pop %v2115
    %v2205 = vmul.f32 %v2195, %v2203
    %v2206 = vmul.f32 %v2200, %v2204
    %2207 = vrot.lane.b32.xlu0 %v1589, 104
    %v2208 = vpop.permute.xlu0 %2207
    %2209 = vrot.lane.b32.xlu0 %v1594, 104
    %v2210 = vpop.permute.xlu0 %2209
    %2211 = vrot.lane.b32.xlu0 %v1589, 72
    %v2212 = vpop.permute.xlu0 %2211
    %2213 = vrot.lane.b32.xlu0 %v1594, 72
    %v2214 = vpop.permute.xlu0 %2213
    %v2215 = vsel %vm296, %v2208, 0
    %v2217 = vsel %vm296, %v2210, 0
    %v2219 = vsel %vm296, %v2212, 0
    %v2221 = vsel %vm296, %v2214, 0
    %2223 = vmatprep.subr.mxu0 0.0
    %2224 = vmatpush1.xpose.msra.mxu0 %v2219
    %2225 = vmatprep.subr.mxu0 0.0
    %2226 = vmatpush1.xpose.msra.mxu0 %v2221
    %2227 = vmatprep.subr.mxu0 0.0
    %2228 = vmatpush1.xpose.msra.mxu0 0.0
    %2229 = vmatprep.subr.mxu0 0.0
    %2230 = vmatpush1.xpose.msra.mxu0 0.0
    %2231 = vmatprep.subr.mxu0 0.0
    %2232 = vmatpush1.xpose.msra.mxu0 0.0
    %2233 = vmatprep.subr.mxu0 0.0
    %2234 = vmatpush1.xpose.msra.mxu0 0.0
    %2235 = vmatprep.subr.mxu0 0.0
    %2236 = vmatpush1.xpose.msra.mxu0 0.0
    %2237 = vmatprep.subr.mxu0 0.0
    %2238 = vmatpush1.xpose.msra.mxu0 0.0
    %2239 = vmatprep.subr.mxu0 0.0
    %2240 = vmatpush1.xpose.msra.mxu0 0.0
    %2241 = vmatprep.subr.mxu0 0.0
    %2242 = vmatpush1.xpose.msra.mxu0 0.0
    %2243 = vmatprep.subr.mxu0 0.0
    %2244 = vmatpush1.xpose.msra.mxu0 0.0
    %2245 = vmatprep.subr.mxu0 0.0
    %2246 = vmatpush1.xpose.msra.mxu0 0.0
    %2247 = vmatprep.subr.mxu0 0.0
    %2248 = vmatpush1.xpose.msra.mxu0 0.0
    %2249 = vmatprep.subr.mxu0 0.0
    %2250 = vmatpush1.xpose.msra.mxu0 0.0
    %2251 = vmatprep.subr.mxu0 0.0
    %2252 = vmatpush1.xpose.msra.mxu0 0.0
    %2253 = vmatprep.subr.mxu0 0.0
    %2254 = vmatpush1.xpose.msra.mxu0 0.0
    %2255 = vmatprep.subr.mxu0 0.0
    %2256 = vmatpush1.xpose.msra.mxu0 0.0
    %2257 = vmatprep.subr.mxu0 0.0
    %2258 = vmatpush1.xpose.msra.mxu0 0.0
    %2259 = vmatprep.subr.mxu0 0.0
    %2260 = vmatpush1.xpose.msra.mxu0 0.0
    %2261 = vmatprep.subr.mxu0 0.0
    %2262 = vmatpush1.xpose.msra.mxu0 0.0
    %2263 = vmatprep.subr.mxu0 0.0
    %2264 = vmatpush1.xpose.msra.mxu0 0.0
    %2265 = vmatprep.subr.mxu0 0.0
    %2266 = vmatpush1.xpose.msra.mxu0 0.0
    %2267 = vmatprep.subr.mxu0 0.0
    %2268 = vmatpush1.xpose.msra.mxu0 0.0
    %2269 = vmatprep.subr.mxu0 0.0
    %2270 = vmatpush1.xpose.msra.mxu0 0.0
    %2271 = vmatprep.subr.mxu0 0.0
    %2272 = vmatpush1.xpose.msra.mxu0 0.0
    %2273 = vmatprep.subr.mxu0 0.0
    %2274 = vmatpush1.xpose.msra.mxu0 0.0
    %2275 = vmatprep.subr.mxu0 0.0
    %2276 = vmatpush1.xpose.msra.mxu0 0.0
    %2277 = vmatprep.subr.mxu0 0.0
    %2278 = vmatpush1.xpose.msra.mxu0 0.0
    %2279 = vmatprep.subr.mxu0 0.0
    %2280 = vmatpush1.xpose.msra.mxu0 0.0
    %2281 = vmatprep.subr.mxu0 0.0
    %2282 = vmatpush1.xpose.msra.mxu0 0.0
    %2283 = vmatprep.subr.mxu0 0.0
    %2284 = vmatpush1.xpose.msra.mxu0 0.0
    %2285 = vmatprep.subr.mxu0 0.0
    %2286 = vmatpush1.xpose.msra.mxu0 0.0
    %2287 = vmatprep.mubr.f32.mxu0 0.0
    %2288 = vmatmul.mubr.f32.gmra.mrb[0].mxu0 %v2215
    %v2289 = vpop.f32.mrb[0].mxu0
    %v2290 = vadd.f32 0.0, %v2289
    %v2291 = vpop.f32.mrb[0].mxu0
    %2292 = vmatprep.mubr.f32.mxu0 0.0
    %2293 = vmatmul.mubr.f32.gmra.mrb[0].mxu0 %v2217
    %v2294 = vpop.f32.mrb[0].mxu0
    %v2295 = vadd.f32 0.0, %v2294
    %v2296 = vpop.f32.mrb[0].mxu0
    %2297 = vdwg.mxu0
    %v2298 = vmul.f32 %v2290, 0.35355338
    %v2299 = vmul.f32 %v2295, 0.35355338
    %v2300 = vadd.f32 %v2298, %v28
    %v2301 = vadd.f32 %v2299, %v29
    %v2302 = vsel %vm384, %v2300, -inf
    %2303 = vmax.xlane.f32.xlu0 %v2302
    %v2304 = vpop.xlane.xlu0 %2303
    %v2305 = vsel %vm384, %v2301, -inf
    %2306 = vmax.xlane.f32.xlu0 %v2305
    %v2307 = vpop.xlane.xlu0 %2306
    %v2308 = vsub.f32 %v2300, %v2304
    %v2309 = vsub.f32 %v2301, %v2307
    %v2310 = vmul.f32 %v2308, 1.442695
    %v2311 = vpow.pop %v2310
    %v2312 = vmul.f32 %v2309, 1.442695
    %v2313 = vpow.pop %v2312
    %v2314 = vsel %vm384, %v2311, 0.0
    %2315 = vadd.xlane.f32.xlu0 %v2314
    %v2316 = vpop.xlane.xlu0 %2315
    %v2317 = vsel %vm384, %v2313, 0.0
    %2318 = vadd.xlane.f32.xlu0 %v2317
    %v2319 = vpop.xlane.xlu0 %2318
    %2320 = vrot.lane.b32.xlu0 %v1589, 40
    %v2321 = vpop.permute.xlu0 %2320
    %2322 = vrot.lane.b32.xlu0 %v1594, 40
    %v2323 = vpop.permute.xlu0 %2322
    %v2327 = vsel %vm384, %v2311, 0
    %v2330 = vsel %vm384, %v2313, 0
    %2332 = vmatprep.subr.mxu0 0.0
    %2333 = vmatpush1.msra.mxu0 %v2321
    %2334 = vmatprep.subr.mxu0 0.0
    %2335 = vmatpush1.msra.mxu0 %v2323
    %2336 = vmatprep.subr.mxu0 0.0
    %2337 = vmatpush1.msra.mxu0 0.0
    %2338 = vmatprep.subr.mxu0 0.0
    %2339 = vmatpush1.msra.mxu0 0.0
    %2340 = vmatprep.subr.mxu0 0.0
    %2341 = vmatpush1.msra.mxu0 0.0
    %2342 = vmatprep.subr.mxu0 0.0
    %2343 = vmatpush1.msra.mxu0 0.0
    %2344 = vmatprep.subr.mxu0 0.0
    %2345 = vmatpush1.msra.mxu0 0.0
    %2346 = vmatprep.subr.mxu0 0.0
    %2347 = vmatpush1.msra.mxu0 0.0
    %2348 = vmatprep.subr.mxu0 0.0
    %2349 = vmatpush1.msra.mxu0 0.0
    %2350 = vmatprep.subr.mxu0 0.0
    %2351 = vmatpush1.msra.mxu0 0.0
    %2352 = vmatprep.subr.mxu0 0.0
    %2353 = vmatpush1.msra.mxu0 0.0
    %2354 = vmatprep.subr.mxu0 0.0
    %2355 = vmatpush1.msra.mxu0 0.0
    %2356 = vmatprep.subr.mxu0 0.0
    %2357 = vmatpush1.msra.mxu0 0.0
    %2358 = vmatprep.subr.mxu0 0.0
    %2359 = vmatpush1.msra.mxu0 0.0
    %2360 = vmatprep.subr.mxu0 0.0
    %2361 = vmatpush1.msra.mxu0 0.0
    %2362 = vmatprep.subr.mxu0 0.0
    %2363 = vmatpush1.msra.mxu0 0.0
    %2364 = vmatprep.subr.mxu0 0.0
    %2365 = vmatpush1.msra.mxu0 0.0
    %2366 = vmatprep.subr.mxu0 0.0
    %2367 = vmatpush1.msra.mxu0 0.0
    %2368 = vmatprep.subr.mxu0 0.0
    %2369 = vmatpush1.msra.mxu0 0.0
    %2370 = vmatprep.subr.mxu0 0.0
    %2371 = vmatpush1.msra.mxu0 0.0
    %2372 = vmatprep.subr.mxu0 0.0
    %2373 = vmatpush1.msra.mxu0 0.0
    %2374 = vmatprep.subr.mxu0 0.0
    %2375 = vmatpush1.msra.mxu0 0.0
    %2376 = vmatprep.subr.mxu0 0.0
    %2377 = vmatpush1.msra.mxu0 0.0
    %2378 = vmatprep.subr.mxu0 0.0
    %2379 = vmatpush1.msra.mxu0 0.0
    %2380 = vmatprep.subr.mxu0 0.0
    %2381 = vmatpush1.msra.mxu0 0.0
    %2382 = vmatprep.subr.mxu0 0.0
    %2383 = vmatpush1.msra.mxu0 0.0
    %2384 = vmatprep.subr.mxu0 0.0
    %2385 = vmatpush1.msra.mxu0 0.0
    %2386 = vmatprep.subr.mxu0 0.0
    %2387 = vmatpush1.msra.mxu0 0.0
    %2388 = vmatprep.subr.mxu0 0.0
    %2389 = vmatpush1.msra.mxu0 0.0
    %2390 = vmatprep.subr.mxu0 0.0
    %2391 = vmatpush1.msra.mxu0 0.0
    %2392 = vmatprep.subr.mxu0 0.0
    %2393 = vmatpush1.msra.mxu0 0.0
    %2394 = vmatprep.subr.mxu0 0.0
    %2395 = vmatpush1.msra.mxu0 0.0
    %2396 = vmatprep.mubr.f32.mxu0 0.0
    %2397 = vmatmul.mubr.f32.gmra.mrb[0].mxu0 %v2327
    %v2398 = vpop.f32.mrb[0].mxu0
    %v2399 = vadd.f32 0.0, %v2398
    %v2400 = vpop.f32.mrb[0].mxu0
    %2401 = vmatprep.mubr.f32.mxu0 0.0
    %2402 = vmatmul.mubr.f32.gmra.mrb[0].mxu0 %v2330
    %v2403 = vpop.f32.mrb[0].mxu0
    %v2404 = vadd.f32 0.0, %v2403
    %v2405 = vpop.f32.mrb[0].mxu0
    %2406 = vdwg.mxu0
    %v2407 = vrcp.pop %v2316
    %v2408 = vrcp.pop %v2319
    %v2409 = vmul.f32 %v2399, %v2407
    %v2410 = vmul.f32 %v2404, %v2408
    %2413 = vrot.lane.b32.xlu0 %v2001, 8
    %v2414 = vpop.permute.xlu0 %2413
    %2415 = vrot.lane.b32.xlu0 %v2002, 8
    %v2416 = vpop.permute.xlu0 %2415
    %2421 = vrot.lane.b32.xlu0 %v2205, 16
    %v2422 = vpop.permute.xlu0 %2421
    %2423 = vrot.lane.b32.xlu0 %v2206, 16
    %v2424 = vpop.permute.xlu0 %2423
    %2429 = vrot.lane.b32.xlu0 %v2409, 24
    %v2430 = vpop.permute.xlu0 %2429
    %2431 = vrot.lane.b32.xlu0 %v2410, 24
    %v2432 = vpop.permute.xlu0 %2431
    %v2435 = vsel %vm296, %v1797, %v2414
    %v2436 = vsel %vm296, %v1798, %v2416
    %v2437 = vsel %vm384, %v2435, %v2422
    %v2438 = vsel %vm384, %v2436, %v2424
    %v2439 = vsel %vm1134, %v2437, %v2430
    %v2440 = vsel %vm1134, %v2438, %v2432
    %v2441 = vlaneseq
    %v2442 = vshrl.u32 %v2441, 7
    %v2443 = vsub.s32 1, %v2442
    %v2444 = vrot.slane %v1511, %v2443
    %v2446 = vsel %vm144, %v2439, 0
    %v2449 = vsel %vm144, %v2440, 0
    %2451 = vmatprep.subr.mxu0 0.0
    %2452 = vmatpush1.msra.mxu0 %v1495
    %2453 = vmatprep.subr.mxu0 0.0
    %2454 = vmatpush1.msra.mxu0 %v1496
    %2455 = vmatprep.subr.mxu0 0.0
    %2456 = vmatpush1.msra.mxu0 %v1497
    %2457 = vmatprep.subr.mxu0 0.0
    %2458 = vmatpush1.msra.mxu0 %v1498
    %2459 = vmatprep.subr.mxu0 0.0
    %2460 = vmatpush1.msra.mxu0 0.0
    %2461 = vmatprep.subr.mxu0 0.0
    %2462 = vmatpush1.msra.mxu0 0.0
    %2463 = vmatprep.subr.mxu0 0.0
    %2464 = vmatpush1.msra.mxu0 0.0
    %2465 = vmatprep.subr.mxu0 0.0
    %2466 = vmatpush1.msra.mxu0 0.0
    %2467 = vmatprep.subr.mxu0 0.0
    %2468 = vmatpush1.msra.mxu0 0.0
    %2469 = vmatprep.subr.mxu0 0.0
    %2470 = vmatpush1.msra.mxu0 0.0
    %2471 = vmatprep.subr.mxu0 0.0
    %2472 = vmatpush1.msra.mxu0 0.0
    %2473 = vmatprep.subr.mxu0 0.0
    %2474 = vmatpush1.msra.mxu0 0.0
    %2475 = vmatprep.subr.mxu0 0.0
    %2476 = vmatpush1.msra.mxu0 0.0
    %2477 = vmatprep.subr.mxu0 0.0
    %2478 = vmatpush1.msra.mxu0 0.0
    %2479 = vmatprep.subr.mxu0 0.0
    %2480 = vmatpush1.msra.mxu0 0.0
    %2481 = vmatprep.subr.mxu0 0.0
    %2482 = vmatpush1.msra.mxu0 0.0
    %2483 = vmatprep.subr.mxu0 0.0
    %2484 = vmatpush1.msra.mxu0 0.0
    %2485 = vmatprep.subr.mxu0 0.0
    %2486 = vmatpush1.msra.mxu0 0.0
    %2487 = vmatprep.subr.mxu0 0.0
    %2488 = vmatpush1.msra.mxu0 0.0
    %2489 = vmatprep.subr.mxu0 0.0
    %2490 = vmatpush1.msra.mxu0 0.0
    %2491 = vmatprep.subr.mxu0 0.0
    %2492 = vmatpush1.msra.mxu0 0.0
    %2493 = vmatprep.subr.mxu0 0.0
    %2494 = vmatpush1.msra.mxu0 0.0
    %2495 = vmatprep.subr.mxu0 0.0
    %2496 = vmatpush1.msra.mxu0 0.0
    %2497 = vmatprep.subr.mxu0 0.0
    %2498 = vmatpush1.msra.mxu0 0.0
    %2499 = vmatprep.subr.mxu0 0.0
    %2500 = vmatpush1.msra.mxu0 0.0
    %2501 = vmatprep.subr.mxu0 0.0
    %2502 = vmatpush1.msra.mxu0 0.0
    %2503 = vmatprep.subr.mxu0 0.0
    %2504 = vmatpush1.msra.mxu0 0.0
    %2505 = vmatprep.subr.mxu0 0.0
    %2506 = vmatpush1.msra.mxu0 0.0
    %2507 = vmatprep.subr.mxu0 0.0
    %2508 = vmatpush1.msra.mxu0 0.0
    %2509 = vmatprep.subr.mxu0 0.0
    %2510 = vmatpush1.msra.mxu0 0.0
    %2511 = vmatprep.subr.mxu0 0.0
    %2512 = vmatpush1.msra.mxu0 0.0
    %2513 = vmatprep.subr.mxu0 0.0
    %2514 = vmatpush1.msra.mxu0 0.0
    %2515 = vmatprep.mubr.f32.mxu0 0.0
    %2516 = vmatmul.mubr.f32.gmra.mrb[0].mxu0 %v2446
    %v2517 = vpop.f32.mrb[0].mxu0
    %v2518 = vadd.f32 %v2444, %v2517
    %v2519 = vpop.f32.mrb[0].mxu0
    %2520 = vmatprep.mubr.f32.mxu0 0.0
    %2521 = vmatmul.mubr.f32.gmra.mrb[0].mxu0 %v2449
    %v2522 = vpop.f32.mrb[0].mxu0
    %v2523 = vadd.f32 %v2444, %v2522
    %v2524 = vpop.f32.mrb[0].mxu0
    %2525 = vdwg.mxu0
    %v2526 = vadd.f32 %v2518, %v1489
    %v2527 = vadd.f32 %v2523, %v1490
    %v2528 = vsel %vm144, %v2526, 0.0
    %2529 = vadd.xlane.f32.xlu0 %v2528
    %v2530 = vpop.xlane.xlu0 %2529
    %v2531 = vsel %vm144, %v2527, 0.0
    %2532 = vadd.xlane.f32.xlu0 %v2531
    %v2533 = vpop.xlane.xlu0 %2532
    %v2534 = vmul.f32 %v2530, %v151
    %v2535 = vmul.f32 %v2533, %v151
    %v2536 = vsub.f32 %v2526, %v2534
    %v2537 = vsub.f32 %v2527, %v2535
    %v2538 = vmul.f32 %v2536, %v2536
    %v2539 = vmul.f32 %v2537, %v2537
    %v2540 = vsel %vm144, %v2538, 0.0
    %2541 = vadd.xlane.f32.xlu0 %v2540
    %v2542 = vpop.xlane.xlu0 %2541
    %v2543 = vsel %vm144, %v2539, 0.0
    %2544 = vadd.xlane.f32.xlu0 %v2543
    %v2545 = vpop.xlane.xlu0 %2544
    %v2546 = vmul.f32 %v2542, %v151
    %v2547 = vmul.f32 %v2545, %v151
    %v2548 = vadd.f32 %v2546, 1e-12
    %v2549 = vadd.f32 %v2547, 1e-12
    %v2550 = vrsqrt.pop %v2548
    %v2551 = vrsqrt.pop %v2549
    %v2552 = vmul.f32 %v2536, %v2550
    %v2553 = vmul.f32 %v2537, %v2551
    %v2554 = vlaneseq
    %v2555 = vshrl.u32 %v2554, 7
    %v2556 = vsub.s32 4, %v2555
    %v2557 = vrot.slane %v1511, %v2556
    %v2558 = vmul.f32 %v2552, %v2557
    %v2559 = vmul.f32 %v2553, %v2557
    %v2560 = vlaneseq
    %v2561 = vshrl.u32 %v2560, 7
    %v2562 = vsub.s32 5, %v2561
    %v2563 = vrot.slane %v1511, %v2562
    %v2564 = vadd.f32 %v2558, %v2563
    %v2565 = vadd.f32 %v2559, %v2563
    %v2566 = vlaneseq
    %v2567 = vshrl.u32 %v2566, 7
    %v2568 = vsub.s32 2, %v2567
    %v2569 = vrot.slane %v1511, %v2568
    %v2571 = vsel %vm144, %v2564, 0
    %v2574 = vsel %vm144, %v2565, 0
    %2576 = vmatprep.subr.mxu0 0.0
    %2577 = vmatpush1.msra.mxu0 %v1499
    %2578 = vmatprep.subr.mxu0 0.0
    %2579 = vmatpush1.msra.mxu0 %v1500
    %2580 = vmatprep.subr.mxu0 0.0
    %2581 = vmatpush1.msra.mxu0 %v1501
    %2582 = vmatprep.subr.mxu0 0.0
    %2583 = vmatpush1.msra.mxu0 %v1502
    %2584 = vmatprep.subr.mxu0 0.0
    %2585 = vmatpush1.msra.mxu0 0.0
    %2586 = vmatprep.subr.mxu0 0.0
    %2587 = vmatpush1.msra.mxu0 0.0
    %2588 = vmatprep.subr.mxu0 0.0
    %2589 = vmatpush1.msra.mxu0 0.0
    %2590 = vmatprep.subr.mxu0 0.0
    %2591 = vmatpush1.msra.mxu0 0.0
    %2592 = vmatprep.subr.mxu0 0.0
    %2593 = vmatpush1.msra.mxu0 0.0
    %2594 = vmatprep.subr.mxu0 0.0
    %2595 = vmatpush1.msra.mxu0 0.0
    %2596 = vmatprep.subr.mxu0 0.0
    %2597 = vmatpush1.msra.mxu0 0.0
    %2598 = vmatprep.subr.mxu0 0.0
    %2599 = vmatpush1.msra.mxu0 0.0
    %2600 = vmatprep.subr.mxu0 0.0
    %2601 = vmatpush1.msra.mxu0 0.0
    %2602 = vmatprep.subr.mxu0 0.0
    %2603 = vmatpush1.msra.mxu0 0.0
    %2604 = vmatprep.subr.mxu0 0.0
    %2605 = vmatpush1.msra.mxu0 0.0
    %2606 = vmatprep.subr.mxu0 0.0
    %2607 = vmatpush1.msra.mxu0 0.0
    %2608 = vmatprep.subr.mxu0 0.0
    %2609 = vmatpush1.msra.mxu0 0.0
    %2610 = vmatprep.subr.mxu0 0.0
    %2611 = vmatpush1.msra.mxu0 0.0
    %2612 = vmatprep.subr.mxu0 0.0
    %2613 = vmatpush1.msra.mxu0 0.0
    %2614 = vmatprep.subr.mxu0 0.0
    %2615 = vmatpush1.msra.mxu0 0.0
    %2616 = vmatprep.subr.mxu0 0.0
    %2617 = vmatpush1.msra.mxu0 0.0
    %2618 = vmatprep.subr.mxu0 0.0
    %2619 = vmatpush1.msra.mxu0 0.0
    %2620 = vmatprep.subr.mxu0 0.0
    %2621 = vmatpush1.msra.mxu0 0.0
    %2622 = vmatprep.subr.mxu0 0.0
    %2623 = vmatpush1.msra.mxu0 0.0
    %2624 = vmatprep.subr.mxu0 0.0
    %2625 = vmatpush1.msra.mxu0 0.0
    %2626 = vmatprep.subr.mxu0 0.0
    %2627 = vmatpush1.msra.mxu0 0.0
    %2628 = vmatprep.subr.mxu0 0.0
    %2629 = vmatpush1.msra.mxu0 0.0
    %2630 = vmatprep.subr.mxu0 0.0
    %2631 = vmatpush1.msra.mxu0 0.0
    %2632 = vmatprep.subr.mxu0 0.0
    %2633 = vmatpush1.msra.mxu0 0.0
    %2634 = vmatprep.subr.mxu0 0.0
    %2635 = vmatpush1.msra.mxu0 0.0
    %2636 = vmatprep.subr.mxu0 0.0
    %2637 = vmatpush1.msra.mxu0 0.0
    %2638 = vmatprep.subr.mxu0 0.0
    %2639 = vmatpush1.msra.mxu0 0.0
    %2640 = vmatprep.mubr.f32.mxu0 0.0
    %2641 = vmatmul.mubr.f32.gmra.mrb[0].mxu0 %v2571
    %v2642 = vpop.f32.mrb[0].mxu0
    %v2643 = vadd.f32 %v2569, %v2642
    %v2644 = vpop.f32.mrb[0].mxu0
    %2645 = vmatprep.mubr.f32.mxu0 0.0
    %2646 = vmatmul.mubr.f32.gmra.mrb[0].mxu0 %v2574
    %v2647 = vpop.f32.mrb[0].mxu0
    %v2648 = vadd.f32 %v2569, %v2647
    %v2649 = vpop.f32.mrb[0].mxu0
    %2650 = vdwg.mxu0
    %v2651 = vmul.f32 %v2643, %v2643
    %v2652 = vmul.f32 %v2648, %v2648
    %v2653 = vmul.f32 %v2643, %v2651
    %v2654 = vmul.f32 %v2648, %v2652
    %v2655 = vmul.f32 %v2653, 0.044715
    %v2656 = vmul.f32 %v2654, 0.044715
    %v2657 = vadd.f32 %v2643, %v2655
    %v2658 = vadd.f32 %v2648, %v2656
    %v2659 = vmul.f32 %v2657, 0.7978846
    %v2660 = vmul.f32 %v2658, 0.7978846
    %v2661 = vtanh.pop %v2659
    %v2662 = vtanh.pop %v2660
    %v2663 = vadd.f32 %v2661, 1.0
    %v2664 = vadd.f32 %v2662, 1.0
    %v2665 = vmul.f32 %v2663, 0.5
    %v2666 = vmul.f32 %v2664, 0.5
    %v2667 = vmul.f32 %v2643, %v2665
    %v2668 = vmul.f32 %v2648, %v2666
    %v2669 = vlaneseq
    %v2670 = vshrl.u32 %v2669, 7
    %v2671 = vsub.s32 3, %v2670
    %v2672 = vrot.slane %v1511, %v2671
    %v2674 = vsel %vm1369, %v2667, 0
    %v2677 = vsel %vm1369, %v2668, 0
    %2679 = vmatprep.subr.mxu0 0.0
    %2680 = vmatpush1.msra.mxu0 %v1503
    %2681 = vmatprep.subr.mxu0 0.0
    %2682 = vmatpush1.msra.mxu0 %v1504
    %2683 = vmatprep.subr.mxu0 0.0
    %2684 = vmatpush1.msra.mxu0 %v1505
    %2685 = vmatprep.subr.mxu0 0.0
    %2686 = vmatpush1.msra.mxu0 %v1506
    %2687 = vmatprep.subr.mxu0 0.0
    %2688 = vmatpush1.msra.mxu0 %v1507
    %2689 = vmatprep.subr.mxu0 0.0
    %2690 = vmatpush1.msra.mxu0 %v1508
    %2691 = vmatprep.subr.mxu0 0.0
    %2692 = vmatpush1.msra.mxu0 %v1509
    %2693 = vmatprep.subr.mxu0 0.0
    %2694 = vmatpush1.msra.mxu0 %v1510
    %2695 = vmatprep.subr.mxu0 0.0
    %2696 = vmatpush1.msra.mxu0 0.0
    %2697 = vmatprep.subr.mxu0 0.0
    %2698 = vmatpush1.msra.mxu0 0.0
    %2699 = vmatprep.subr.mxu0 0.0
    %2700 = vmatpush1.msra.mxu0 0.0
    %2701 = vmatprep.subr.mxu0 0.0
    %2702 = vmatpush1.msra.mxu0 0.0
    %2703 = vmatprep.subr.mxu0 0.0
    %2704 = vmatpush1.msra.mxu0 0.0
    %2705 = vmatprep.subr.mxu0 0.0
    %2706 = vmatpush1.msra.mxu0 0.0
    %2707 = vmatprep.subr.mxu0 0.0
    %2708 = vmatpush1.msra.mxu0 0.0
    %2709 = vmatprep.subr.mxu0 0.0
    %2710 = vmatpush1.msra.mxu0 0.0
    %2711 = vmatprep.subr.mxu0 0.0
    %2712 = vmatpush1.msra.mxu0 0.0
    %2713 = vmatprep.subr.mxu0 0.0
    %2714 = vmatpush1.msra.mxu0 0.0
    %2715 = vmatprep.subr.mxu0 0.0
    %2716 = vmatpush1.msra.mxu0 0.0
    %2717 = vmatprep.subr.mxu0 0.0
    %2718 = vmatpush1.msra.mxu0 0.0
    %2719 = vmatprep.subr.mxu0 0.0
    %2720 = vmatpush1.msra.mxu0 0.0
    %2721 = vmatprep.subr.mxu0 0.0
    %2722 = vmatpush1.msra.mxu0 0.0
    %2723 = vmatprep.subr.mxu0 0.0
    %2724 = vmatpush1.msra.mxu0 0.0
    %2725 = vmatprep.subr.mxu0 0.0
    %2726 = vmatpush1.msra.mxu0 0.0
    %2727 = vmatprep.subr.mxu0 0.0
    %2728 = vmatpush1.msra.mxu0 0.0
    %2729 = vmatprep.subr.mxu0 0.0
    %2730 = vmatpush1.msra.mxu0 0.0
    %2731 = vmatprep.subr.mxu0 0.0
    %2732 = vmatpush1.msra.mxu0 0.0
    %2733 = vmatprep.subr.mxu0 0.0
    %2734 = vmatpush1.msra.mxu0 0.0
    %2735 = vmatprep.subr.mxu0 0.0
    %2736 = vmatpush1.msra.mxu0 0.0
    %2737 = vmatprep.subr.mxu0 0.0
    %2738 = vmatpush1.msra.mxu0 0.0
    %2739 = vmatprep.subr.mxu0 0.0
    %2740 = vmatpush1.msra.mxu0 0.0
    %2741 = vmatprep.subr.mxu0 0.0
    %2742 = vmatpush1.msra.mxu0 0.0
    %2743 = vmatprep.mubr.f32.mxu0 0.0
    %2744 = vmatmul.mubr.f32.gmra.mrb[0].mxu0 %v2674
    %v2745 = vpop.f32.mrb[0].mxu0
    %v2746 = vadd.f32 %v2672, %v2745
    %v2747 = vpop.f32.mrb[0].mxu0
    %2748 = vmatprep.mubr.f32.mxu0 0.0
    %2749 = vmatmul.mubr.f32.gmra.mrb[0].mxu0 %v2677
    %v2750 = vpop.f32.mrb[0].mxu0
    %v2751 = vadd.f32 %v2672, %v2750
    %v2752 = vpop.f32.mrb[0].mxu0
    %2753 = vdwg.mxu0
    %v2754 = vadd.f32 %v2746, %v2564
    %v2755 = vadd.f32 %v2751, %v2565
    %v2756 = vsel %vm144, %v2754, 0.0
    %2757 = vadd.xlane.f32.xlu0 %v2756
    %v2758 = vpop.xlane.xlu0 %2757
    %v2759 = vsel %vm144, %v2755, 0.0
    %2760 = vadd.xlane.f32.xlu0 %v2759
    %v2761 = vpop.xlane.xlu0 %2760
    %v2762 = vmul.f32 %v2758, %v151
    %v2763 = vmul.f32 %v2761, %v151
    %v2764 = vsub.f32 %v2754, %v2762
    %v2765 = vsub.f32 %v2755, %v2763
    %v2766 = vmul.f32 %v2764, %v2764
    %v2767 = vmul.f32 %v2765, %v2765
    %v2768 = vsel %vm144, %v2766, 0.0
    %2769 = vadd.xlane.f32.xlu0 %v2768
    %v2770 = vpop.xlane.xlu0 %2769
    %v2771 = vsel %vm144, %v2767, 0.0
    %2772 = vadd.xlane.f32.xlu0 %v2771
    %v2773 = vpop.xlane.xlu0 %2772
    %v2774 = vmul.f32 %v2770, %v151
    %v2775 = vmul.f32 %v2773, %v151
    %v2776 = vadd.f32 %v2774, 1e-12
    %v2777 = vadd.f32 %v2775, 1e-12
    %v2778 = vrsqrt.pop %v2776
    %v2779 = vrsqrt.pop %v2777
    %v2780 = vmul.f32 %v2764, %v2778
    %v2781 = vmul.f32 %v2765, %v2779
    %v2782 = vlaneseq
    %v2783 = vshrl.u32 %v2782, 7
    %v2784 = vsub.s32 6, %v2783
    %v2785 = vrot.slane %v1511, %v2784
    %v2786 = vmul.f32 %v2780, %v2785
    %v2787 = vmul.f32 %v2781, %v2785
    %v2788 = vlaneseq
    %v2789 = vshrl.u32 %v2788, 7
    %v2790 = vsub.s32 7, %v2789
    %v2791 = vrot.slane %v1511, %v2790
    %v2792 = vadd.f32 %v2786, %v2791
    %v2793 = vadd.f32 %v2787, %v2791
    %v2794 = vld [vmem:[#allocation2 + $0x1d8] sm:$0xff]
    %v2795 = vld [vmem:[#allocation2 + $0x1e0] sm:$0xff]
    %v2796 = vld [vmem:[#allocation2 + $0x1e8] sm:$0xff]
    %v2797 = vld [vmem:[#allocation2 + $0x1f0] sm:$0xff]
    %v2798 = vld [vmem:[#allocation2 + $0x1f8] sm:$0xff]
    %v2799 = vld [vmem:[#allocation2 + $0x200] sm:$0xff]
    %v2800 = vld [vmem:[#allocation2 + $0x208] sm:$0xff]
    %v2801 = vld [vmem:[#allocation2 + $0x210] sm:$0xff]
    %v2802 = vld [vmem:[#allocation2 + $0x218] sm:$0xff]
    %v2804 = vsel %vm384, %v30, 0
    %2806 = vmatprep.subr.mxu0 0.0
    %2807 = vmatpush1.msra.mxu0 %v2792
    %2808 = vmatprep.subr.mxu0 0.0
    %2809 = vmatpush1.msra.mxu0 %v2793
    %2810 = vmatprep.subr.mxu0 0.0
    %2811 = vmatpush1.msra.mxu0 0.0
    %2812 = vmatprep.subr.mxu0 0.0
    %2813 = vmatpush1.msra.mxu0 0.0
    %2814 = vmatprep.subr.mxu0 0.0
    %2815 = vmatpush1.msra.mxu0 0.0
    %2816 = vmatprep.subr.mxu0 0.0
    %2817 = vmatpush1.msra.mxu0 0.0
    %2818 = vmatprep.subr.mxu0 0.0
    %2819 = vmatpush1.msra.mxu0 0.0
    %2820 = vmatprep.subr.mxu0 0.0
    %2821 = vmatpush1.msra.mxu0 0.0
    %2822 = vmatprep.subr.mxu0 0.0
    %2823 = vmatpush1.msra.mxu0 0.0
    %2824 = vmatprep.subr.mxu0 0.0
    %2825 = vmatpush1.msra.mxu0 0.0
    %2826 = vmatprep.subr.mxu0 0.0
    %2827 = vmatpush1.msra.mxu0 0.0
    %2828 = vmatprep.subr.mxu0 0.0
    %2829 = vmatpush1.msra.mxu0 0.0
    %2830 = vmatprep.subr.mxu0 0.0
    %2831 = vmatpush1.msra.mxu0 0.0
    %2832 = vmatprep.subr.mxu0 0.0
    %2833 = vmatpush1.msra.mxu0 0.0
    %2834 = vmatprep.subr.mxu0 0.0
    %2835 = vmatpush1.msra.mxu0 0.0
    %2836 = vmatprep.subr.mxu0 0.0
    %2837 = vmatpush1.msra.mxu0 0.0
    %2838 = vmatprep.subr.mxu0 0.0
    %2839 = vmatpush1.msra.mxu0 0.0
    %2840 = vmatprep.subr.mxu0 0.0
    %2841 = vmatpush1.msra.mxu0 0.0
    %2842 = vmatprep.subr.mxu0 0.0
    %2843 = vmatpush1.msra.mxu0 0.0
    %2844 = vmatprep.subr.mxu0 0.0
    %2845 = vmatpush1.msra.mxu0 0.0
    %2846 = vmatprep.subr.mxu0 0.0
    %2847 = vmatpush1.msra.mxu0 0.0
    %2848 = vmatprep.subr.mxu0 0.0
    %2849 = vmatpush1.msra.mxu0 0.0
    %2850 = vmatprep.subr.mxu0 0.0
    %2851 = vmatpush1.msra.mxu0 0.0
    %2852 = vmatprep.subr.mxu0 0.0
    %2853 = vmatpush1.msra.mxu0 0.0
    %2854 = vmatprep.subr.mxu0 0.0
    %2855 = vmatpush1.msra.mxu0 0.0
    %2856 = vmatprep.subr.mxu0 0.0
    %2857 = vmatpush1.msra.mxu0 0.0
    %2858 = vmatprep.subr.mxu0 0.0
    %2859 = vmatpush1.msra.mxu0 0.0
    %2860 = vmatprep.subr.mxu0 0.0
    %2861 = vmatpush1.msra.mxu0 0.0
    %2862 = vmatprep.subr.mxu0 0.0
    %2863 = vmatpush1.msra.mxu0 0.0
    %2864 = vmatprep.subr.mxu0 0.0
    %2865 = vmatpush1.msra.mxu0 0.0
    %2866 = vmatprep.subr.mxu0 0.0
    %2867 = vmatpush1.msra.mxu0 0.0
    %2868 = vmatprep.subr.mxu0 0.0
    %2869 = vmatpush1.msra.mxu0 0.0
    %2870 = vmatprep.mubr.f32.mxu0 0.0
    %2871 = vmatmul.mubr.f32.gmra.mrb[0].mxu0 %v2804
    %v2872 = vpop.f32.mrb[0].mxu0
    %v2873 = vadd.f32 0.0, %v2872
    %v2874 = vpop.f32.mrb[0].mxu0
    %2875 = vdwg.mxu0
    %v2876 = vlaneseq
    %v2877 = vshrl.u32 %v2876, 7
    %v2878 = vsub.s32 0, %v2877
    %v2879 = vrot.slane %v2802, %v2878
    %v2881 = vsel %vm144, %v2873, 0
    %2883 = vmatprep.subr.mxu0 0.0
    %2884 = vmatpush1.msra.mxu0 %v2794
    %2885 = vmatprep.subr.mxu0 0.0
    %2886 = vmatpush1.msra.mxu0 %v2795
    %2887 = vmatprep.subr.mxu0 0.0
    %2888 = vmatpush1.msra.mxu0 %v2796
    %2889 = vmatprep.subr.mxu0 0.0
    %2890 = vmatpush1.msra.mxu0 %v2797
    %2891 = vmatprep.subr.mxu0 0.0
    %2892 = vmatpush1.msra.mxu0 0.0
    %2893 = vmatprep.subr.mxu0 0.0
    %2894 = vmatpush1.msra.mxu0 0.0
    %2895 = vmatprep.subr.mxu0 0.0
    %2896 = vmatpush1.msra.mxu0 0.0
    %2897 = vmatprep.subr.mxu0 0.0
    %2898 = vmatpush1.msra.mxu0 0.0
    %2899 = vmatprep.subr.mxu0 0.0
    %2900 = vmatpush1.msra.mxu0 0.0
    %2901 = vmatprep.subr.mxu0 0.0
    %2902 = vmatpush1.msra.mxu0 0.0
    %2903 = vmatprep.subr.mxu0 0.0
    %2904 = vmatpush1.msra.mxu0 0.0
    %2905 = vmatprep.subr.mxu0 0.0
    %2906 = vmatpush1.msra.mxu0 0.0
    %2907 = vmatprep.subr.mxu0 0.0
    %2908 = vmatpush1.msra.mxu0 0.0
    %2909 = vmatprep.subr.mxu0 0.0
    %2910 = vmatpush1.msra.mxu0 0.0
    %2911 = vmatprep.subr.mxu0 0.0
    %2912 = vmatpush1.msra.mxu0 0.0
    %2913 = vmatprep.subr.mxu0 0.0
    %2914 = vmatpush1.msra.mxu0 0.0
    %2915 = vmatprep.subr.mxu0 0.0
    %2916 = vmatpush1.msra.mxu0 0.0
    %2917 = vmatprep.subr.mxu0 0.0
    %2918 = vmatpush1.msra.mxu0 0.0
    %2919 = vmatprep.subr.mxu0 0.0
    %2920 = vmatpush1.msra.mxu0 0.0
    %2921 = vmatprep.subr.mxu0 0.0
    %2922 = vmatpush1.msra.mxu0 0.0
    %2923 = vmatprep.subr.mxu0 0.0
    %2924 = vmatpush1.msra.mxu0 0.0
    %2925 = vmatprep.subr.mxu0 0.0
    %2926 = vmatpush1.msra.mxu0 0.0
    %2927 = vmatprep.subr.mxu0 0.0
    %2928 = vmatpush1.msra.mxu0 0.0
    %2929 = vmatprep.subr.mxu0 0.0
    %2930 = vmatpush1.msra.mxu0 0.0
    %2931 = vmatprep.subr.mxu0 0.0
    %2932 = vmatpush1.msra.mxu0 0.0
    %2933 = vmatprep.subr.mxu0 0.0
    %2934 = vmatpush1.msra.mxu0 0.0
    %2935 = vmatprep.subr.mxu0 0.0
    %2936 = vmatpush1.msra.mxu0 0.0
    %2937 = vmatprep.subr.mxu0 0.0
    %2938 = vmatpush1.msra.mxu0 0.0
    %2939 = vmatprep.subr.mxu0 0.0
    %2940 = vmatpush1.msra.mxu0 0.0
    %2941 = vmatprep.subr.mxu0 0.0
    %2942 = vmatpush1.msra.mxu0 0.0
    %2943 = vmatprep.subr.mxu0 0.0
    %2944 = vmatpush1.msra.mxu0 0.0
    %2945 = vmatprep.subr.mxu0 0.0
    %2946 = vmatpush1.msra.mxu0 0.0
    %2947 = vmatprep.mubr.f32.mxu0 0.0
    %2948 = vmatmul.mubr.f32.gmra.mrb[0].mxu0 %v2881
    %v2949 = vpop.f32.mrb[0].mxu0
    %v2950 = vadd.f32 %v2879, %v2949
    %v2951 = vpop.f32.mrb[0].mxu0
    %2952 = vdwg.mxu0
    %v2953 = vtanh.pop %v2950
    %v2954 = vlaneseq
    %v2955 = vshrl.u32 %v2954, 7
    %v2956 = vsub.s32 1, %v2955
    %v2957 = vrot.slane %v2802, %v2956
    %v2959 = vsel %vm144, %v2953, 0
    %2961 = vmatprep.subr.mxu0 0.0
    %2962 = vmatpush1.msra.mxu0 %v2798
    %2963 = vmatprep.subr.mxu0 0.0
    %2964 = vmatpush1.msra.mxu0 %v2799
    %2965 = vmatprep.subr.mxu0 0.0
    %2966 = vmatpush1.msra.mxu0 %v2800
    %2967 = vmatprep.subr.mxu0 0.0
    %2968 = vmatpush1.msra.mxu0 %v2801
    %2969 = vmatprep.subr.mxu0 0.0
    %2970 = vmatpush1.msra.mxu0 0.0
    %2971 = vmatprep.subr.mxu0 0.0
    %2972 = vmatpush1.msra.mxu0 0.0
    %2973 = vmatprep.subr.mxu0 0.0
    %2974 = vmatpush1.msra.mxu0 0.0
    %2975 = vmatprep.subr.mxu0 0.0
    %2976 = vmatpush1.msra.mxu0 0.0
    %2977 = vmatprep.subr.mxu0 0.0
    %2978 = vmatpush1.msra.mxu0 0.0
    %2979 = vmatprep.subr.mxu0 0.0
    %2980 = vmatpush1.msra.mxu0 0.0
    %2981 = vmatprep.subr.mxu0 0.0
    %2982 = vmatpush1.msra.mxu0 0.0
    %2983 = vmatprep.subr.mxu0 0.0
    %2984 = vmatpush1.msra.mxu0 0.0
    %2985 = vmatprep.subr.mxu0 0.0
    %2986 = vmatpush1.msra.mxu0 0.0
    %2987 = vmatprep.subr.mxu0 0.0
    %2988 = vmatpush1.msra.mxu0 0.0
    %2989 = vmatprep.subr.mxu0 0.0
    %2990 = vmatpush1.msra.mxu0 0.0
    %2991 = vmatprep.subr.mxu0 0.0
    %2992 = vmatpush1.msra.mxu0 0.0
    %2993 = vmatprep.subr.mxu0 0.0
    %2994 = vmatpush1.msra.mxu0 0.0
    %2995 = vmatprep.subr.mxu0 0.0
    %2996 = vmatpush1.msra.mxu0 0.0
    %2997 = vmatprep.subr.mxu0 0.0
    %2998 = vmatpush1.msra.mxu0 0.0
    %2999 = vmatprep.subr.mxu0 0.0
    %3000 = vmatpush1.msra.mxu0 0.0
    %3001 = vmatprep.subr.mxu0 0.0
    %3002 = vmatpush1.msra.mxu0 0.0
    %3003 = vmatprep.subr.mxu0 0.0
    %3004 = vmatpush1.msra.mxu0 0.0
    %3005 = vmatprep.subr.mxu0 0.0
    %3006 = vmatpush1.msra.mxu0 0.0
    %3007 = vmatprep.subr.mxu0 0.0
    %3008 = vmatpush1.msra.mxu0 0.0
    %3009 = vmatprep.subr.mxu0 0.0
    %3010 = vmatpush1.msra.mxu0 0.0
    %3011 = vmatprep.subr.mxu0 0.0
    %3012 = vmatpush1.msra.mxu0 0.0
    %3013 = vmatprep.subr.mxu0 0.0
    %3014 = vmatpush1.msra.mxu0 0.0
    %3015 = vmatprep.subr.mxu0 0.0
    %3016 = vmatpush1.msra.mxu0 0.0
    %3017 = vmatprep.subr.mxu0 0.0
    %3018 = vmatpush1.msra.mxu0 0.0
    %3019 = vmatprep.subr.mxu0 0.0
    %3020 = vmatpush1.msra.mxu0 0.0
    %3021 = vmatprep.subr.mxu0 0.0
    %3022 = vmatpush1.msra.mxu0 0.0
    %3023 = vmatprep.subr.mxu0 0.0
    %3024 = vmatpush1.msra.mxu0 0.0
    %3025 = vmatprep.mubr.f32.mxu0 0.0
    %3026 = vmatmul.mubr.f32.gmra.mrb[0].mxu0 %v2959
    %v3027 = vpop.f32.mrb[0].mxu0
    %v3028 = vadd.f32 %v2957, %v3027
    %v3029 = vpop.f32.mrb[0].mxu0
    %3030 = vdwg.mxu0
    %vm3031 = vcmask 33792
    %3032 = vst.msk [vmem:[#allocation5] sm:$0x3] %vm3031, %v3028
    // Predicated region
    $region14: #{bert_for_lang_id.1} parent=1 // pred_check
      _
    $region15: #{bert_for_lang_id.1} parent=1 // pred_check_branch
      %3034 = sbr.rel (0) target = $region17
    $region16: #{bert_for_lang_id.1} parent=1 // pred_region
      %s3036 = ssub.s32 32, 32
      %3037 = vsyncadd [#allocation4], %s3036
      %s3039 = sshll.u32 [#allocation5], 4
      %s3040 = int_to_ptr.vmem [resolvable:$true] %s3039
      %3042 = dma.vmem_to_hbm [thread:$0]  %s3040, 32, %s2, [#allocation4]
    $region17: #{bert_for_lang_id.1} parent=1 // pred_fallthru
      _
    // Predicated region
    $region18: #{bert_for_lang_id.1} parent=1 // pred_check
      _
    $region19: #{bert_for_lang_id.1} parent=1 // pred_check_branch
      %3044 = sbr.rel (0) target = $region21
    $region20: #{bert_for_lang_id.1} parent=1 // pred_region
      %3045 = dma.done [#allocation4], 32
    $region21: #{bert_for_lang_id.1} parent=1 // pred_fallthru
      _
    %3046 = vsyncpa [#allocation3], 1
    %3047 = vsyncpa [#allocation4], 1

</llo_original>
